<compile_context>
chip_gen: v7x
topology: tpu7x:2x2x1
jax: 0.10.0
libtpu: 0.0.40
codegen_flags: <defaults>
</compile_context>

<pallas_src>
import functools

import jax
import jax.numpy as jnp
from jax import lax
from jax.experimental import pallas as pl
from jax.experimental.pallas import tpu as pltpu

_BN_EPS = 1e-3
_VMEM_LIMIT = 32 * 1024 * 1024  # explicit, safe on v5e/v6e/v7x


def _round_up(x, m):
    return (x + m - 1) // m * m


def _fold_bn(gamma, beta, mean, var):
    inv = gamma / jnp.sqrt(var + _BN_EPS)
    scale = inv.astype(jnp.float32).reshape(1, -1)
    bias = (beta - mean * inv).astype(jnp.float32).reshape(1, -1)
    return scale, bias


# ---------------- 1x1x1 conv (pointwise GEMM) + BN + ReLU --------------------


def _pointwise_conv_kernel(x_ref, w_ref, scale_ref, bias_ref, o_ref):
    y = jnp.dot(x_ref[...], w_ref[...], preferred_element_type=jnp.float32)
    y = y * scale_ref[...] + bias_ref[...]
    o_ref[...] = jnp.maximum(y, 0.0).astype(o_ref.dtype)


def conv1x1_bn_relu(x_ndhwc, w, gamma, beta, mean, var, out_dtype):
    """x: (N,D,H,W,Cin); w: (Cout,Cin,1,1,1) PyTorch layout."""
    N, D, H, W, Cin = x_ndhwc.shape
    Cout = w.shape[0]
    M = N * D * H * W
    tm = min(512, _round_up(M, 8))
    Mp = _round_up(M, tm)

    xf = x_ndhwc.astype(jnp.bfloat16).reshape(M, Cin)
    if Mp != M:
        xf = jnp.pad(xf, ((0, Mp - M), (0, 0)))
    wm = jnp.transpose(w.reshape(Cout, Cin)).astype(jnp.bfloat16)  # (Cin,Cout)
    scale, bias = _fold_bn(gamma, beta, mean, var)

    out = pl.pallas_call(
        _pointwise_conv_kernel,
        out_shape=jax.ShapeDtypeStruct((Mp, Cout), out_dtype),
        grid_spec=pltpu.PrefetchScalarGridSpec(
            num_scalar_prefetch=0,
            grid=(Mp // tm,),
            in_specs=[
                pl.BlockSpec((tm, Cin), lambda i: (i, 0)),
                pl.BlockSpec((Cin, Cout), lambda i: (0, 0)),
                pl.BlockSpec((1, Cout), lambda i: (0, 0)),
                pl.BlockSpec((1, Cout), lambda i: (0, 0)),
            ],
            out_specs=pl.BlockSpec((tm, Cout), lambda i: (i, 0)),
        ),
        compiler_params=pltpu.CompilerParams(
            dimension_semantics=("parallel",),
            vmem_limit_bytes=_VMEM_LIMIT),
        cost_estimate=pl.CostEstimate(
            flops=2 * Mp * Cin * Cout,
            transcendentals=0,
            bytes_accessed=(Mp * Cin * 2 + Cin * Cout * 2
                            + Mp * Cout * jnp.dtype(out_dtype).itemsize)),
    )(xf, wm, scale, bias)
    return out[:M].reshape(N, D, H, W, Cout)


# ---------------- general stride-1 3D conv + BN + ReLU -----------------------


def _spatial_conv_kernel(x_ref, w_ref, scale_ref, bias_ref, o_ref,
                         acc_ref, lhs_ref, *, kh, kw, wp, cin, m):
    # Grid: (N, Do, kd); kd (depth tap) is the innermost reduction axis.
    t = pl.program_id(2)

    @pl.when(t == 0)
    def _():
        acc_ref[...] = jnp.zeros_like(acc_ref)

    # Assemble the K-grouped LHS (m, kh*kw*cin): column block i holds the
    # flattened-plane rows shifted by the i-th (th, tw) tap offset.  Every
    # piece is a contiguous 2-D row window of x_ref -> no reshapes/gathers.
    i = 0
    for th in range(kh):
        for tw in range(kw):
            base = th * wp + tw
            lhs_ref[:, i * cin:(i + 1) * cin] = x_ref[pl.ds(base, m), :]
            i += 1

    acc_ref[...] += jnp.dot(lhs_ref[...], w_ref[...],
                            preferred_element_type=jnp.float32)

    @pl.when(t == pl.num_programs(2) - 1)
    def _():
        y = acc_ref[...] * scale_ref[...] + bias_ref[...]
        o_ref[...] = jnp.maximum(y, 0.0).astype(o_ref.dtype)


def conv3d_bn_relu(x_ndhwc, q, padding, out_dtype):
    """Stride-1 3D conv + folded BN + ReLU.  x: (N,D,H,W,Cin) NDHWC."""
    w = q["w"]
    N, D, H, W, Cin = x_ndhwc.shape
    Cout, _, kd, kh, kw = w.shape
    pd, ph, pw = padding
    Dp, Hp, Wp = D + 2 * pd, H + 2 * ph, W + 2 * pw
    Do, Ho, Wo = Dp - kd + 1, Hp - kh + 1, Wp - kw + 1

    # Padded, channels-last, bf16 activation; flatten each (Hp, Wp) plane to
    # rows and append (kw-1) rows so every tap-shifted window is in bounds.
    xp = jnp.pad(x_ndhwc.astype(jnp.bfloat16),
                 ((0, 0), (pd, pd), (ph, ph), (pw, pw), (0, 0)))
    R = Hp * Wp + (kw - 1)
    xf = xp.reshape(N, Dp, Hp * Wp, Cin)
    if kw > 1:
        xf = jnp.pad(xf, ((0, 0), (0, 0), (0, kw - 1), (0, 0)))

    Kg = kh * kw * Cin          # grouped K per depth-tap GEMM
    Mout = Ho * Wp              # rows per output plane (kw-1 garbage columns)

    # (Cout, Cin, kd, kh, kw) -> (kd, kh*kw*Cin, Cout), matching LHS assembly.
    wg = (jnp.transpose(w, (2, 3, 4, 1, 0))
          .reshape(kd, Kg, Cout).astype(jnp.bfloat16))
    scale, bias = _fold_bn(q["gamma"], q["beta"], q["mean"], q["var"])

    kernel = functools.partial(_spatial_conv_kernel,
                               kh=kh, kw=kw, wp=Wp, cin=Cin, m=Mout)

    out_flat = pl.pallas_call(
        kernel,
        out_shape=jax.ShapeDtypeStruct((N, Do, Mout, Cout), out_dtype),
        grid_spec=pltpu.PrefetchScalarGridSpec(
            num_scalar_prefetch=0,
            grid=(N, Do, kd),
            in_specs=[
                # one padded depth slice (shifted by the depth tap t)
                pl.BlockSpec((pl.Squeezed(), pl.Squeezed(), R, Cin),
                             lambda n, d, t: (n, d + t, 0, 0)),
                pl.BlockSpec((pl.Squeezed(), Kg, Cout),
                             lambda n, d, t: (t, 0, 0)),
                pl.BlockSpec((1, Cout), lambda n, d, t: (0, 0)),
                pl.BlockSpec((1, Cout), lambda n, d, t: (0, 0)),
            ],
            out_specs=pl.BlockSpec(
                (pl.Squeezed(), pl.Squeezed(), Mout, Cout),
                lambda n, d, t: (n, d, 0, 0)),
            scratch_shapes=[
                pltpu.VMEM((Mout, Cout), jnp.float32),     # f32 accumulator
                pltpu.VMEM((Mout, Kg), jnp.bfloat16),      # K-grouped LHS
            ],
        ),
        compiler_params=pltpu.CompilerParams(
            dimension_semantics=("parallel", "parallel", "arbitrary"),
            vmem_limit_bytes=_VMEM_LIMIT),
        cost_estimate=pl.CostEstimate(
            flops=2 * N * Do * kd * Mout * Kg * Cout,
            transcendentals=0,
            bytes_accessed=(N * Dp * R * Cin * 2 * kd
                            + kd * Kg * Cout * 2
                            + N * Do * Mout * Cout
                            * jnp.dtype(out_dtype).itemsize)),
    )(xf, wg, scale, bias)

    out = out_flat.reshape(N, Do, Ho, Wp, Cout)
    if Wo != Wp:
        out = out[:, :, :, :Wo, :]   # drop the (kw-1) over-computed columns
    return out


# ---------------- parameter construction (deterministic, in-script) ----------


def _init_basic_conv3d(key, cout, cin, ks):
    kd, kh, kw = ks
    fan_in = cin * kd * kh * kw
    w = jax.random.normal(key, (cout, cin, kd, kh, kw),
                          jnp.float32) / jnp.sqrt(float(fan_in))
    return dict(
        w=w,
        gamma=jnp.ones((cout,), jnp.float32),
        beta=jnp.zeros((cout,), jnp.float32),
        mean=jnp.zeros((cout,), jnp.float32),
        var=jnp.ones((cout,), jnp.float32),
    )


def mixed4a_params(key):
    ks = jax.random.split(key, 6)
    return {
        "b0_0": _init_basic_conv3d(ks[0], 64, 160, (1, 1, 1)),
        "b0_1": _init_basic_conv3d(ks[1], 96, 64, (3, 3, 3)),
        "b1_0": _init_basic_conv3d(ks[2], 64, 160, (1, 1, 1)),
        "b1_1": _init_basic_conv3d(ks[3], 64, 64, (1, 1, 7)),
        "b1_2": _init_basic_conv3d(ks[4], 64, 64, (1, 7, 1)),
        "b1_3": _init_basic_conv3d(ks[5], 96, 64, (3, 3, 3)),
    }


# ---------------- forward pass ----------------------------------------------


def mixed4a_forward(x_ncdhw, p):
    x = jnp.transpose(x_ncdhw, (0, 2, 3, 4, 1))        # NCDHW -> NDHWC

    # Fuse the two 1x1x1 stems (same input) into one Cout=128 (lane-dense)
    # pointwise GEMM, then split into the two branch inputs.
    w01 = jnp.concatenate([p["b0_0"]["w"], p["b1_0"]["w"]], axis=0)
    g01 = jnp.concatenate([p["b0_0"]["gamma"], p["b1_0"]["gamma"]])
    b01 = jnp.concatenate([p["b0_0"]["beta"], p["b1_0"]["beta"]])
    m01 = jnp.concatenate([p["b0_0"]["mean"], p["b1_0"]["mean"]])
    v01 = jnp.concatenate([p["b0_0"]["var"], p["b1_0"]["var"]])
    stem = conv1x1_bn_relu(x, w01, g01, b01, m01, v01,
                           out_dtype=jnp.bfloat16)
    x0, x1 = stem[..., :64], stem[..., 64:]

    x0 = conv3d_bn_relu(x0, p["b0_1"], (0, 0, 0), out_dtype=jnp.float32)

    x1 = conv3d_bn_relu(x1, p["b1_1"], (0, 0, 3), out_dtype=jnp.bfloat16)
    x1 = conv3d_bn_relu(x1, p["b1_2"], (0, 3, 0), out_dtype=jnp.bfloat16)
    x1 = conv3d_bn_relu(x1, p["b1_3"], (0, 0, 0), out_dtype=jnp.float32)

    out = jnp.concatenate([x0, x1], axis=-1)            # channel concat
    return jnp.transpose(out, (0, 4, 1, 2, 3))          # back to NCDHW


# ---------------- pure-JAX reference (for correctness check) ----------------


def _ref_bcr(x_ncdhw, q, pad):
    y = lax.conv_general_dilated(
        x_ncdhw, q["w"], window_strides=(1, 1, 1),
        padding=[(pad[0], pad[0]), (pad[1], pad[1]), (pad[2], pad[2])],
        dimension_numbers=("NCDHW", "OIDHW", "NCDHW"))
    scale = q["gamma"] / jnp.sqrt(q["var"] + _BN_EPS)
    bias = q["beta"] - q["mean"] * scale
    y = y * scale[None, :, None, None, None] + bias[None, :, None, None, None]
    return jnp.maximum(y, 0.0)


def mixed4a_ref(x_ncdhw, p):
    x0 = _ref_bcr(x_ncdhw, p["b0_0"], (0, 0, 0))
    x0 = _ref_bcr(x0, p["b0_1"], (0, 0, 0))
    x1 = _ref_bcr(x_ncdhw, p["b1_0"], (0, 0, 0))
    x1 = _ref_bcr(x1, p["b1_1"], (0, 0, 3))
    x1 = _ref_bcr(x1, p["b1_2"], (0, 3, 0))
    x1 = _ref_bcr(x1, p["b1_3"], (0, 0, 0))
    return jnp.concatenate([x0, x1], axis=1)


if __name__ == "__main__":
    key = jax.random.PRNGKey(0)
    kx, kp = jax.random.split(key)

    # Small but valid shape: Cin is fixed at 160 by the module.
    x = jax.random.normal(kx, (2, 160, 4, 8, 8), jnp.float32)
    params = mixed4a_params(kp)

    fwd = jax.jit(mixed4a_forward)
    out = jax.block_until_ready(fwd(x, params))
    assert out.shape == (2, 192, 2, 6, 6), out.shape

    ref = jax.block_until_ready(mixed4a_ref(x, params))
    max_err = float(jnp.max(jnp.abs(out - ref)))
    # bf16 MXU operands with f32 accumulation -> looser tolerance than f32.
    assert jnp.allclose(out, ref, rtol=2e-2, atol=2e-2), max_err

    print("KERNEL_OK")
</pallas_src>

<mosaic_0001>
module attributes {stable_mosaic.version = 11 : i64} {
  func.func @_pointwise_conv_kernel(%arg0: i32, %arg1: memref<512x160xbf16, #tpu.memory_space<vmem>>, %arg2: memref<160x128xbf16, #tpu.memory_space<vmem>>, %arg3: memref<1x128xf32, #tpu.memory_space<vmem>>, %arg4: memref<1x128xf32, #tpu.memory_space<vmem>>, %arg5: memref<512x128xbf16, #tpu.memory_space<vmem>>) attributes {dimension_semantics = [#tpu.dimension_semantics<parallel>], iteration_bounds = array<i64: 1>, scalar_prefetch = 0 : i64, scratch_operands = 0 : i64, tpu.core_type = #tpu.core_type<tc>, window_params = [{transform_indices = @transform_0, window_bounds = array<i64: 512, 160>}, {pipeline_mode = #tpu.pipeline_mode<synchronous>, transform_indices = @transform_1, window_bounds = array<i64: 160, 128>}, {pipeline_mode = #tpu.pipeline_mode<synchronous>, transform_indices = @transform_2, window_bounds = array<i64: 1, 128>}, {pipeline_mode = #tpu.pipeline_mode<synchronous>, transform_indices = @transform_3, window_bounds = array<i64: 1, 128>}, {transform_indices = @transform_4, window_bounds = array<i64: 512, 128>}]} {
    %c0 = arith.constant 0 : index
    %c0_0 = arith.constant 0 : index
    %0 = vector.load %arg1[%c0, %c0_0] : memref<512x160xbf16, #tpu.memory_space<vmem>>, vector<512x160xbf16>
    %c0_1 = arith.constant 0 : index
    %c0_2 = arith.constant 0 : index
    %1 = vector.load %arg2[%c0_1, %c0_2] : memref<160x128xbf16, #tpu.memory_space<vmem>>, vector<160x128xbf16>
    %cst = arith.constant dense<0.000000e+00> : vector<512x128xf32>
    %2 = tpu.matmul %0, %1, %cst {dimension_numbers = #tpu.dot_dimension_numbers<[1], [0], [0], [1], [0, 0, 1, 1], [], []>} : vector<512x160xbf16>, vector<160x128xbf16>, vector<512x128xf32> -> vector<512x128xf32>
    %c0_3 = arith.constant 0 : index
    %c0_4 = arith.constant 0 : index
    %3 = vector.load %arg3[%c0_3, %c0_4] : memref<1x128xf32, #tpu.memory_space<vmem>>, vector<1x128xf32>
    %4 = vector.broadcast %3 : vector<1x128xf32> to vector<512x128xf32>
    %5 = arith.mulf %2, %4 : vector<512x128xf32>
    %c0_5 = arith.constant 0 : index
    %c0_6 = arith.constant 0 : index
    %6 = vector.load %arg4[%c0_5, %c0_6] : memref<1x128xf32, #tpu.memory_space<vmem>>, vector<1x128xf32>
    %7 = vector.broadcast %6 : vector<1x128xf32> to vector<512x128xf32>
    %8 = arith.addf %5, %7 : vector<512x128xf32>
    %cst_7 = arith.constant 0.000000e+00 : f32
    %9 = vector.broadcast %cst_7 : f32 to vector<512x128xf32>
    %10 = arith.maximumf %8, %9 : vector<512x128xf32>
    %11 = arith.truncf %10 : vector<512x128xf32> to vector<512x128xbf16>
    %c0_8 = arith.constant 0 : index
    %c0_9 = arith.constant 0 : index
    %12 = vector.load %arg5[%c0_8, %c0_9] : memref<512x128xbf16, #tpu.memory_space<vmem>>, vector<512x128xbf16>
    tpu.vector_store %arg5[%c0_8, %c0_9], %11 {strides = array<i32>} : memref<512x128xbf16, #tpu.memory_space<vmem>>, vector<512x128xbf16>,
    return
  }
  func.func @transform_0(%arg0: i32) -> (i32, i32) {
    %c0_i32 = arith.constant 0 : i32
    %c0_i32_0 = arith.constant 0 : i32
    return %arg0, %c0_i32 : i32, i32
  }
  func.func @transform_1(%arg0: i32) -> (i32, i32) {
    %c0_i32 = arith.constant 0 : i32
    %c0_i32_0 = arith.constant 0 : i32
    %c0_i32_1 = arith.constant 0 : i32
    return %c0_i32, %c0_i32_0 : i32, i32
  }
  func.func @transform_2(%arg0: i32) -> (i32, i32) {
    %c0_i32 = arith.constant 0 : i32
    %c0_i32_0 = arith.constant 0 : i32
    %c0_i32_1 = arith.constant 0 : i32
    return %c0_i32, %c0_i32_0 : i32, i32
  }
  func.func @transform_3(%arg0: i32) -> (i32, i32) {
    %c0_i32 = arith.constant 0 : i32
    %c0_i32_0 = arith.constant 0 : i32
    %c0_i32_1 = arith.constant 0 : i32
    return %c0_i32, %c0_i32_0 : i32, i32
  }
  func.func @transform_4(%arg0: i32) -> (i32, i32) {
    %c0_i32 = arith.constant 0 : i32
    %c0_i32_0 = arith.constant 0 : i32
    return %arg0, %c0_i32 : i32, i32
  }
}

module attributes {stable_mosaic.version = 11 : i64} {
  func.func @_spatial_conv_kernel(%arg0: i32, %arg1: i32, %arg2: i32, %arg3: memref<1x1x118x64xbf16, #tpu.memory_space<vmem>>, %arg4: memref<1x448x64xbf16, #tpu.memory_space<vmem>>, %arg5: memref<1x64xf32, #tpu.memory_space<vmem>>, %arg6: memref<1x64xf32, #tpu.memory_space<vmem>>, %arg7: memref<1x1x112x64xbf16, #tpu.memory_space<vmem>>, %arg8: memref<112x64xf32, #tpu.memory_space<vmem>>, %arg9: memref<112x448xbf16, #tpu.memory_space<vmem>>) attributes {dimension_semantics = [#tpu.dimension_semantics<parallel>, #tpu.dimension_semantics<parallel>, #tpu.dimension_semantics<arbitrary>], iteration_bounds = array<i64: 2, 4, 1>, scalar_prefetch = 0 : i64, scratch_operands = 2 : i64, tpu.core_type = #tpu.core_type<tc>, window_params = [{transform_indices = @transform_0, window_bounds = array<i64: 1, 1, 118, 64>}, {transform_indices = @transform_1, window_bounds = array<i64: 1, 448, 64>}, {pipeline_mode = #tpu.pipeline_mode<synchronous>, transform_indices = @transform_2, window_bounds = array<i64: 1, 64>}, {pipeline_mode = #tpu.pipeline_mode<synchronous>, transform_indices = @transform_3, window_bounds = array<i64: 1, 64>}, {transform_indices = @transform_4, window_bounds = array<i64: 1, 1, 112, 64>}]} {
    %c0_i32 = arith.constant 0 : i32
    %0 = arith.cmpi eq, %arg2, %c0_i32 : i32
    %1 = arith.extui %0 : i1 to i32
    %c0_i32_0 = arith.constant 0 : i32
    %2 = arith.cmpi ne, %1, %c0_i32_0 : i32
    scf.if %2 {
      %cst_41 = arith.constant 0.000000e+00 : f32
      %34 = vector.broadcast %cst_41 : f32 to vector<112x64xf32>
      %c0_42 = arith.constant 0 : index
      %c0_43 = arith.constant 0 : index
      %35 = vector.load %arg8[%c0_42, %c0_43] : memref<112x64xf32, #tpu.memory_space<vmem>>, vector<112x64xf32>
      tpu.vector_store %arg8[%c0_42, %c0_43], %34 {strides = array<i32>} : memref<112x64xf32, #tpu.memory_space<vmem>>, vector<112x64xf32>,
    } else {
    }
    %c0 = arith.constant 0 : index
    %c0_1 = arith.constant 0 : index
    %c0_2 = arith.constant 0 : index
    %c0_3 = arith.constant 0 : index
    %3 = vector.load %arg3[%c0, %c0_1, %c0_2, %c0_3] : memref<1x1x118x64xbf16, #tpu.memory_space<vmem>>, vector<1x1x112x64xbf16>
    %4 = vector.shape_cast %3 : vector<1x1x112x64xbf16> to vector<112x64xbf16>
    %c0_4 = arith.constant 0 : index
    %c0_5 = arith.constant 0 : index
    %5 = vector.load %arg9[%c0_4, %c0_5] : memref<112x448xbf16, #tpu.memory_space<vmem>>, vector<112x64xbf16>
    tpu.vector_store %arg9[%c0_4, %c0_5], %4 {strides = array<i32>} : memref<112x448xbf16, #tpu.memory_space<vmem>>, vector<112x64xbf16>,
    %c0_6 = arith.constant 0 : index
    %c0_7 = arith.constant 0 : index
    %c1 = arith.constant 1 : index
    %c0_8 = arith.constant 0 : index
    %6 = vector.load %arg3[%c0_6, %c0_7, %c1, %c0_8] : memref<1x1x118x64xbf16, #tpu.memory_space<vmem>>, vector<1x1x112x64xbf16>
    %7 = vector.shape_cast %6 : vector<1x1x112x64xbf16> to vector<112x64xbf16>
    %c0_9 = arith.constant 0 : index
    %c64 = arith.constant 64 : index
    %8 = vector.load %arg9[%c0_9, %c64] : memref<112x448xbf16, #tpu.memory_space<vmem>>, vector<112x64xbf16>
    tpu.vector_store %arg9[%c0_9, %c64], %7 {strides = array<i32>} : memref<112x448xbf16, #tpu.memory_space<vmem>>, vector<112x64xbf16>,
    %c0_10 = arith.constant 0 : index
    %c0_11 = arith.constant 0 : index
    %c2 = arith.constant 2 : index
    %c0_12 = arith.constant 0 : index
    %9 = vector.load %arg3[%c0_10, %c0_11, %c2, %c0_12] : memref<1x1x118x64xbf16, #tpu.memory_space<vmem>>, vector<1x1x112x64xbf16>
    %10 = vector.shape_cast %9 : vector<1x1x112x64xbf16> to vector<112x64xbf16>
    %c0_13 = arith.constant 0 : index
    %c128 = arith.constant 128 : index
    %11 = vector.load %arg9[%c0_13, %c128] : memref<112x448xbf16, #tpu.memory_space<vmem>>, vector<112x64xbf16>
    tpu.vector_store %arg9[%c0_13, %c128], %10 {strides = array<i32>} : memref<112x448xbf16, #tpu.memory_space<vmem>>, vector<112x64xbf16>,
    %c0_14 = arith.constant 0 : index
    %c0_15 = arith.constant 0 : index
    %c3 = arith.constant 3 : index
    %c0_16 = arith.constant 0 : index
    %12 = vector.load %arg3[%c0_14, %c0_15, %c3, %c0_16] : memref<1x1x118x64xbf16, #tpu.memory_space<vmem>>, vector<1x1x112x64xbf16>
    %13 = vector.shape_cast %12 : vector<1x1x112x64xbf16> to vector<112x64xbf16>
    %c0_17 = arith.constant 0 : index
    %c192 = arith.constant 192 : index
    %14 = vector.load %arg9[%c0_17, %c192] : memref<112x448xbf16, #tpu.memory_space<vmem>>, vector<112x64xbf16>
    tpu.vector_store %arg9[%c0_17, %c192], %13 {strides = array<i32>} : memref<112x448xbf16, #tpu.memory_space<vmem>>, vector<112x64xbf16>,
    %c0_18 = arith.constant 0 : index
    %c0_19 = arith.constant 0 : index
    %c4 = arith.constant 4 : index
    %c0_20 = arith.constant 0 : index
    %15 = vector.load %arg3[%c0_18, %c0_19, %c4, %c0_20] : memref<1x1x118x64xbf16, #tpu.memory_space<vmem>>, vector<1x1x112x64xbf16>
    %16 = vector.shape_cast %15 : vector<1x1x112x64xbf16> to vector<112x64xbf16>
    %c0_21 = arith.constant 0 : index
    %c256 = arith.constant 256 : index
    %17 = vector.load %arg9[%c0_21, %c256] : memref<112x448xbf16, #tpu.memory_space<vmem>>, vector<112x64xbf16>
    tpu.vector_store %arg9[%c0_21, %c256], %16 {strides = array<i32>} : memref<112x448xbf16, #tpu.memory_space<vmem>>, vector<112x64xbf16>,
    %c0_22 = arith.constant 0 : index
    %c0_23 = arith.constant 0 : index
    %c5 = arith.constant 5 : index
    %c0_24 = arith.constant 0 : index
    %18 = vector.load %arg3[%c0_22, %c0_23, %c5, %c0_24] : memref<1x1x118x64xbf16, #tpu.memory_space<vmem>>, vector<1x1x112x64xbf16>
    %19 = vector.shape_cast %18 : vector<1x1x112x64xbf16> to vector<112x64xbf16>
    %c0_25 = arith.constant 0 : index
    %c320 = arith.constant 320 : index
    %20 = vector.load %arg9[%c0_25, %c320] : memref<112x448xbf16, #tpu.memory_space<vmem>>, vector<112x64xbf16>
    tpu.vector_store %arg9[%c0_25, %c320], %19 {strides = array<i32>} : memref<112x448xbf16, #tpu.memory_space<vmem>>, vector<112x64xbf16>,
    %c0_26 = arith.constant 0 : index
    %c0_27 = arith.constant 0 : index
    %c6 = arith.constant 6 : index
    %c0_28 = arith.constant 0 : index
    %21 = vector.load %arg3[%c0_26, %c0_27, %c6, %c0_28] : memref<1x1x118x64xbf16, #tpu.memory_space<vmem>>, vector<1x1x112x64xbf16>
    %22 = vector.shape_cast %21 : vector<1x1x112x64xbf16> to vector<112x64xbf16>
    %c0_29 = arith.constant 0 : index
    %c384 = arith.constant 384 : index
    %23 = vector.load %arg9[%c0_29, %c384] : memref<112x448xbf16, #tpu.memory_space<vmem>>, vector<112x64xbf16>
    tpu.vector_store %arg9[%c0_29, %c384], %22 {strides = array<i32>} : memref<112x448xbf16, #tpu.memory_space<vmem>>, vector<112x64xbf16>,
    %c0_30 = arith.constant 0 : index
    %c0_31 = arith.constant 0 : index
    %24 = vector.load %arg8[%c0_30, %c0_31] : memref<112x64xf32, #tpu.memory_space<vmem>>, vector<112x64xf32>
    %c0_32 = arith.constant 0 : index
    %c0_33 = arith.constant 0 : index
    %25 = vector.load %arg9[%c0_32, %c0_33] : memref<112x448xbf16, #tpu.memory_space<vmem>>, vector<112x448xbf16>
    %c0_34 = arith.constant 0 : index
    %c0_35 = arith.constant 0 : index
    %c0_36 = arith.constant 0 : index
    %26 = vector.load %arg4[%c0_34, %c0_35, %c0_36] : memref<1x448x64xbf16, #tpu.memory_space<vmem>>, vector<1x448x64xbf16>
    %27 = vector.shape_cast %26 : vector<1x448x64xbf16> to vector<448x64xbf16>
    %cst = arith.constant dense<0.000000e+00> : vector<112x64xf32>
    %28 = tpu.matmul %25, %27, %cst {dimension_numbers = #tpu.dot_dimension_numbers<[1], [0], [0], [1], [0, 0, 1, 1], [], []>} : vector<112x448xbf16>, vector<448x64xbf16>, vector<112x64xf32> -> vector<112x64xf32>
    %29 = arith.addf %24, %28 : vector<112x64xf32>
    %c0_37 = arith.constant 0 : index
    %c0_38 = arith.constant 0 : index
    %30 = vector.load %arg8[%c0_37, %c0_38] : memref<112x64xf32, #tpu.memory_space<vmem>>, vector<112x64xf32>
    tpu.vector_store %arg8[%c0_37, %c0_38], %29 {strides = array<i32>} : memref<112x64xf32, #tpu.memory_space<vmem>>, vector<112x64xf32>,
    %c0_i32_39 = arith.constant 0 : i32
    %31 = arith.cmpi eq, %arg2, %c0_i32_39 : i32
    %32 = arith.extui %31 : i1 to i32
    %c0_i32_40 = arith.constant 0 : i32
    %33 = arith.cmpi ne, %32, %c0_i32_40 : i32
    scf.if %33 {
      %c0_41 = arith.constant 0 : index
      %c0_42 = arith.constant 0 : index
      %34 = vector.load %arg8[%c0_41, %c0_42] : memref<112x64xf32, #tpu.memory_space<vmem>>, vector<112x64xf32>
      %c0_43 = arith.constant 0 : index
      %c0_44 = arith.constant 0 : index
      %35 = vector.load %arg5[%c0_43, %c0_44] : memref<1x64xf32, #tpu.memory_space<vmem>>, vector<1x64xf32>
      %36 = vector.broadcast %35 : vector<1x64xf32> to vector<112x64xf32>
      %37 = arith.mulf %34, %36 : vector<112x64xf32>
      %c0_45 = arith.constant 0 : index
      %c0_46 = arith.constant 0 : index
      %38 = vector.load %arg6[%c0_45, %c0_46] : memref<1x64xf32, #tpu.memory_space<vmem>>, vector<1x64xf32>
      %39 = vector.broadcast %38 : vector<1x64xf32> to vector<112x64xf32>
      %40 = arith.addf %37, %39 : vector<112x64xf32>
      %cst_47 = arith.constant 0.000000e+00 : f32
      %41 = vector.broadcast %cst_47 : f32 to vector<112x64xf32>
      %42 = arith.maximumf %40, %41 : vector<112x64xf32>
      %43 = arith.truncf %42 : vector<112x64xf32> to vector<112x64xbf16>
      %c0_48 = arith.constant 0 : index
      %c0_49 = arith.constant 0 : index
      %c0_50 = arith.constant 0 : index
      %c0_51 = arith.constant 0 : index
      %44 = vector.load %arg7[%c0_48, %c0_49, %c0_50, %c0_51] : memref<1x1x112x64xbf16, #tpu.memory_space<vmem>>, vector<1x1x112x64xbf16>
      %45 = vector.shape_cast %44 : vector<1x1x112x64xbf16> to vector<112x64xbf16>
      %46 = vector.shape_cast %43 : vector<112x64xbf16> to vector<1x1x112x64xbf16>
      tpu.vector_store %arg7[%c0_48, %c0_49, %c0_50, %c0_51], %46 {strides = array<i32>} : memref<1x1x112x64xbf16, #tpu.memory_space<vmem>>, vector<1x1x112x64xbf16>,
    } else {
    }
    return
  }
  func.func @transform_0(%arg0: i32, %arg1: i32, %arg2: i32) -> (i32, i32, i32, i32) {
    %0 = arith.addi %arg1, %arg2 : i32
    %c0_i32 = arith.constant 0 : i32
    %c0_i32_0 = arith.constant 0 : i32
    %c0_i32_1 = arith.constant 0 : i32
    return %arg0, %0, %c0_i32, %c0_i32_0 : i32, i32, i32, i32
  }
  func.func @transform_1(%arg0: i32, %arg1: i32, %arg2: i32) -> (i32, i32, i32) {
    %c0_i32 = arith.constant 0 : i32
    %c0_i32_0 = arith.constant 0 : i32
    %c0_i32_1 = arith.constant 0 : i32
    return %arg2, %c0_i32, %c0_i32_0 : i32, i32, i32
  }
  func.func @transform_2(%arg0: i32, %arg1: i32, %arg2: i32) -> (i32, i32) {
    %c0_i32 = arith.constant 0 : i32
    %c0_i32_0 = arith.constant 0 : i32
    %c0_i32_1 = arith.constant 0 : i32
    return %c0_i32, %c0_i32_0 : i32, i32
  }
  func.func @transform_3(%arg0: i32, %arg1: i32, %arg2: i32) -> (i32, i32) {
    %c0_i32 = arith.constant 0 : i32
    %c0_i32_0 = arith.constant 0 : i32
    %c0_i32_1 = arith.constant 0 : i32
    return %c0_i32, %c0_i32_0 : i32, i32
  }
  func.func @transform_4(%arg0: i32, %arg1: i32, %arg2: i32) -> (i32, i32, i32, i32) {
    %c0_i32 = arith.constant 0 : i32
    %c0_i32_0 = arith.constant 0 : i32
    %c0_i32_1 = arith.constant 0 : i32
    return %arg0, %arg1, %c0_i32, %c0_i32_0 : i32, i32, i32, i32
  }
}

module attributes {stable_mosaic.version = 11 : i64} {
  func.func @_spatial_conv_kernel(%arg0: i32, %arg1: i32, %arg2: i32, %arg3: memref<1x1x112x64xbf16, #tpu.memory_space<vmem>>, %arg4: memref<1x448x64xbf16, #tpu.memory_space<vmem>>, %arg5: memref<1x64xf32, #tpu.memory_space<vmem>>, %arg6: memref<1x64xf32, #tpu.memory_space<vmem>>, %arg7: memref<1x1x64x64xbf16, #tpu.memory_space<vmem>>, %arg8: memref<64x64xf32, #tpu.memory_space<vmem>>, %arg9: memref<64x448xbf16, #tpu.memory_space<vmem>>) attributes {dimension_semantics = [#tpu.dimension_semantics<parallel>, #tpu.dimension_semantics<parallel>, #tpu.dimension_semantics<arbitrary>], iteration_bounds = array<i64: 2, 4, 1>, scalar_prefetch = 0 : i64, scratch_operands = 2 : i64, tpu.core_type = #tpu.core_type<tc>, window_params = [{transform_indices = @transform_0, window_bounds = array<i64: 1, 1, 112, 64>}, {transform_indices = @transform_1, window_bounds = array<i64: 1, 448, 64>}, {pipeline_mode = #tpu.pipeline_mode<synchronous>, transform_indices = @transform_2, window_bounds = array<i64: 1, 64>}, {pipeline_mode = #tpu.pipeline_mode<synchronous>, transform_indices = @transform_3, window_bounds = array<i64: 1, 64>}, {transform_indices = @transform_4, window_bounds = array<i64: 1, 1, 64, 64>}]} {
    %c0_i32 = arith.constant 0 : i32
    %0 = arith.cmpi eq, %arg2, %c0_i32 : i32
    %1 = arith.extui %0 : i1 to i32
    %c0_i32_0 = arith.constant 0 : i32
    %2 = arith.cmpi ne, %1, %c0_i32_0 : i32
    scf.if %2 {
      %cst_41 = arith.constant 0.000000e+00 : f32
      %34 = vector.broadcast %cst_41 : f32 to vector<64x64xf32>
      %c0_42 = arith.constant 0 : index
      %c0_43 = arith.constant 0 : index
      %35 = vector.load %arg8[%c0_42, %c0_43] : memref<64x64xf32, #tpu.memory_space<vmem>>, vector<64x64xf32>
      tpu.vector_store %arg8[%c0_42, %c0_43], %34 {strides = array<i32>} : memref<64x64xf32, #tpu.memory_space<vmem>>, vector<64x64xf32>,
    } else {
    }
    %c0 = arith.constant 0 : index
    %c0_1 = arith.constant 0 : index
    %c0_2 = arith.constant 0 : index
    %c0_3 = arith.constant 0 : index
    %3 = vector.load %arg3[%c0, %c0_1, %c0_2, %c0_3] : memref<1x1x112x64xbf16, #tpu.memory_space<vmem>>, vector<1x1x64x64xbf16>
    %4 = vector.shape_cast %3 : vector<1x1x64x64xbf16> to vector<64x64xbf16>
    %c0_4 = arith.constant 0 : index
    %c0_5 = arith.constant 0 : index
    %5 = vector.load %arg9[%c0_4, %c0_5] : memref<64x448xbf16, #tpu.memory_space<vmem>>, vector<64x64xbf16>
    tpu.vector_store %arg9[%c0_4, %c0_5], %4 {strides = array<i32>} : memref<64x448xbf16, #tpu.memory_space<vmem>>, vector<64x64xbf16>,
    %c0_6 = arith.constant 0 : index
    %c0_7 = arith.constant 0 : index
    %c8 = arith.constant 8 : index
    %c0_8 = arith.constant 0 : index
    %6 = vector.load %arg3[%c0_6, %c0_7, %c8, %c0_8] : memref<1x1x112x64xbf16, #tpu.memory_space<vmem>>, vector<1x1x64x64xbf16>
    %7 = vector.shape_cast %6 : vector<1x1x64x64xbf16> to vector<64x64xbf16>
    %c0_9 = arith.constant 0 : index
    %c64 = arith.constant 64 : index
    %8 = vector.load %arg9[%c0_9, %c64] : memref<64x448xbf16, #tpu.memory_space<vmem>>, vector<64x64xbf16>
    tpu.vector_store %arg9[%c0_9, %c64], %7 {strides = array<i32>} : memref<64x448xbf16, #tpu.memory_space<vmem>>, vector<64x64xbf16>,
    %c0_10 = arith.constant 0 : index
    %c0_11 = arith.constant 0 : index
    %c16 = arith.constant 16 : index
    %c0_12 = arith.constant 0 : index
    %9 = vector.load %arg3[%c0_10, %c0_11, %c16, %c0_12] : memref<1x1x112x64xbf16, #tpu.memory_space<vmem>>, vector<1x1x64x64xbf16>
    %10 = vector.shape_cast %9 : vector<1x1x64x64xbf16> to vector<64x64xbf16>
    %c0_13 = arith.constant 0 : index
    %c128 = arith.constant 128 : index
    %11 = vector.load %arg9[%c0_13, %c128] : memref<64x448xbf16, #tpu.memory_space<vmem>>, vector<64x64xbf16>
    tpu.vector_store %arg9[%c0_13, %c128], %10 {strides = array<i32>} : memref<64x448xbf16, #tpu.memory_space<vmem>>, vector<64x64xbf16>,
    %c0_14 = arith.constant 0 : index
    %c0_15 = arith.constant 0 : index
    %c24 = arith.constant 24 : index
    %c0_16 = arith.constant 0 : index
    %12 = vector.load %arg3[%c0_14, %c0_15, %c24, %c0_16] : memref<1x1x112x64xbf16, #tpu.memory_space<vmem>>, vector<1x1x64x64xbf16>
    %13 = vector.shape_cast %12 : vector<1x1x64x64xbf16> to vector<64x64xbf16>
    %c0_17 = arith.constant 0 : index
    %c192 = arith.constant 192 : index
    %14 = vector.load %arg9[%c0_17, %c192] : memref<64x448xbf16, #tpu.memory_space<vmem>>, vector<64x64xbf16>
    tpu.vector_store %arg9[%c0_17, %c192], %13 {strides = array<i32>} : memref<64x448xbf16, #tpu.memory_space<vmem>>, vector<64x64xbf16>,
    %c0_18 = arith.constant 0 : index
    %c0_19 = arith.constant 0 : index
    %c32 = arith.constant 32 : index
    %c0_20 = arith.constant 0 : index
    %15 = vector.load %arg3[%c0_18, %c0_19, %c32, %c0_20] : memref<1x1x112x64xbf16, #tpu.memory_space<vmem>>, vector<1x1x64x64xbf16>
    %16 = vector.shape_cast %15 : vector<1x1x64x64xbf16> to vector<64x64xbf16>
    %c0_21 = arith.constant 0 : index
    %c256 = arith.constant 256 : index
    %17 = vector.load %arg9[%c0_21, %c256] : memref<64x448xbf16, #tpu.memory_space<vmem>>, vector<64x64xbf16>
    tpu.vector_store %arg9[%c0_21, %c256], %16 {strides = array<i32>} : memref<64x448xbf16, #tpu.memory_space<vmem>>, vector<64x64xbf16>,
    %c0_22 = arith.constant 0 : index
    %c0_23 = arith.constant 0 : index
    %c40 = arith.constant 40 : index
    %c0_24 = arith.constant 0 : index
    %18 = vector.load %arg3[%c0_22, %c0_23, %c40, %c0_24] : memref<1x1x112x64xbf16, #tpu.memory_space<vmem>>, vector<1x1x64x64xbf16>
    %19 = vector.shape_cast %18 : vector<1x1x64x64xbf16> to vector<64x64xbf16>
    %c0_25 = arith.constant 0 : index
    %c320 = arith.constant 320 : index
    %20 = vector.load %arg9[%c0_25, %c320] : memref<64x448xbf16, #tpu.memory_space<vmem>>, vector<64x64xbf16>
    tpu.vector_store %arg9[%c0_25, %c320], %19 {strides = array<i32>} : memref<64x448xbf16, #tpu.memory_space<vmem>>, vector<64x64xbf16>,
    %c0_26 = arith.constant 0 : index
    %c0_27 = arith.constant 0 : index
    %c48 = arith.constant 48 : index
    %c0_28 = arith.constant 0 : index
    %21 = vector.load %arg3[%c0_26, %c0_27, %c48, %c0_28] : memref<1x1x112x64xbf16, #tpu.memory_space<vmem>>, vector<1x1x64x64xbf16>
    %22 = vector.shape_cast %21 : vector<1x1x64x64xbf16> to vector<64x64xbf16>
    %c0_29 = arith.constant 0 : index
    %c384 = arith.constant 384 : index
    %23 = vector.load %arg9[%c0_29, %c384] : memref<64x448xbf16, #tpu.memory_space<vmem>>, vector<64x64xbf16>
    tpu.vector_store %arg9[%c0_29, %c384], %22 {strides = array<i32>} : memref<64x448xbf16, #tpu.memory_space<vmem>>, vector<64x64xbf16>,
    %c0_30 = arith.constant 0 : index
    %c0_31 = arith.constant 0 : index
    %24 = vector.load %arg8[%c0_30, %c0_31] : memref<64x64xf32, #tpu.memory_space<vmem>>, vector<64x64xf32>
    %c0_32 = arith.constant 0 : index
    %c0_33 = arith.constant 0 : index
    %25 = vector.load %arg9[%c0_32, %c0_33] : memref<64x448xbf16, #tpu.memory_space<vmem>>, vector<64x448xbf16>
    %c0_34 = arith.constant 0 : index
    %c0_35 = arith.constant 0 : index
    %c0_36 = arith.constant 0 : index
    %26 = vector.load %arg4[%c0_34, %c0_35, %c0_36] : memref<1x448x64xbf16, #tpu.memory_space<vmem>>, vector<1x448x64xbf16>
    %27 = vector.shape_cast %26 : vector<1x448x64xbf16> to vector<448x64xbf16>
    %cst = arith.constant dense<0.000000e+00> : vector<64x64xf32>
    %28 = tpu.matmul %25, %27, %cst {dimension_numbers = #tpu.dot_dimension_numbers<[1], [0], [0], [1], [0, 0, 1, 1], [], []>} : vector<64x448xbf16>, vector<448x64xbf16>, vector<64x64xf32> -> vector<64x64xf32>
    %29 = arith.addf %24, %28 : vector<64x64xf32>
    %c0_37 = arith.constant 0 : index
    %c0_38 = arith.constant 0 : index
    %30 = vector.load %arg8[%c0_37, %c0_38] : memref<64x64xf32, #tpu.memory_space<vmem>>, vector<64x64xf32>
    tpu.vector_store %arg8[%c0_37, %c0_38], %29 {strides = array<i32>} : memref<64x64xf32, #tpu.memory_space<vmem>>, vector<64x64xf32>,
    %c0_i32_39 = arith.constant 0 : i32
    %31 = arith.cmpi eq, %arg2, %c0_i32_39 : i32
    %32 = arith.extui %31 : i1 to i32
    %c0_i32_40 = arith.constant 0 : i32
    %33 = arith.cmpi ne, %32, %c0_i32_40 : i32
    scf.if %33 {
      %c0_41 = arith.constant 0 : index
      %c0_42 = arith.constant 0 : index
      %34 = vector.load %arg8[%c0_41, %c0_42] : memref<64x64xf32, #tpu.memory_space<vmem>>, vector<64x64xf32>
      %c0_43 = arith.constant 0 : index
      %c0_44 = arith.constant 0 : index
      %35 = vector.load %arg5[%c0_43, %c0_44] : memref<1x64xf32, #tpu.memory_space<vmem>>, vector<1x64xf32>
      %36 = vector.broadcast %35 : vector<1x64xf32> to vector<64x64xf32>
      %37 = arith.mulf %34, %36 : vector<64x64xf32>
      %c0_45 = arith.constant 0 : index
      %c0_46 = arith.constant 0 : index
      %38 = vector.load %arg6[%c0_45, %c0_46] : memref<1x64xf32, #tpu.memory_space<vmem>>, vector<1x64xf32>
      %39 = vector.broadcast %38 : vector<1x64xf32> to vector<64x64xf32>
      %40 = arith.addf %37, %39 : vector<64x64xf32>
      %cst_47 = arith.constant 0.000000e+00 : f32
      %41 = vector.broadcast %cst_47 : f32 to vector<64x64xf32>
      %42 = arith.maximumf %40, %41 : vector<64x64xf32>
      %43 = arith.truncf %42 : vector<64x64xf32> to vector<64x64xbf16>
      %c0_48 = arith.constant 0 : index
      %c0_49 = arith.constant 0 : index
      %c0_50 = arith.constant 0 : index
      %c0_51 = arith.constant 0 : index
      %44 = vector.load %arg7[%c0_48, %c0_49, %c0_50, %c0_51] : memref<1x1x64x64xbf16, #tpu.memory_space<vmem>>, vector<1x1x64x64xbf16>
      %45 = vector.shape_cast %44 : vector<1x1x64x64xbf16> to vector<64x64xbf16>
      %46 = vector.shape_cast %43 : vector<64x64xbf16> to vector<1x1x64x64xbf16>
      tpu.vector_store %arg7[%c0_48, %c0_49, %c0_50, %c0_51], %46 {strides = array<i32>} : memref<1x1x64x64xbf16, #tpu.memory_space<vmem>>, vector<1x1x64x64xbf16>,
    } else {
    }
    return
  }
  func.func @transform_0(%arg0: i32, %arg1: i32, %arg2: i32) -> (i32, i32, i32, i32) {
    %0 = arith.addi %arg1, %arg2 : i32
    %c0_i32 = arith.constant 0 : i32
    %c0_i32_0 = arith.constant 0 : i32
    %c0_i32_1 = arith.constant 0 : i32
    return %arg0, %0, %c0_i32, %c0_i32_0 : i32, i32, i32, i32
  }
  func.func @transform_1(%arg0: i32, %arg1: i32, %arg2: i32) -> (i32, i32, i32) {
    %c0_i32 = arith.constant 0 : i32
    %c0_i32_0 = arith.constant 0 : i32
    %c0_i32_1 = arith.constant 0 : i32
    return %arg2, %c0_i32, %c0_i32_0 : i32, i32, i32
  }
  func.func @transform_2(%arg0: i32, %arg1: i32, %arg2: i32) -> (i32, i32) {
    %c0_i32 = arith.constant 0 : i32
    %c0_i32_0 = arith.constant 0 : i32
    %c0_i32_1 = arith.constant 0 : i32
    return %c0_i32, %c0_i32_0 : i32, i32
  }
  func.func @transform_3(%arg0: i32, %arg1: i32, %arg2: i32) -> (i32, i32) {
    %c0_i32 = arith.constant 0 : i32
    %c0_i32_0 = arith.constant 0 : i32
    %c0_i32_1 = arith.constant 0 : i32
    return %c0_i32, %c0_i32_0 : i32, i32
  }
  func.func @transform_4(%arg0: i32, %arg1: i32, %arg2: i32) -> (i32, i32, i32, i32) {
    %c0_i32 = arith.constant 0 : i32
    %c0_i32_0 = arith.constant 0 : i32
    %c0_i32_1 = arith.constant 0 : i32
    return %arg0, %arg1, %c0_i32, %c0_i32_0 : i32, i32, i32, i32
  }
}

module attributes {stable_mosaic.version = 11 : i64} {
  func.func @_spatial_conv_kernel(%arg0: i32, %arg1: i32, %arg2: i32, %arg3: memref<1x1x66x64xbf16, #tpu.memory_space<vmem>>, %arg4: memref<1x576x96xbf16, #tpu.memory_space<vmem>>, %arg5: memref<1x96xf32, #tpu.memory_space<vmem>>, %arg6: memref<1x96xf32, #tpu.memory_space<vmem>>, %arg7: memref<1x1x48x96xf32, #tpu.memory_space<vmem>>, %arg8: memref<48x96xf32, #tpu.memory_space<vmem>>, %arg9: memref<48x576xbf16, #tpu.memory_space<vmem>>) attributes {dimension_semantics = [#tpu.dimension_semantics<parallel>, #tpu.dimension_semantics<parallel>, #tpu.dimension_semantics<arbitrary>], iteration_bounds = array<i64: 2, 2, 3>, scalar_prefetch = 0 : i64, scratch_operands = 2 : i64, tpu.core_type = #tpu.core_type<tc>, window_params = [{transform_indices = @transform_0, window_bounds = array<i64: 1, 1, 66, 64>}, {transform_indices = @transform_1, window_bounds = array<i64: 1, 576, 96>}, {pipeline_mode = #tpu.pipeline_mode<synchronous>, transform_indices = @transform_2, window_bounds = array<i64: 1, 96>}, {pipeline_mode = #tpu.pipeline_mode<synchronous>, transform_indices = @transform_3, window_bounds = array<i64: 1, 96>}, {transform_indices = @transform_4, window_bounds = array<i64: 1, 1, 48, 96>}]} {
    %c0_i32 = arith.constant 0 : i32
    %0 = arith.cmpi eq, %arg2, %c0_i32 : i32
    %1 = arith.extui %0 : i1 to i32
    %c0_i32_0 = arith.constant 0 : i32
    %2 = arith.cmpi ne, %1, %c0_i32_0 : i32
    scf.if %2 {
      %cst_48 = arith.constant 0.000000e+00 : f32
      %40 = vector.broadcast %cst_48 : f32 to vector<48x96xf32>
      %c0_49 = arith.constant 0 : index
      %c0_50 = arith.constant 0 : index
      %41 = vector.load %arg8[%c0_49, %c0_50] : memref<48x96xf32, #tpu.memory_space<vmem>>, vector<48x96xf32>
      tpu.vector_store %arg8[%c0_49, %c0_50], %40 {strides = array<i32>} : memref<48x96xf32, #tpu.memory_space<vmem>>, vector<48x96xf32>,
    } else {
    }
    %c0 = arith.constant 0 : index
    %c0_1 = arith.constant 0 : index
    %c0_2 = arith.constant 0 : index
    %c0_3 = arith.constant 0 : index
    %3 = vector.load %arg3[%c0, %c0_1, %c0_2, %c0_3] : memref<1x1x66x64xbf16, #tpu.memory_space<vmem>>, vector<1x1x48x64xbf16>
    %4 = vector.shape_cast %3 : vector<1x1x48x64xbf16> to vector<48x64xbf16>
    %c0_4 = arith.constant 0 : index
    %c0_5 = arith.constant 0 : index
    %5 = vector.load %arg9[%c0_4, %c0_5] : memref<48x576xbf16, #tpu.memory_space<vmem>>, vector<48x64xbf16>
    tpu.vector_store %arg9[%c0_4, %c0_5], %4 {strides = array<i32>} : memref<48x576xbf16, #tpu.memory_space<vmem>>, vector<48x64xbf16>,
    %c0_6 = arith.constant 0 : index
    %c0_7 = arith.constant 0 : index
    %c1 = arith.constant 1 : index
    %c0_8 = arith.constant 0 : index
    %6 = vector.load %arg3[%c0_6, %c0_7, %c1, %c0_8] : memref<1x1x66x64xbf16, #tpu.memory_space<vmem>>, vector<1x1x48x64xbf16>
    %7 = vector.shape_cast %6 : vector<1x1x48x64xbf16> to vector<48x64xbf16>
    %c0_9 = arith.constant 0 : index
    %c64 = arith.constant 64 : index
    %8 = vector.load %arg9[%c0_9, %c64] : memref<48x576xbf16, #tpu.memory_space<vmem>>, vector<48x64xbf16>
    tpu.vector_store %arg9[%c0_9, %c64], %7 {strides = array<i32>} : memref<48x576xbf16, #tpu.memory_space<vmem>>, vector<48x64xbf16>,
    %c0_10 = arith.constant 0 : index
    %c0_11 = arith.constant 0 : index
    %c2 = arith.constant 2 : index
    %c0_12 = arith.constant 0 : index
    %9 = vector.load %arg3[%c0_10, %c0_11, %c2, %c0_12] : memref<1x1x66x64xbf16, #tpu.memory_space<vmem>>, vector<1x1x48x64xbf16>
    %10 = vector.shape_cast %9 : vector<1x1x48x64xbf16> to vector<48x64xbf16>
    %c0_13 = arith.constant 0 : index
    %c128 = arith.constant 128 : index
    %11 = vector.load %arg9[%c0_13, %c128] : memref<48x576xbf16, #tpu.memory_space<vmem>>, vector<48x64xbf16>
    tpu.vector_store %arg9[%c0_13, %c128], %10 {strides = array<i32>} : memref<48x576xbf16, #tpu.memory_space<vmem>>, vector<48x64xbf16>,
    %c0_14 = arith.constant 0 : index
    %c0_15 = arith.constant 0 : index
    %c8 = arith.constant 8 : index
    %c0_16 = arith.constant 0 : index
    %12 = vector.load %arg3[%c0_14, %c0_15, %c8, %c0_16] : memref<1x1x66x64xbf16, #tpu.memory_space<vmem>>, vector<1x1x48x64xbf16>
    %13 = vector.shape_cast %12 : vector<1x1x48x64xbf16> to vector<48x64xbf16>
    %c0_17 = arith.constant 0 : index
    %c192 = arith.constant 192 : index
    %14 = vector.load %arg9[%c0_17, %c192] : memref<48x576xbf16, #tpu.memory_space<vmem>>, vector<48x64xbf16>
    tpu.vector_store %arg9[%c0_17, %c192], %13 {strides = array<i32>} : memref<48x576xbf16, #tpu.memory_space<vmem>>, vector<48x64xbf16>,
    %c0_18 = arith.constant 0 : index
    %c0_19 = arith.constant 0 : index
    %c9 = arith.constant 9 : index
    %c0_20 = arith.constant 0 : index
    %15 = vector.load %arg3[%c0_18, %c0_19, %c9, %c0_20] : memref<1x1x66x64xbf16, #tpu.memory_space<vmem>>, vector<1x1x48x64xbf16>
    %16 = vector.shape_cast %15 : vector<1x1x48x64xbf16> to vector<48x64xbf16>
    %c0_21 = arith.constant 0 : index
    %c256 = arith.constant 256 : index
    %17 = vector.load %arg9[%c0_21, %c256] : memref<48x576xbf16, #tpu.memory_space<vmem>>, vector<48x64xbf16>
    tpu.vector_store %arg9[%c0_21, %c256], %16 {strides = array<i32>} : memref<48x576xbf16, #tpu.memory_space<vmem>>, vector<48x64xbf16>,
    %c0_22 = arith.constant 0 : index
    %c0_23 = arith.constant 0 : index
    %c10 = arith.constant 10 : index
    %c0_24 = arith.constant 0 : index
    %18 = vector.load %arg3[%c0_22, %c0_23, %c10, %c0_24] : memref<1x1x66x64xbf16, #tpu.memory_space<vmem>>, vector<1x1x48x64xbf16>
    %19 = vector.shape_cast %18 : vector<1x1x48x64xbf16> to vector<48x64xbf16>
    %c0_25 = arith.constant 0 : index
    %c320 = arith.constant 320 : index
    %20 = vector.load %arg9[%c0_25, %c320] : memref<48x576xbf16, #tpu.memory_space<vmem>>, vector<48x64xbf16>
    tpu.vector_store %arg9[%c0_25, %c320], %19 {strides = array<i32>} : memref<48x576xbf16, #tpu.memory_space<vmem>>, vector<48x64xbf16>,
    %c0_26 = arith.constant 0 : index
    %c0_27 = arith.constant 0 : index
    %c16 = arith.constant 16 : index
    %c0_28 = arith.constant 0 : index
    %21 = vector.load %arg3[%c0_26, %c0_27, %c16, %c0_28] : memref<1x1x66x64xbf16, #tpu.memory_space<vmem>>, vector<1x1x48x64xbf16>
    %22 = vector.shape_cast %21 : vector<1x1x48x64xbf16> to vector<48x64xbf16>
    %c0_29 = arith.constant 0 : index
    %c384 = arith.constant 384 : index
    %23 = vector.load %arg9[%c0_29, %c384] : memref<48x576xbf16, #tpu.memory_space<vmem>>, vector<48x64xbf16>
    tpu.vector_store %arg9[%c0_29, %c384], %22 {strides = array<i32>} : memref<48x576xbf16, #tpu.memory_space<vmem>>, vector<48x64xbf16>,
    %c0_30 = arith.constant 0 : index
    %c0_31 = arith.constant 0 : index
    %c17 = arith.constant 17 : index
    %c0_32 = arith.constant 0 : index
    %24 = vector.load %arg3[%c0_30, %c0_31, %c17, %c0_32] : memref<1x1x66x64xbf16, #tpu.memory_space<vmem>>, vector<1x1x48x64xbf16>
    %25 = vector.shape_cast %24 : vector<1x1x48x64xbf16> to vector<48x64xbf16>
    %c0_33 = arith.constant 0 : index
    %c448 = arith.constant 448 : index
    %26 = vector.load %arg9[%c0_33, %c448] : memref<48x576xbf16, #tpu.memory_space<vmem>>, vector<48x64xbf16>
    tpu.vector_store %arg9[%c0_33, %c448], %25 {strides = array<i32>} : memref<48x576xbf16, #tpu.memory_space<vmem>>, vector<48x64xbf16>,
    %c0_34 = arith.constant 0 : index
    %c0_35 = arith.constant 0 : index
    %c18 = arith.constant 18 : index
    %c0_36 = arith.constant 0 : index
    %27 = vector.load %arg3[%c0_34, %c0_35, %c18, %c0_36] : memref<1x1x66x64xbf16, #tpu.memory_space<vmem>>, vector<1x1x48x64xbf16>
    %28 = vector.shape_cast %27 : vector<1x1x48x64xbf16> to vector<48x64xbf16>
    %c0_37 = arith.constant 0 : index
    %c512 = arith.constant 512 : index
    %29 = vector.load %arg9[%c0_37, %c512] : memref<48x576xbf16, #tpu.memory_space<vmem>>, vector<48x64xbf16>
    tpu.vector_store %arg9[%c0_37, %c512], %28 {strides = array<i32>} : memref<48x576xbf16, #tpu.memory_space<vmem>>, vector<48x64xbf16>,
    %c0_38 = arith.constant 0 : index
    %c0_39 = arith.constant 0 : index
    %30 = vector.load %arg8[%c0_38, %c0_39] : memref<48x96xf32, #tpu.memory_space<vmem>>, vector<48x96xf32>
    %c0_40 = arith.constant 0 : index
    %c0_41 = arith.constant 0 : index
    %31 = vector.load %arg9[%c0_40, %c0_41] : memref<48x576xbf16, #tpu.memory_space<vmem>>, vector<48x576xbf16>
    %c0_42 = arith.constant 0 : index
    %c0_43 = arith.constant 0 : index
    %c0_44 = arith.constant 0 : index
    %32 = vector.load %arg4[%c0_42, %c0_43, %c0_44] : memref<1x576x96xbf16, #tpu.memory_space<vmem>>, vector<1x576x96xbf16>
    %33 = vector.shape_cast %32 : vector<1x576x96xbf16> to vector<576x96xbf16>
    %cst = arith.constant dense<0.000000e+00> : vector<48x96xf32>
    %34 = tpu.matmul %31, %33, %cst {dimension_numbers = #tpu.dot_dimension_numbers<[1], [0], [0], [1], [0, 0, 1, 1], [], []>} : vector<48x576xbf16>, vector<576x96xbf16>, vector<48x96xf32> -> vector<48x96xf32>
    %35 = arith.addf %30, %34 : vector<48x96xf32>
    %c0_45 = arith.constant 0 : index
    %c0_46 = arith.constant 0 : index
    %36 = vector.load %arg8[%c0_45, %c0_46] : memref<48x96xf32, #tpu.memory_space<vmem>>, vector<48x96xf32>
    tpu.vector_store %arg8[%c0_45, %c0_46], %35 {strides = array<i32>} : memref<48x96xf32, #tpu.memory_space<vmem>>, vector<48x96xf32>,
    %c2_i32 = arith.constant 2 : i32
    %37 = arith.cmpi eq, %arg2, %c2_i32 : i32
    %38 = arith.extui %37 : i1 to i32
    %c0_i32_47 = arith.constant 0 : i32
    %39 = arith.cmpi ne, %38, %c0_i32_47 : i32
    scf.if %39 {
      %c0_48 = arith.constant 0 : index
      %c0_49 = arith.constant 0 : index
      %40 = vector.load %arg8[%c0_48, %c0_49] : memref<48x96xf32, #tpu.memory_space<vmem>>, vector<48x96xf32>
      %c0_50 = arith.constant 0 : index
      %c0_51 = arith.constant 0 : index
      %41 = vector.load %arg5[%c0_50, %c0_51] : memref<1x96xf32, #tpu.memory_space<vmem>>, vector<1x96xf32>
      %42 = vector.broadcast %41 : vector<1x96xf32> to vector<48x96xf32>
      %43 = arith.mulf %40, %42 : vector<48x96xf32>
      %c0_52 = arith.constant 0 : index
      %c0_53 = arith.constant 0 : index
      %44 = vector.load %arg6[%c0_52, %c0_53] : memref<1x96xf32, #tpu.memory_space<vmem>>, vector<1x96xf32>
      %45 = vector.broadcast %44 : vector<1x96xf32> to vector<48x96xf32>
      %46 = arith.addf %43, %45 : vector<48x96xf32>
      %cst_54 = arith.constant 0.000000e+00 : f32
      %47 = vector.broadcast %cst_54 : f32 to vector<48x96xf32>
      %48 = arith.maximumf %46, %47 : vector<48x96xf32>
      %c0_55 = arith.constant 0 : index
      %c0_56 = arith.constant 0 : index
      %c0_57 = arith.constant 0 : index
      %c0_58 = arith.constant 0 : index
      %49 = vector.load %arg7[%c0_55, %c0_56, %c0_57, %c0_58] : memref<1x1x48x96xf32, #tpu.memory_space<vmem>>, vector<1x1x48x96xf32>
      %50 = vector.shape_cast %49 : vector<1x1x48x96xf32> to vector<48x96xf32>
      %51 = vector.shape_cast %48 : vector<48x96xf32> to vector<1x1x48x96xf32>
      tpu.vector_store %arg7[%c0_55, %c0_56, %c0_57, %c0_58], %51 {strides = array<i32>} : memref<1x1x48x96xf32, #tpu.memory_space<vmem>>, vector<1x1x48x96xf32>,
    } else {
    }
    return
  }
  func.func @transform_0(%arg0: i32, %arg1: i32, %arg2: i32) -> (i32, i32, i32, i32) {
    %0 = arith.addi %arg1, %arg2 : i32
    %c0_i32 = arith.constant 0 : i32
    %c0_i32_0 = arith.constant 0 : i32
    %c0_i32_1 = arith.constant 0 : i32
    return %arg0, %0, %c0_i32, %c0_i32_0 : i32, i32, i32, i32
  }
  func.func @transform_1(%arg0: i32, %arg1: i32, %arg2: i32) -> (i32, i32, i32) {
    %c0_i32 = arith.constant 0 : i32
    %c0_i32_0 = arith.constant 0 : i32
    %c0_i32_1 = arith.constant 0 : i32
    return %arg2, %c0_i32, %c0_i32_0 : i32, i32, i32
  }
  func.func @transform_2(%arg0: i32, %arg1: i32, %arg2: i32) -> (i32, i32) {
    %c0_i32 = arith.constant 0 : i32
    %c0_i32_0 = arith.constant 0 : i32
    %c0_i32_1 = arith.constant 0 : i32
    return %c0_i32, %c0_i32_0 : i32, i32
  }
  func.func @transform_3(%arg0: i32, %arg1: i32, %arg2: i32) -> (i32, i32) {
    %c0_i32 = arith.constant 0 : i32
    %c0_i32_0 = arith.constant 0 : i32
    %c0_i32_1 = arith.constant 0 : i32
    return %c0_i32, %c0_i32_0 : i32, i32
  }
  func.func @transform_4(%arg0: i32, %arg1: i32, %arg2: i32) -> (i32, i32, i32, i32) {
    %c0_i32 = arith.constant 0 : i32
    %c0_i32_0 = arith.constant 0 : i32
    %c0_i32_1 = arith.constant 0 : i32
    return %arg0, %arg1, %c0_i32, %c0_i32_0 : i32, i32, i32, i32
  }
}

</mosaic_0001>

<llo_original>
// kernel: mixed4a_forward.5
$region0: #{mixed4a_forward.5}
  #allocation0 [shape = 'u32[]', space=smem, size = 0x4, offset = 0x4, fixed_abs, tag = 'smem constant byte address 0x4 - core index']
  #allocation1 [shape = 'u32[144,128]{1,0:T(1,128)}', space=vmem, size = 0x12000, scoped, tag = 'internal scratch']
  %s0 = inlined_call_operand.vmem [shape: bf16[512,160], index: 0, kind: input, shape index: {}]
  %s1 = inlined_call_operand.vmem [shape: bf16[160,128], index: 1, kind: input, shape index: {}]
  %s2 = inlined_call_operand.vmem [shape: f32[1,128], index: 2, kind: input, shape index: {}]
  %s3 = inlined_call_operand.vmem [shape: f32[1,128], index: 3, kind: input, shape index: {}]
  %s4 = inlined_call_operand.vmem [shape: bf16[512,128], index: 4, kind: output, shape index: {}]
  %s5 = sld [smem:[#allocation0]]
  $region26: #{mixed4a_forward.5} parent=0
    _
  %s7 = ssub.s32 1, %s5
  %s8 = scalar_select 0, %s7, %s5
  // Predicated region
  $region2: #{mixed4a_forward.5} parent=0 // pred_check
    _
  $region3: #{mixed4a_forward.5} parent=0 // pred_check_branch
    %10 = sbr.rel (0) target = $region5
  $region4: #{mixed4a_forward.5} parent=0 // pred_region
    _
  $region5: #{mixed4a_forward.5} parent=0 // pred_fallthru
    _
  // Predicated region
  $region6: #{mixed4a_forward.5} parent=0 // pred_check
    _
  $region7: #{mixed4a_forward.5} parent=0 // pred_check_branch
    %12 = sbr.rel (0) target = $region9
  $region8: #{mixed4a_forward.5} parent=0 // pred_region
    _
  $region9: #{mixed4a_forward.5} parent=0 // pred_fallthru
    _
  // Predicated region
  $region10: #{mixed4a_forward.5} parent=0 // pred_check
    _
  $region11: #{mixed4a_forward.5} parent=0 // pred_check_branch
    %14 = sbr.rel (0) target = $region13
  $region12: #{mixed4a_forward.5} parent=0 // pred_region
    _
  $region13: #{mixed4a_forward.5} parent=0 // pred_fallthru
    _
  // Predicated region
  $region14: #{mixed4a_forward.5} parent=0 // pred_check
    _
  $region15: #{mixed4a_forward.5} parent=0 // pred_check_branch
    %16 = sbr.rel (0) target = $region17
  $region16: #{mixed4a_forward.5} parent=0 // pred_region
    _
  $region17: #{mixed4a_forward.5} parent=0 // pred_fallthru
    _
  %v18 = vld [vmem:[%s0] sm:$0xff]
  %v19 = vld [vmem:[%s0 + $0x8] sm:$0xff]
  %v20 = vld [vmem:[%s0 + $0x10] sm:$0xff]
  %v21 = vld [vmem:[%s0 + $0x18] sm:$0xff]
  %v22 = vld [vmem:[%s0 + $0x20] sm:$0xff]
  %v23 = vld [vmem:[%s0 + $0x28] sm:$0xff]
  %v24 = vld [vmem:[%s0 + $0x30] sm:$0xff]
  %v25 = vld [vmem:[%s0 + $0x38] sm:$0xff]
  %v26 = vld [vmem:[%s0 + $0x40] sm:$0xff]
  %v27 = vld [vmem:[%s0 + $0x48] sm:$0xff]
  %v28 = vld [vmem:[%s0 + $0x50] sm:$0xff]
  %v29 = vld [vmem:[%s0 + $0x58] sm:$0xff]
  %v30 = vld [vmem:[%s0 + $0x60] sm:$0xff]
  %v31 = vld [vmem:[%s0 + $0x68] sm:$0xff]
  %v32 = vld [vmem:[%s0 + $0x70] sm:$0xff]
  %v33 = vld [vmem:[%s0 + $0x78] sm:$0xff]
  %v34 = vld [vmem:[%s0 + $0x80] sm:$0xff]
  %v35 = vld [vmem:[%s0 + $0x88] sm:$0xff]
  %v36 = vld [vmem:[%s0 + $0x90] sm:$0xff]
  %v37 = vld [vmem:[%s0 + $0x98] sm:$0xff]
  %v38 = vld [vmem:[%s0 + $0xa0] sm:$0xff]
  %v39 = vld [vmem:[%s0 + $0xa8] sm:$0xff]
  %v40 = vld [vmem:[%s0 + $0xb0] sm:$0xff]
  %v41 = vld [vmem:[%s0 + $0xb8] sm:$0xff]
  %v42 = vld [vmem:[%s0 + $0xc0] sm:$0xff]
  %v43 = vld [vmem:[%s0 + $0xc8] sm:$0xff]
  %v44 = vld [vmem:[%s0 + $0xd0] sm:$0xff]
  %v45 = vld [vmem:[%s0 + $0xd8] sm:$0xff]
  %v46 = vld [vmem:[%s0 + $0xe0] sm:$0xff]
  %v47 = vld [vmem:[%s0 + $0xe8] sm:$0xff]
  %v48 = vld [vmem:[%s0 + $0xf0] sm:$0xff]
  %v49 = vld [vmem:[%s0 + $0xf8] sm:$0xff]
  %v50 = vld [vmem:[%s0 + $0x100] sm:$0xff]
  %v51 = vld [vmem:[%s0 + $0x108] sm:$0xff]
  %v52 = vld [vmem:[%s0 + $0x110] sm:$0xff]
  %v53 = vld [vmem:[%s0 + $0x118] sm:$0xff]
  %v54 = vld [vmem:[%s0 + $0x120] sm:$0xff]
  %v55 = vld [vmem:[%s0 + $0x128] sm:$0xff]
  %v56 = vld [vmem:[%s0 + $0x130] sm:$0xff]
  %v57 = vld [vmem:[%s0 + $0x138] sm:$0xff]
  %v58 = vld [vmem:[%s0 + $0x140] sm:$0xff]
  %v59 = vld [vmem:[%s0 + $0x148] sm:$0xff]
  %v60 = vld [vmem:[%s0 + $0x150] sm:$0xff]
  %v61 = vld [vmem:[%s0 + $0x158] sm:$0xff]
  %v62 = vld [vmem:[%s0 + $0x160] sm:$0xff]
  %v63 = vld [vmem:[%s0 + $0x168] sm:$0xff]
  %v64 = vld [vmem:[%s0 + $0x170] sm:$0xff]
  %v65 = vld [vmem:[%s0 + $0x178] sm:$0xff]
  %v66 = vld [vmem:[%s0 + $0x180] sm:$0xff]
  %v67 = vld [vmem:[%s0 + $0x188] sm:$0xff]
  %v68 = vld [vmem:[%s0 + $0x190] sm:$0xff]
  %v69 = vld [vmem:[%s0 + $0x198] sm:$0xff]
  %v70 = vld [vmem:[%s0 + $0x1a0] sm:$0xff]
  %v71 = vld [vmem:[%s0 + $0x1a8] sm:$0xff]
  %v72 = vld [vmem:[%s0 + $0x1b0] sm:$0xff]
  %v73 = vld [vmem:[%s0 + $0x1b8] sm:$0xff]
  %v74 = vld [vmem:[%s0 + $0x1c0] sm:$0xff]
  %v75 = vld [vmem:[%s0 + $0x1c8] sm:$0xff]
  %v76 = vld [vmem:[%s0 + $0x1d0] sm:$0xff]
  %v77 = vld [vmem:[%s0 + $0x1d8] sm:$0xff]
  %v78 = vld [vmem:[%s0 + $0x1e0] sm:$0xff]
  %v79 = vld [vmem:[%s0 + $0x1e8] sm:$0xff]
  %v80 = vld [vmem:[%s0 + $0x1f0] sm:$0xff]
  %v81 = vld [vmem:[%s0 + $0x1f8] sm:$0xff]
  %v82 = vld [vmem:[%s1] sm:$0xf]
  %v83 = vld [vmem:[%s1 + $0x4] sm:$0xf]
  %v84 = vld [vmem:[%s1 + $0x8] sm:$0xf]
  %v85 = vld [vmem:[%s1 + $0xc] sm:$0xf]
  %v86 = vld [vmem:[%s1 + $0x10] sm:$0xf]
  %v87 = vld [vmem:[%s1 + $0x14] sm:$0xf]
  %v88 = vld [vmem:[%s1 + $0x18] sm:$0xf]
  %v89 = vld [vmem:[%s1 + $0x1c] sm:$0xf]
  %v90 = vld [vmem:[%s1 + $0x20] sm:$0xf]
  %v91 = vld [vmem:[%s1 + $0x24] sm:$0xf]
  %v92 = vld [vmem:[%s1 + $0x28] sm:$0xf]
  %v93 = vld [vmem:[%s1 + $0x2c] sm:$0xf]
  %v94 = vld [vmem:[%s1 + $0x30] sm:$0xf]
  %v95 = vld [vmem:[%s1 + $0x34] sm:$0xf]
  %v96 = vld [vmem:[%s1 + $0x38] sm:$0xf]
  %v97 = vld [vmem:[%s1 + $0x3c] sm:$0xf]
  %v98 = vld [vmem:[%s1 + $0x40] sm:$0xf]
  %v99 = vld [vmem:[%s1 + $0x44] sm:$0xf]
  %v100 = vld [vmem:[%s1 + $0x48] sm:$0xf]
  %v101 = vld [vmem:[%s1 + $0x4c] sm:$0xf]
  %v166 = vunpack.c.l.b16 %v18
  %v167 = vunpack.c.h.b16 %v18
  %v168 = vunpack.c.l.b16 %v19
  %v169 = vunpack.c.h.b16 %v19
  %v170 = vunpack.c.l.b16 %v20
  %v171 = vunpack.c.h.b16 %v20
  %v172 = vunpack.c.l.b16 %v21
  %v173 = vunpack.c.h.b16 %v21
  %v174 = vunpack.c.l.b16 %v22
  %v175 = vunpack.c.h.b16 %v22
  %v176 = vunpack.c.l.b16 %v23
  %v177 = vunpack.c.h.b16 %v23
  %v178 = vunpack.c.l.b16 %v24
  %v179 = vunpack.c.h.b16 %v24
  %v180 = vunpack.c.l.b16 %v25
  %v181 = vunpack.c.h.b16 %v25
  %v182 = vunpack.c.l.b16 %v26
  %v183 = vunpack.c.h.b16 %v26
  %v184 = vunpack.c.l.b16 %v27
  %v185 = vunpack.c.h.b16 %v27
  %v186 = vunpack.c.l.b16 %v28
  %v187 = vunpack.c.h.b16 %v28
  %v188 = vunpack.c.l.b16 %v29
  %v189 = vunpack.c.h.b16 %v29
  %v190 = vunpack.c.l.b16 %v30
  %v191 = vunpack.c.h.b16 %v30
  %v192 = vunpack.c.l.b16 %v31
  %v193 = vunpack.c.h.b16 %v31
  %v194 = vunpack.c.l.b16 %v32
  %v195 = vunpack.c.h.b16 %v32
  %v196 = vunpack.c.l.b16 %v33
  %v197 = vunpack.c.h.b16 %v33
  %v198 = vunpack.c.l.b16 %v34
  %v199 = vunpack.c.h.b16 %v34
  %v200 = vunpack.c.l.b16 %v35
  %v201 = vunpack.c.h.b16 %v35
  %v202 = vunpack.c.l.b16 %v36
  %v203 = vunpack.c.h.b16 %v36
  %v204 = vunpack.c.l.b16 %v37
  %v205 = vunpack.c.h.b16 %v37
  %v206 = vunpack.c.l.b16 %v38
  %v207 = vunpack.c.h.b16 %v38
  %v208 = vunpack.c.l.b16 %v39
  %v209 = vunpack.c.h.b16 %v39
  %v210 = vunpack.c.l.b16 %v40
  %v211 = vunpack.c.h.b16 %v40
  %v212 = vunpack.c.l.b16 %v41
  %v213 = vunpack.c.h.b16 %v41
  %v214 = vunpack.c.l.b16 %v42
  %v215 = vunpack.c.h.b16 %v42
  %v216 = vunpack.c.l.b16 %v43
  %v217 = vunpack.c.h.b16 %v43
  %v218 = vunpack.c.l.b16 %v44
  %v219 = vunpack.c.h.b16 %v44
  %v220 = vunpack.c.l.b16 %v45
  %v221 = vunpack.c.h.b16 %v45
  %v222 = vunpack.c.l.b16 %v46
  %v223 = vunpack.c.h.b16 %v46
  %v224 = vunpack.c.l.b16 %v47
  %v225 = vunpack.c.h.b16 %v47
  %v226 = vunpack.c.l.b16 %v48
  %v227 = vunpack.c.h.b16 %v48
  %v228 = vunpack.c.l.b16 %v49
  %v229 = vunpack.c.h.b16 %v49
  %v230 = vunpack.c.l.b16 %v50
  %v231 = vunpack.c.h.b16 %v50
  %v232 = vunpack.c.l.b16 %v51
  %v233 = vunpack.c.h.b16 %v51
  %v234 = vunpack.c.l.b16 %v52
  %v235 = vunpack.c.h.b16 %v52
  %v236 = vunpack.c.l.b16 %v53
  %v237 = vunpack.c.h.b16 %v53
  %v238 = vunpack.c.l.b16 %v54
  %v239 = vunpack.c.h.b16 %v54
  %v240 = vunpack.c.l.b16 %v55
  %v241 = vunpack.c.h.b16 %v55
  %v242 = vunpack.c.l.b16 %v56
  %v243 = vunpack.c.h.b16 %v56
  %v244 = vunpack.c.l.b16 %v57
  %v245 = vunpack.c.h.b16 %v57
  %v246 = vunpack.c.l.b16 %v58
  %v247 = vunpack.c.h.b16 %v58
  %v248 = vunpack.c.l.b16 %v59
  %v249 = vunpack.c.h.b16 %v59
  %v250 = vunpack.c.l.b16 %v60
  %v251 = vunpack.c.h.b16 %v60
  %v252 = vunpack.c.l.b16 %v61
  %v253 = vunpack.c.h.b16 %v61
  %v254 = vunpack.c.l.b16 %v62
  %v255 = vunpack.c.h.b16 %v62
  %v256 = vunpack.c.l.b16 %v63
  %v257 = vunpack.c.h.b16 %v63
  %v258 = vunpack.c.l.b16 %v64
  %v259 = vunpack.c.h.b16 %v64
  %v260 = vunpack.c.l.b16 %v65
  %v261 = vunpack.c.h.b16 %v65
  %v262 = vunpack.c.l.b16 %v66
  %v263 = vunpack.c.h.b16 %v66
  %v264 = vunpack.c.l.b16 %v67
  %v265 = vunpack.c.h.b16 %v67
  %v266 = vunpack.c.l.b16 %v68
  %v267 = vunpack.c.h.b16 %v68
  %v268 = vunpack.c.l.b16 %v69
  %v269 = vunpack.c.h.b16 %v69
  %v270 = vunpack.c.l.b16 %v70
  %v271 = vunpack.c.h.b16 %v70
  %v272 = vunpack.c.l.b16 %v71
  %v273 = vunpack.c.h.b16 %v71
  %v274 = vunpack.c.l.b16 %v72
  %v275 = vunpack.c.h.b16 %v72
  %v276 = vunpack.c.l.b16 %v73
  %v277 = vunpack.c.h.b16 %v73
  %v278 = vunpack.c.l.b16 %v74
  %v279 = vunpack.c.h.b16 %v74
  %v280 = vunpack.c.l.b16 %v75
  %v281 = vunpack.c.h.b16 %v75
  %v282 = vunpack.c.l.b16 %v76
  %v283 = vunpack.c.h.b16 %v76
  %v284 = vunpack.c.l.b16 %v77
  %v285 = vunpack.c.h.b16 %v77
  %v286 = vunpack.c.l.b16 %v78
  %v287 = vunpack.c.h.b16 %v78
  %v288 = vunpack.c.l.b16 %v79
  %v289 = vunpack.c.h.b16 %v79
  %v290 = vunpack.c.l.b16 %v80
  %v291 = vunpack.c.h.b16 %v80
  %v292 = vunpack.c.l.b16 %v81
  %v293 = vunpack.c.h.b16 %v81
  %v294 = vpack.c.b16 %v168, %v166
  %v295 = vpack.c.b16 %v169, %v167
  %v296 = vpack.c.b16 %v172, %v170
  %v297 = vpack.c.b16 %v173, %v171
  %v298 = vpack.c.b16 %v176, %v174
  %v299 = vpack.c.b16 %v177, %v175
  %v300 = vpack.c.b16 %v180, %v178
  %v301 = vpack.c.b16 %v181, %v179
  %v302 = vpack.c.b16 %v184, %v182
  %v303 = vpack.c.b16 %v185, %v183
  %v304 = vpack.c.b16 %v188, %v186
  %v305 = vpack.c.b16 %v189, %v187
  %v306 = vpack.c.b16 %v192, %v190
  %v307 = vpack.c.b16 %v193, %v191
  %v308 = vpack.c.b16 %v196, %v194
  %v309 = vpack.c.b16 %v197, %v195
  %v310 = vpack.c.b16 %v200, %v198
  %v311 = vpack.c.b16 %v201, %v199
  %v312 = vpack.c.b16 %v204, %v202
  %v313 = vpack.c.b16 %v205, %v203
  %v314 = vpack.c.b16 %v208, %v206
  %v315 = vpack.c.b16 %v209, %v207
  %v316 = vpack.c.b16 %v212, %v210
  %v317 = vpack.c.b16 %v213, %v211
  %v318 = vpack.c.b16 %v216, %v214
  %v319 = vpack.c.b16 %v217, %v215
  %v320 = vpack.c.b16 %v220, %v218
  %v321 = vpack.c.b16 %v221, %v219
  %v322 = vpack.c.b16 %v224, %v222
  %v323 = vpack.c.b16 %v225, %v223
  %v324 = vpack.c.b16 %v228, %v226
  %v325 = vpack.c.b16 %v229, %v227
  %v326 = vpack.c.b16 %v232, %v230
  %v327 = vpack.c.b16 %v233, %v231
  %v328 = vpack.c.b16 %v236, %v234
  %v329 = vpack.c.b16 %v237, %v235
  %v330 = vpack.c.b16 %v240, %v238
  %v331 = vpack.c.b16 %v241, %v239
  %v332 = vpack.c.b16 %v244, %v242
  %v333 = vpack.c.b16 %v245, %v243
  %v334 = vpack.c.b16 %v248, %v246
  %v335 = vpack.c.b16 %v249, %v247
  %v336 = vpack.c.b16 %v252, %v250
  %v337 = vpack.c.b16 %v253, %v251
  %v338 = vpack.c.b16 %v256, %v254
  %v339 = vpack.c.b16 %v257, %v255
  %v340 = vpack.c.b16 %v260, %v258
  %v341 = vpack.c.b16 %v261, %v259
  %v342 = vpack.c.b16 %v264, %v262
  %v343 = vpack.c.b16 %v265, %v263
  %v344 = vpack.c.b16 %v268, %v266
  %v345 = vpack.c.b16 %v269, %v267
  %v346 = vpack.c.b16 %v272, %v270
  %v347 = vpack.c.b16 %v273, %v271
  %v348 = vpack.c.b16 %v276, %v274
  %v349 = vpack.c.b16 %v277, %v275
  %v350 = vpack.c.b16 %v280, %v278
  %v351 = vpack.c.b16 %v281, %v279
  %v352 = vpack.c.b16 %v284, %v282
  %v353 = vpack.c.b16 %v285, %v283
  %v354 = vpack.c.b16 %v288, %v286
  %v355 = vpack.c.b16 %v289, %v287
  %v356 = vpack.c.b16 %v292, %v290
  %v357 = vpack.c.b16 %v293, %v291
  %v410 = vunpack.c.l.b16 %v82
  %v411 = vunpack.c.l.b16 %v83
  %v412 = vunpack.c.l.b16 %v84
  %v413 = vunpack.c.l.b16 %v85
  %v414 = vunpack.c.l.b16 %v86
  %v415 = vunpack.c.l.b16 %v87
  %v416 = vunpack.c.l.b16 %v88
  %v417 = vunpack.c.l.b16 %v89
  %v418 = vunpack.c.l.b16 %v90
  %v419 = vunpack.c.l.b16 %v91
  %v420 = vunpack.c.l.b16 %v92
  %v421 = vunpack.c.l.b16 %v93
  %v422 = vunpack.c.l.b16 %v94
  %v423 = vunpack.c.l.b16 %v95
  %v424 = vunpack.c.l.b16 %v96
  %v425 = vunpack.c.l.b16 %v97
  %v426 = vunpack.c.l.b16 %v98
  %v427 = vunpack.c.l.b16 %v99
  %v428 = vunpack.c.l.b16 %v100
  %v429 = vunpack.c.l.b16 %v101
  %v430 = vpack.c.b16 %v411, %v410
  %v431 = vpack.c.b16 %v413, %v412
  %v432 = vpack.c.b16 %v415, %v414
  %v433 = vpack.c.b16 %v417, %v416
  %v434 = vpack.c.b16 %v419, %v418
  %v435 = vpack.c.b16 %v421, %v420
  %v436 = vpack.c.b16 %v423, %v422
  %v437 = vpack.c.b16 %v425, %v424
  %v438 = vpack.c.b16 %v427, %v426
  %v439 = vpack.c.b16 %v429, %v428
  %vm450 = vcmask 261120
  %v452 = vsel %vm450, %v295, 0
  %v455 = vsel %vm450, %v297, 0
  %v458 = vsel %vm450, %v299, 0
  %v461 = vsel %vm450, %v301, 0
  %v464 = vsel %vm450, %v303, 0
  %v467 = vsel %vm450, %v305, 0
  %v470 = vsel %vm450, %v307, 0
  %v473 = vsel %vm450, %v309, 0
  %v476 = vsel %vm450, %v311, 0
  %v479 = vsel %vm450, %v313, 0
  %v482 = vsel %vm450, %v315, 0
  %v485 = vsel %vm450, %v317, 0
  %v488 = vsel %vm450, %v319, 0
  %v491 = vsel %vm450, %v321, 0
  %v494 = vsel %vm450, %v323, 0
  %v497 = vsel %vm450, %v325, 0
  %v500 = vsel %vm450, %v327, 0
  %v503 = vsel %vm450, %v329, 0
  %v506 = vsel %vm450, %v331, 0
  %v509 = vsel %vm450, %v333, 0
  %v512 = vsel %vm450, %v335, 0
  %v515 = vsel %vm450, %v337, 0
  %v518 = vsel %vm450, %v339, 0
  %v521 = vsel %vm450, %v341, 0
  %v524 = vsel %vm450, %v343, 0
  %v527 = vsel %vm450, %v345, 0
  %v530 = vsel %vm450, %v347, 0
  %v533 = vsel %vm450, %v349, 0
  %v536 = vsel %vm450, %v351, 0
  %v539 = vsel %vm450, %v353, 0
  %v542 = vsel %vm450, %v355, 0
  %v545 = vsel %vm450, %v357, 0
  %547 = vmatprep.subr.bf16.mxu0 0
  %548 = vmatpush1.bf16.msra.mxu0 %v430
  %549 = vmatprep.subr.bf16.mxu0 0
  %550 = vmatpush1.bf16.msra.mxu0 %v431
  %551 = vmatprep.subr.bf16.mxu0 0
  %552 = vmatpush1.bf16.msra.mxu0 %v432
  %553 = vmatprep.subr.bf16.mxu0 0
  %554 = vmatpush1.bf16.msra.mxu0 %v433
  %555 = vmatprep.subr.bf16.mxu0 0
  %556 = vmatpush1.bf16.msra.mxu0 %v434
  %557 = vmatprep.subr.bf16.mxu0 0
  %558 = vmatpush1.bf16.msra.mxu0 %v435
  %559 = vmatprep.subr.bf16.mxu0 0
  %560 = vmatpush1.bf16.msra.mxu0 %v436
  %561 = vmatprep.subr.bf16.mxu0 0
  %562 = vmatpush1.bf16.msra.mxu0 %v437
  %563 = vmatprep.subr.bf16.mxu0 0
  %564 = vmatpush1.bf16.msra.mxu0 %v438
  %565 = vmatprep.subr.bf16.mxu0 0
  %566 = vmatpush1.bf16.msra.mxu0 %v439
  %567 = vmatprep.subr.bf16.mxu0 0
  %568 = vmatpush1.bf16.msra.mxu0 0
  %569 = vmatprep.subr.bf16.mxu0 0
  %570 = vmatpush1.bf16.msra.mxu0 0
  %571 = vmatprep.subr.bf16.mxu0 0
  %572 = vmatpush1.bf16.msra.mxu0 0
  %573 = vmatprep.subr.bf16.mxu0 0
  %574 = vmatpush1.bf16.msra.mxu0 0
  %575 = vmatprep.subr.bf16.mxu0 0
  %576 = vmatpush1.bf16.msra.mxu0 0
  %577 = vmatprep.subr.bf16.mxu0 0
  %578 = vmatpush1.bf16.msra.mxu0 0
  %579 = vmatprep.mubr.bf16.mxu0 %v452
  %580 = vmatmul.mubr.bf16.gmra.mrb[0].mxu0 %v294
  %v581 = vpop.f32.mrb[0].mxu0
  %v582 = vadd.f32 0.0, %v581
  %v583 = vpop.f32.mrb[0].mxu0
  %v584 = vpop.f32.mrb[0].mxu0
  %v585 = vadd.f32 0.0, %v584
  %v586 = vpop.f32.mrb[0].mxu0
  %587 = vmatprep.mubr.bf16.mxu0 %v455
  %588 = vmatmul.mubr.bf16.gmra.mrb[0].mxu0 %v296
  %v589 = vpop.f32.mrb[0].mxu0
  %v590 = vadd.f32 0.0, %v589
  %v591 = vpop.f32.mrb[0].mxu0
  %v592 = vpop.f32.mrb[0].mxu0
  %v593 = vadd.f32 0.0, %v592
  %v594 = vpop.f32.mrb[0].mxu0
  %595 = vmatprep.mubr.bf16.mxu0 %v458
  %596 = vmatmul.mubr.bf16.gmra.mrb[0].mxu0 %v298
  %v597 = vpop.f32.mrb[0].mxu0
  %v598 = vadd.f32 0.0, %v597
  %v599 = vpop.f32.mrb[0].mxu0
  %v600 = vpop.f32.mrb[0].mxu0
  %v601 = vadd.f32 0.0, %v600
  %v602 = vpop.f32.mrb[0].mxu0
  %603 = vmatprep.mubr.bf16.mxu0 %v461
  %604 = vmatmul.mubr.bf16.gmra.mrb[0].mxu0 %v300
  %v605 = vpop.f32.mrb[0].mxu0
  %v606 = vadd.f32 0.0, %v605
  %v607 = vpop.f32.mrb[0].mxu0
  %v608 = vpop.f32.mrb[0].mxu0
  %v609 = vadd.f32 0.0, %v608
  %v610 = vpop.f32.mrb[0].mxu0
  %611 = vmatprep.mubr.bf16.mxu0 %v464
  %612 = vmatmul.mubr.bf16.gmra.mrb[0].mxu0 %v302
  %v613 = vpop.f32.mrb[0].mxu0
  %v614 = vadd.f32 0.0, %v613
  %v615 = vpop.f32.mrb[0].mxu0
  %v616 = vpop.f32.mrb[0].mxu0
  %v617 = vadd.f32 0.0, %v616
  %v618 = vpop.f32.mrb[0].mxu0
  %619 = vmatprep.mubr.bf16.mxu0 %v467
  %620 = vmatmul.mubr.bf16.gmra.mrb[0].mxu0 %v304
  %v621 = vpop.f32.mrb[0].mxu0
  %v622 = vadd.f32 0.0, %v621
  %v623 = vpop.f32.mrb[0].mxu0
  %v624 = vpop.f32.mrb[0].mxu0
  %v625 = vadd.f32 0.0, %v624
  %v626 = vpop.f32.mrb[0].mxu0
  %627 = vmatprep.mubr.bf16.mxu0 %v470
  %628 = vmatmul.mubr.bf16.gmra.mrb[0].mxu0 %v306
  %v629 = vpop.f32.mrb[0].mxu0
  %v630 = vadd.f32 0.0, %v629
  %v631 = vpop.f32.mrb[0].mxu0
  %v632 = vpop.f32.mrb[0].mxu0
  %v633 = vadd.f32 0.0, %v632
  %v634 = vpop.f32.mrb[0].mxu0
  %635 = vmatprep.mubr.bf16.mxu0 %v473
  %636 = vmatmul.mubr.bf16.gmra.mrb[0].mxu0 %v308
  %v637 = vpop.f32.mrb[0].mxu0
  %v638 = vadd.f32 0.0, %v637
  %v639 = vpop.f32.mrb[0].mxu0
  %v640 = vpop.f32.mrb[0].mxu0
  %v641 = vadd.f32 0.0, %v640
  %v642 = vpop.f32.mrb[0].mxu0
  %643 = vmatprep.mubr.bf16.mxu0 %v476
  %644 = vmatmul.mubr.bf16.gmra.mrb[0].mxu0 %v310
  %v645 = vpop.f32.mrb[0].mxu0
  %v646 = vadd.f32 0.0, %v645
  %v647 = vpop.f32.mrb[0].mxu0
  %v648 = vpop.f32.mrb[0].mxu0
  %v649 = vadd.f32 0.0, %v648
  %v650 = vpop.f32.mrb[0].mxu0
  %651 = vmatprep.mubr.bf16.mxu0 %v479
  %652 = vmatmul.mubr.bf16.gmra.mrb[0].mxu0 %v312
  %v653 = vpop.f32.mrb[0].mxu0
  %v654 = vadd.f32 0.0, %v653
  %v655 = vpop.f32.mrb[0].mxu0
  %v656 = vpop.f32.mrb[0].mxu0
  %v657 = vadd.f32 0.0, %v656
  %v658 = vpop.f32.mrb[0].mxu0
  %659 = vmatprep.mubr.bf16.mxu0 %v482
  %660 = vmatmul.mubr.bf16.gmra.mrb[0].mxu0 %v314
  %v661 = vpop.f32.mrb[0].mxu0
  %v662 = vadd.f32 0.0, %v661
  %v663 = vpop.f32.mrb[0].mxu0
  %v664 = vpop.f32.mrb[0].mxu0
  %v665 = vadd.f32 0.0, %v664
  %v666 = vpop.f32.mrb[0].mxu0
  %667 = vmatprep.mubr.bf16.mxu0 %v485
  %668 = vmatmul.mubr.bf16.gmra.mrb[0].mxu0 %v316
  %v669 = vpop.f32.mrb[0].mxu0
  %v670 = vadd.f32 0.0, %v669
  %v671 = vpop.f32.mrb[0].mxu0
  %v672 = vpop.f32.mrb[0].mxu0
  %v673 = vadd.f32 0.0, %v672
  %v674 = vpop.f32.mrb[0].mxu0
  %675 = vmatprep.mubr.bf16.mxu0 %v488
  %676 = vmatmul.mubr.bf16.gmra.mrb[0].mxu0 %v318
  %v677 = vpop.f32.mrb[0].mxu0
  %v678 = vadd.f32 0.0, %v677
  %v679 = vpop.f32.mrb[0].mxu0
  %v680 = vpop.f32.mrb[0].mxu0
  %v681 = vadd.f32 0.0, %v680
  %v682 = vpop.f32.mrb[0].mxu0
  %683 = vmatprep.mubr.bf16.mxu0 %v491
  %684 = vmatmul.mubr.bf16.gmra.mrb[0].mxu0 %v320
  %v685 = vpop.f32.mrb[0].mxu0
  %v686 = vadd.f32 0.0, %v685
  %v687 = vpop.f32.mrb[0].mxu0
  %v688 = vpop.f32.mrb[0].mxu0
  %v689 = vadd.f32 0.0, %v688
  %v690 = vpop.f32.mrb[0].mxu0
  %691 = vmatprep.mubr.bf16.mxu0 %v494
  %692 = vmatmul.mubr.bf16.gmra.mrb[0].mxu0 %v322
  %v693 = vpop.f32.mrb[0].mxu0
  %v694 = vadd.f32 0.0, %v693
  %v695 = vpop.f32.mrb[0].mxu0
  %v696 = vpop.f32.mrb[0].mxu0
  %v697 = vadd.f32 0.0, %v696
  %v698 = vpop.f32.mrb[0].mxu0
  %699 = vmatprep.mubr.bf16.mxu0 %v497
  %700 = vmatmul.mubr.bf16.gmra.mrb[0].mxu0 %v324
  %v701 = vpop.f32.mrb[0].mxu0
  %v702 = vadd.f32 0.0, %v701
  %v703 = vpop.f32.mrb[0].mxu0
  %v704 = vpop.f32.mrb[0].mxu0
  %v705 = vadd.f32 0.0, %v704
  %v706 = vpop.f32.mrb[0].mxu0
  %707 = vmatprep.mubr.bf16.mxu0 %v500
  %708 = vmatmul.mubr.bf16.gmra.mrb[0].mxu0 %v326
  %v709 = vpop.f32.mrb[0].mxu0
  %v710 = vadd.f32 0.0, %v709
  %v711 = vpop.f32.mrb[0].mxu0
  %v712 = vpop.f32.mrb[0].mxu0
  %v713 = vadd.f32 0.0, %v712
  %v714 = vpop.f32.mrb[0].mxu0
  %715 = vmatprep.mubr.bf16.mxu0 %v503
  %716 = vmatmul.mubr.bf16.gmra.mrb[0].mxu0 %v328
  %v717 = vpop.f32.mrb[0].mxu0
  %v718 = vadd.f32 0.0, %v717
  %v719 = vpop.f32.mrb[0].mxu0
  %v720 = vpop.f32.mrb[0].mxu0
  %v721 = vadd.f32 0.0, %v720
  %v722 = vpop.f32.mrb[0].mxu0
  %723 = vmatprep.mubr.bf16.mxu0 %v506
  %724 = vmatmul.mubr.bf16.gmra.mrb[0].mxu0 %v330
  %v725 = vpop.f32.mrb[0].mxu0
  %v726 = vadd.f32 0.0, %v725
  %v727 = vpop.f32.mrb[0].mxu0
  %v728 = vpop.f32.mrb[0].mxu0
  %v729 = vadd.f32 0.0, %v728
  %v730 = vpop.f32.mrb[0].mxu0
  %731 = vmatprep.mubr.bf16.mxu0 %v509
  %732 = vmatmul.mubr.bf16.gmra.mrb[0].mxu0 %v332
  %v733 = vpop.f32.mrb[0].mxu0
  %v734 = vadd.f32 0.0, %v733
  %v735 = vpop.f32.mrb[0].mxu0
  %v736 = vpop.f32.mrb[0].mxu0
  %v737 = vadd.f32 0.0, %v736
  %v738 = vpop.f32.mrb[0].mxu0
  %739 = vmatprep.mubr.bf16.mxu0 %v512
  %740 = vmatmul.mubr.bf16.gmra.mrb[0].mxu0 %v334
  %v741 = vpop.f32.mrb[0].mxu0
  %v742 = vadd.f32 0.0, %v741
  %v743 = vpop.f32.mrb[0].mxu0
  %v744 = vpop.f32.mrb[0].mxu0
  %v745 = vadd.f32 0.0, %v744
  %v746 = vpop.f32.mrb[0].mxu0
  %747 = vmatprep.mubr.bf16.mxu0 %v515
  %748 = vmatmul.mubr.bf16.gmra.mrb[0].mxu0 %v336
  %v749 = vpop.f32.mrb[0].mxu0
  %v750 = vadd.f32 0.0, %v749
  %v751 = vpop.f32.mrb[0].mxu0
  %v752 = vpop.f32.mrb[0].mxu0
  %v753 = vadd.f32 0.0, %v752
  %v754 = vpop.f32.mrb[0].mxu0
  %755 = vmatprep.mubr.bf16.mxu0 %v518
  %756 = vmatmul.mubr.bf16.gmra.mrb[0].mxu0 %v338
  %v757 = vpop.f32.mrb[0].mxu0
  %v758 = vadd.f32 0.0, %v757
  %v759 = vpop.f32.mrb[0].mxu0
  %v760 = vpop.f32.mrb[0].mxu0
  %v761 = vadd.f32 0.0, %v760
  %v762 = vpop.f32.mrb[0].mxu0
  %763 = vmatprep.mubr.bf16.mxu0 %v521
  %764 = vmatmul.mubr.bf16.gmra.mrb[0].mxu0 %v340
  %v765 = vpop.f32.mrb[0].mxu0
  %v766 = vadd.f32 0.0, %v765
  %v767 = vpop.f32.mrb[0].mxu0
  %v768 = vpop.f32.mrb[0].mxu0
  %v769 = vadd.f32 0.0, %v768
  %v770 = vpop.f32.mrb[0].mxu0
  %771 = vmatprep.mubr.bf16.mxu0 %v524
  %772 = vmatmul.mubr.bf16.gmra.mrb[0].mxu0 %v342
  %v773 = vpop.f32.mrb[0].mxu0
  %v774 = vadd.f32 0.0, %v773
  %v775 = vpop.f32.mrb[0].mxu0
  %v776 = vpop.f32.mrb[0].mxu0
  %v777 = vadd.f32 0.0, %v776
  %v778 = vpop.f32.mrb[0].mxu0
  %779 = vmatprep.mubr.bf16.mxu0 %v527
  %780 = vmatmul.mubr.bf16.gmra.mrb[0].mxu0 %v344
  %v781 = vpop.f32.mrb[0].mxu0
  %v782 = vadd.f32 0.0, %v781
  %v783 = vpop.f32.mrb[0].mxu0
  %v784 = vpop.f32.mrb[0].mxu0
  %v785 = vadd.f32 0.0, %v784
  %v786 = vpop.f32.mrb[0].mxu0
  %787 = vmatprep.mubr.bf16.mxu0 %v530
  %788 = vmatmul.mubr.bf16.gmra.mrb[0].mxu0 %v346
  %v789 = vpop.f32.mrb[0].mxu0
  %v790 = vadd.f32 0.0, %v789
  %v791 = vpop.f32.mrb[0].mxu0
  %v792 = vpop.f32.mrb[0].mxu0
  %v793 = vadd.f32 0.0, %v792
  %v794 = vpop.f32.mrb[0].mxu0
  %795 = vmatprep.mubr.bf16.mxu0 %v533
  %796 = vmatmul.mubr.bf16.gmra.mrb[0].mxu0 %v348
  %v797 = vpop.f32.mrb[0].mxu0
  %v798 = vadd.f32 0.0, %v797
  %v799 = vpop.f32.mrb[0].mxu0
  %v800 = vpop.f32.mrb[0].mxu0
  %v801 = vadd.f32 0.0, %v800
  %v802 = vpop.f32.mrb[0].mxu0
  %803 = vmatprep.mubr.bf16.mxu0 %v536
  %804 = vmatmul.mubr.bf16.gmra.mrb[0].mxu0 %v350
  %v805 = vpop.f32.mrb[0].mxu0
  %v806 = vadd.f32 0.0, %v805
  %v807 = vpop.f32.mrb[0].mxu0
  %v808 = vpop.f32.mrb[0].mxu0
  %v809 = vadd.f32 0.0, %v808
  %v810 = vpop.f32.mrb[0].mxu0
  %811 = vmatprep.mubr.bf16.mxu0 %v539
  %812 = vmatmul.mubr.bf16.gmra.mrb[0].mxu0 %v352
  %v813 = vpop.f32.mrb[0].mxu0
  %v814 = vadd.f32 0.0, %v813
  %v815 = vpop.f32.mrb[0].mxu0
  %v816 = vpop.f32.mrb[0].mxu0
  %v817 = vadd.f32 0.0, %v816
  %v818 = vpop.f32.mrb[0].mxu0
  %819 = vmatprep.mubr.bf16.mxu0 %v542
  %820 = vmatmul.mubr.bf16.gmra.mrb[0].mxu0 %v354
  %v821 = vpop.f32.mrb[0].mxu0
  %v822 = vadd.f32 0.0, %v821
  %v823 = vpop.f32.mrb[0].mxu0
  %v824 = vpop.f32.mrb[0].mxu0
  %v825 = vadd.f32 0.0, %v824
  %v826 = vpop.f32.mrb[0].mxu0
  %827 = vmatprep.mubr.bf16.mxu0 %v545
  %828 = vmatmul.mubr.bf16.gmra.mrb[0].mxu0 %v356
  %v829 = vpop.f32.mrb[0].mxu0
  %v830 = vadd.f32 0.0, %v829
  %v831 = vpop.f32.mrb[0].mxu0
  %v832 = vpop.f32.mrb[0].mxu0
  %v833 = vadd.f32 0.0, %v832
  %v834 = vpop.f32.mrb[0].mxu0
  %835 = vdwg.mxu0
  %v836 = vld [vmem:[%s2] sm:$0x1]
  %v838 = vlaneseq
  %v839 = vshrl.u32 %v838, 7
  %v840 = vsub.s32 0, %v839
  %v841 = vrot.slane %v836, %v840
  %v843 = vmul.f32 %v582, %v841
  %v844 = vmul.f32 %v585, %v841
  %v845 = vmul.f32 %v590, %v841
  %v846 = vmul.f32 %v593, %v841
  %v847 = vmul.f32 %v598, %v841
  %v848 = vmul.f32 %v601, %v841
  %v849 = vmul.f32 %v606, %v841
  %v850 = vmul.f32 %v609, %v841
  %v851 = vmul.f32 %v614, %v841
  %v852 = vmul.f32 %v617, %v841
  %v853 = vmul.f32 %v622, %v841
  %v854 = vmul.f32 %v625, %v841
  %v855 = vmul.f32 %v630, %v841
  %v856 = vmul.f32 %v633, %v841
  %v857 = vmul.f32 %v638, %v841
  %v858 = vmul.f32 %v641, %v841
  %v859 = vmul.f32 %v646, %v841
  %v860 = vmul.f32 %v649, %v841
  %v861 = vmul.f32 %v654, %v841
  %v862 = vmul.f32 %v657, %v841
  %v863 = vmul.f32 %v662, %v841
  %v864 = vmul.f32 %v665, %v841
  %v865 = vmul.f32 %v670, %v841
  %v866 = vmul.f32 %v673, %v841
  %v867 = vmul.f32 %v678, %v841
  %v868 = vmul.f32 %v681, %v841
  %v869 = vmul.f32 %v686, %v841
  %v870 = vmul.f32 %v689, %v841
  %v871 = vmul.f32 %v694, %v841
  %v872 = vmul.f32 %v697, %v841
  %v873 = vmul.f32 %v702, %v841
  %v874 = vmul.f32 %v705, %v841
  %v875 = vmul.f32 %v710, %v841
  %v876 = vmul.f32 %v713, %v841
  %v877 = vmul.f32 %v718, %v841
  %v878 = vmul.f32 %v721, %v841
  %v879 = vmul.f32 %v726, %v841
  %v880 = vmul.f32 %v729, %v841
  %v881 = vmul.f32 %v734, %v841
  %v882 = vmul.f32 %v737, %v841
  %v883 = vmul.f32 %v742, %v841
  %v884 = vmul.f32 %v745, %v841
  %v885 = vmul.f32 %v750, %v841
  %v886 = vmul.f32 %v753, %v841
  %v887 = vmul.f32 %v758, %v841
  %v888 = vmul.f32 %v761, %v841
  %v889 = vmul.f32 %v766, %v841
  %v890 = vmul.f32 %v769, %v841
  %v891 = vmul.f32 %v774, %v841
  %v892 = vmul.f32 %v777, %v841
  %v893 = vmul.f32 %v782, %v841
  %v894 = vmul.f32 %v785, %v841
  %v895 = vmul.f32 %v790, %v841
  %v896 = vmul.f32 %v793, %v841
  %v897 = vmul.f32 %v798, %v841
  %v898 = vmul.f32 %v801, %v841
  %v899 = vmul.f32 %v806, %v841
  %v900 = vmul.f32 %v809, %v841
  %v901 = vmul.f32 %v814, %v841
  %v902 = vmul.f32 %v817, %v841
  %v903 = vmul.f32 %v822, %v841
  %v904 = vmul.f32 %v825, %v841
  %v905 = vmul.f32 %v830, %v841
  %v906 = vmul.f32 %v833, %v841
  %v907 = vld [vmem:[%s3] sm:$0x1]
  %v909 = vlaneseq
  %v910 = vshrl.u32 %v909, 7
  %v911 = vsub.s32 0, %v910
  %v912 = vrot.slane %v907, %v911
  %v914 = vadd.f32 %v843, %v912
  %v915 = vadd.f32 %v844, %v912
  %v916 = vadd.f32 %v845, %v912
  %v917 = vadd.f32 %v846, %v912
  %v918 = vadd.f32 %v847, %v912
  %v919 = vadd.f32 %v848, %v912
  %v920 = vadd.f32 %v849, %v912
  %v921 = vadd.f32 %v850, %v912
  %v922 = vadd.f32 %v851, %v912
  %v923 = vadd.f32 %v852, %v912
  %v924 = vadd.f32 %v853, %v912
  %v925 = vadd.f32 %v854, %v912
  %v926 = vadd.f32 %v855, %v912
  %v927 = vadd.f32 %v856, %v912
  %v928 = vadd.f32 %v857, %v912
  %v929 = vadd.f32 %v858, %v912
  %v930 = vadd.f32 %v859, %v912
  %v931 = vadd.f32 %v860, %v912
  %v932 = vadd.f32 %v861, %v912
  %v933 = vadd.f32 %v862, %v912
  %v934 = vadd.f32 %v863, %v912
  %v935 = vadd.f32 %v864, %v912
  %v936 = vadd.f32 %v865, %v912
  %v937 = vadd.f32 %v866, %v912
  %v938 = vadd.f32 %v867, %v912
  %v939 = vadd.f32 %v868, %v912
  %v940 = vadd.f32 %v869, %v912
  %v941 = vadd.f32 %v870, %v912
  %v942 = vadd.f32 %v871, %v912
  %v943 = vadd.f32 %v872, %v912
  %v944 = vadd.f32 %v873, %v912
  %v945 = vadd.f32 %v874, %v912
  %v946 = vadd.f32 %v875, %v912
  %v947 = vadd.f32 %v876, %v912
  %v948 = vadd.f32 %v877, %v912
  %v949 = vadd.f32 %v878, %v912
  %v950 = vadd.f32 %v879, %v912
  %v951 = vadd.f32 %v880, %v912
  %v952 = vadd.f32 %v881, %v912
  %v953 = vadd.f32 %v882, %v912
  %v954 = vadd.f32 %v883, %v912
  %v955 = vadd.f32 %v884, %v912
  %v956 = vadd.f32 %v885, %v912
  %v957 = vadd.f32 %v886, %v912
  %v958 = vadd.f32 %v887, %v912
  %v959 = vadd.f32 %v888, %v912
  %v960 = vadd.f32 %v889, %v912
  %v961 = vadd.f32 %v890, %v912
  %v962 = vadd.f32 %v891, %v912
  %v963 = vadd.f32 %v892, %v912
  %v964 = vadd.f32 %v893, %v912
  %v965 = vadd.f32 %v894, %v912
  %v966 = vadd.f32 %v895, %v912
  %v967 = vadd.f32 %v896, %v912
  %v968 = vadd.f32 %v897, %v912
  %v969 = vadd.f32 %v898, %v912
  %v970 = vadd.f32 %v899, %v912
  %v971 = vadd.f32 %v900, %v912
  %v972 = vadd.f32 %v901, %v912
  %v973 = vadd.f32 %v902, %v912
  %v974 = vadd.f32 %v903, %v912
  %v975 = vadd.f32 %v904, %v912
  %v976 = vadd.f32 %v905, %v912
  %v977 = vadd.f32 %v906, %v912
  %v978 = vmax.f32 %v914, 0.0
  %v979 = vmax.f32 %v915, 0.0
  %v980 = vmax.f32 %v916, 0.0
  %v981 = vmax.f32 %v917, 0.0
  %v982 = vmax.f32 %v918, 0.0
  %v983 = vmax.f32 %v919, 0.0
  %v984 = vmax.f32 %v920, 0.0
  %v985 = vmax.f32 %v921, 0.0
  %v986 = vmax.f32 %v922, 0.0
  %v987 = vmax.f32 %v923, 0.0
  %v988 = vmax.f32 %v924, 0.0
  %v989 = vmax.f32 %v925, 0.0
  %v990 = vmax.f32 %v926, 0.0
  %v991 = vmax.f32 %v927, 0.0
  %v992 = vmax.f32 %v928, 0.0
  %v993 = vmax.f32 %v929, 0.0
  %v994 = vmax.f32 %v930, 0.0
  %v995 = vmax.f32 %v931, 0.0
  %v996 = vmax.f32 %v932, 0.0
  %v997 = vmax.f32 %v933, 0.0
  %v998 = vmax.f32 %v934, 0.0
  %v999 = vmax.f32 %v935, 0.0
  %v1000 = vmax.f32 %v936, 0.0
  %v1001 = vmax.f32 %v937, 0.0
  %v1002 = vmax.f32 %v938, 0.0
  %v1003 = vmax.f32 %v939, 0.0
  %v1004 = vmax.f32 %v940, 0.0
  %v1005 = vmax.f32 %v941, 0.0
  %v1006 = vmax.f32 %v942, 0.0
  %v1007 = vmax.f32 %v943, 0.0
  %v1008 = vmax.f32 %v944, 0.0
  %v1009 = vmax.f32 %v945, 0.0
  %v1010 = vmax.f32 %v946, 0.0
  %v1011 = vmax.f32 %v947, 0.0
  %v1012 = vmax.f32 %v948, 0.0
  %v1013 = vmax.f32 %v949, 0.0
  %v1014 = vmax.f32 %v950, 0.0
  %v1015 = vmax.f32 %v951, 0.0
  %v1016 = vmax.f32 %v952, 0.0
  %v1017 = vmax.f32 %v953, 0.0
  %v1018 = vmax.f32 %v954, 0.0
  %v1019 = vmax.f32 %v955, 0.0
  %v1020 = vmax.f32 %v956, 0.0
  %v1021 = vmax.f32 %v957, 0.0
  %v1022 = vmax.f32 %v958, 0.0
  %v1023 = vmax.f32 %v959, 0.0
  %v1024 = vmax.f32 %v960, 0.0
  %v1025 = vmax.f32 %v961, 0.0
  %v1026 = vmax.f32 %v962, 0.0
  %v1027 = vmax.f32 %v963, 0.0
  %v1028 = vmax.f32 %v964, 0.0
  %v1029 = vmax.f32 %v965, 0.0
  %v1030 = vmax.f32 %v966, 0.0
  %v1031 = vmax.f32 %v967, 0.0
  %v1032 = vmax.f32 %v968, 0.0
  %v1033 = vmax.f32 %v969, 0.0
  %v1034 = vmax.f32 %v970, 0.0
  %v1035 = vmax.f32 %v971, 0.0
  %v1036 = vmax.f32 %v972, 0.0
  %v1037 = vmax.f32 %v973, 0.0
  %v1038 = vmax.f32 %v974, 0.0
  %v1039 = vmax.f32 %v975, 0.0
  %v1040 = vmax.f32 %v976, 0.0
  %v1041 = vmax.f32 %v977, 0.0
  %v1042 = vpack.c.bf16 %v979, %v978
  %v1043 = vpack.c.bf16 %v981, %v980
  %v1044 = vpack.c.bf16 %v983, %v982
  %v1045 = vpack.c.bf16 %v985, %v984
  %v1046 = vpack.c.bf16 %v987, %v986
  %v1047 = vpack.c.bf16 %v989, %v988
  %v1048 = vpack.c.bf16 %v991, %v990
  %v1049 = vpack.c.bf16 %v993, %v992
  %v1050 = vpack.c.bf16 %v995, %v994
  %v1051 = vpack.c.bf16 %v997, %v996
  %v1052 = vpack.c.bf16 %v999, %v998
  %v1053 = vpack.c.bf16 %v1001, %v1000
  %v1054 = vpack.c.bf16 %v1003, %v1002
  %v1055 = vpack.c.bf16 %v1005, %v1004
  %v1056 = vpack.c.bf16 %v1007, %v1006
  %v1057 = vpack.c.bf16 %v1009, %v1008
  %v1058 = vpack.c.bf16 %v1011, %v1010
  %v1059 = vpack.c.bf16 %v1013, %v1012
  %v1060 = vpack.c.bf16 %v1015, %v1014
  %v1061 = vpack.c.bf16 %v1017, %v1016
  %v1062 = vpack.c.bf16 %v1019, %v1018
  %v1063 = vpack.c.bf16 %v1021, %v1020
  %v1064 = vpack.c.bf16 %v1023, %v1022
  %v1065 = vpack.c.bf16 %v1025, %v1024
  %v1066 = vpack.c.bf16 %v1027, %v1026
  %v1067 = vpack.c.bf16 %v1029, %v1028
  %v1068 = vpack.c.bf16 %v1031, %v1030
  %v1069 = vpack.c.bf16 %v1033, %v1032
  %v1070 = vpack.c.bf16 %v1035, %v1034
  %v1071 = vpack.c.bf16 %v1037, %v1036
  %v1072 = vpack.c.bf16 %v1039, %v1038
  %v1073 = vpack.c.bf16 %v1041, %v1040
  %v1106 = vunpack.c.l.b16 %v1042
  %v1107 = vunpack.c.h.b16 %v1042
  %v1108 = vunpack.c.l.b16 %v1043
  %v1109 = vunpack.c.h.b16 %v1043
  %v1110 = vunpack.c.l.b16 %v1044
  %v1111 = vunpack.c.h.b16 %v1044
  %v1112 = vunpack.c.l.b16 %v1045
  %v1113 = vunpack.c.h.b16 %v1045
  %v1114 = vunpack.c.l.b16 %v1046
  %v1115 = vunpack.c.h.b16 %v1046
  %v1116 = vunpack.c.l.b16 %v1047
  %v1117 = vunpack.c.h.b16 %v1047
  %v1118 = vunpack.c.l.b16 %v1048
  %v1119 = vunpack.c.h.b16 %v1048
  %v1120 = vunpack.c.l.b16 %v1049
  %v1121 = vunpack.c.h.b16 %v1049
  %v1122 = vunpack.c.l.b16 %v1050
  %v1123 = vunpack.c.h.b16 %v1050
  %v1124 = vunpack.c.l.b16 %v1051
  %v1125 = vunpack.c.h.b16 %v1051
  %v1126 = vunpack.c.l.b16 %v1052
  %v1127 = vunpack.c.h.b16 %v1052
  %v1128 = vunpack.c.l.b16 %v1053
  %v1129 = vunpack.c.h.b16 %v1053
  %v1130 = vunpack.c.l.b16 %v1054
  %v1131 = vunpack.c.h.b16 %v1054
  %v1132 = vunpack.c.l.b16 %v1055
  %v1133 = vunpack.c.h.b16 %v1055
  %v1134 = vunpack.c.l.b16 %v1056
  %v1135 = vunpack.c.h.b16 %v1056
  %v1136 = vunpack.c.l.b16 %v1057
  %v1137 = vunpack.c.h.b16 %v1057
  %v1138 = vunpack.c.l.b16 %v1058
  %v1139 = vunpack.c.h.b16 %v1058
  %v1140 = vunpack.c.l.b16 %v1059
  %v1141 = vunpack.c.h.b16 %v1059
  %v1142 = vunpack.c.l.b16 %v1060
  %v1143 = vunpack.c.h.b16 %v1060
  %v1144 = vunpack.c.l.b16 %v1061
  %v1145 = vunpack.c.h.b16 %v1061
  %v1146 = vunpack.c.l.b16 %v1062
  %v1147 = vunpack.c.h.b16 %v1062
  %v1148 = vunpack.c.l.b16 %v1063
  %v1149 = vunpack.c.h.b16 %v1063
  %v1150 = vunpack.c.l.b16 %v1064
  %v1151 = vunpack.c.h.b16 %v1064
  %v1152 = vunpack.c.l.b16 %v1065
  %v1153 = vunpack.c.h.b16 %v1065
  %v1154 = vunpack.c.l.b16 %v1066
  %v1155 = vunpack.c.h.b16 %v1066
  %v1156 = vunpack.c.l.b16 %v1067
  %v1157 = vunpack.c.h.b16 %v1067
  %v1158 = vunpack.c.l.b16 %v1068
  %v1159 = vunpack.c.h.b16 %v1068
  %v1160 = vunpack.c.l.b16 %v1069
  %v1161 = vunpack.c.h.b16 %v1069
  %v1162 = vunpack.c.l.b16 %v1070
  %v1163 = vunpack.c.h.b16 %v1070
  %v1164 = vunpack.c.l.b16 %v1071
  %v1165 = vunpack.c.h.b16 %v1071
  %v1166 = vunpack.c.l.b16 %v1072
  %v1167 = vunpack.c.h.b16 %v1072
  %v1168 = vunpack.c.l.b16 %v1073
  %v1169 = vunpack.c.h.b16 %v1073
  %v1170 = vpack.c.b16 %v1106, %v1106
  %v1171 = vpack.c.b16 %v1107, %v1107
  %v1172 = vpack.c.b16 %v1108, %v1108
  %v1173 = vpack.c.b16 %v1109, %v1109
  %v1174 = vpack.c.b16 %v1110, %v1110
  %v1175 = vpack.c.b16 %v1111, %v1111
  %v1176 = vpack.c.b16 %v1112, %v1112
  %v1177 = vpack.c.b16 %v1113, %v1113
  %v1178 = vpack.c.b16 %v1114, %v1114
  %v1179 = vpack.c.b16 %v1115, %v1115
  %v1180 = vpack.c.b16 %v1116, %v1116
  %v1181 = vpack.c.b16 %v1117, %v1117
  %v1182 = vpack.c.b16 %v1118, %v1118
  %v1183 = vpack.c.b16 %v1119, %v1119
  %v1184 = vpack.c.b16 %v1120, %v1120
  %v1185 = vpack.c.b16 %v1121, %v1121
  %v1186 = vpack.c.b16 %v1122, %v1122
  %v1187 = vpack.c.b16 %v1123, %v1123
  %v1188 = vpack.c.b16 %v1124, %v1124
  %v1189 = vpack.c.b16 %v1125, %v1125
  %v1190 = vpack.c.b16 %v1126, %v1126
  %v1191 = vpack.c.b16 %v1127, %v1127
  %v1192 = vpack.c.b16 %v1128, %v1128
  %v1193 = vpack.c.b16 %v1129, %v1129
  %v1194 = vpack.c.b16 %v1130, %v1130
  %v1195 = vpack.c.b16 %v1131, %v1131
  %v1196 = vpack.c.b16 %v1132, %v1132
  %v1197 = vpack.c.b16 %v1133, %v1133
  %v1198 = vpack.c.b16 %v1134, %v1134
  %v1199 = vpack.c.b16 %v1135, %v1135
  %v1200 = vpack.c.b16 %v1136, %v1136
  %v1201 = vpack.c.b16 %v1137, %v1137
  %v1202 = vpack.c.b16 %v1138, %v1138
  %v1203 = vpack.c.b16 %v1139, %v1139
  %v1204 = vpack.c.b16 %v1140, %v1140
  %v1205 = vpack.c.b16 %v1141, %v1141
  %v1206 = vpack.c.b16 %v1142, %v1142
  %v1207 = vpack.c.b16 %v1143, %v1143
  %v1208 = vpack.c.b16 %v1144, %v1144
  %v1209 = vpack.c.b16 %v1145, %v1145
  %v1210 = vpack.c.b16 %v1146, %v1146
  %v1211 = vpack.c.b16 %v1147, %v1147
  %v1212 = vpack.c.b16 %v1148, %v1148
  %v1213 = vpack.c.b16 %v1149, %v1149
  %v1214 = vpack.c.b16 %v1150, %v1150
  %v1215 = vpack.c.b16 %v1151, %v1151
  %v1216 = vpack.c.b16 %v1152, %v1152
  %v1217 = vpack.c.b16 %v1153, %v1153
  %v1218 = vpack.c.b16 %v1154, %v1154
  %v1219 = vpack.c.b16 %v1155, %v1155
  %v1220 = vpack.c.b16 %v1156, %v1156
  %v1221 = vpack.c.b16 %v1157, %v1157
  %v1222 = vpack.c.b16 %v1158, %v1158
  %v1223 = vpack.c.b16 %v1159, %v1159
  %v1224 = vpack.c.b16 %v1160, %v1160
  %v1225 = vpack.c.b16 %v1161, %v1161
  %v1226 = vpack.c.b16 %v1162, %v1162
  %v1227 = vpack.c.b16 %v1163, %v1163
  %v1228 = vpack.c.b16 %v1164, %v1164
  %v1229 = vpack.c.b16 %v1165, %v1165
  %v1230 = vpack.c.b16 %v1166, %v1166
  %v1231 = vpack.c.b16 %v1167, %v1167
  %v1232 = vpack.c.b16 %v1168, %v1168
  %v1233 = vpack.c.b16 %v1169, %v1169
  %1298 = vst [vmem:[%s4] sm:$0xf] %v1170
  %1299 = vst [vmem:[%s4 + $0x4] sm:$0xf] %v1171
  %1300 = vst [vmem:[%s4 + $0x8] sm:$0xf] %v1172
  %1301 = vst [vmem:[%s4 + $0xc] sm:$0xf] %v1173
  %1302 = vst [vmem:[%s4 + $0x10] sm:$0xf] %v1174
  %1303 = vst [vmem:[%s4 + $0x14] sm:$0xf] %v1175
  %1304 = vst [vmem:[%s4 + $0x18] sm:$0xf] %v1176
  %1305 = vst [vmem:[%s4 + $0x1c] sm:$0xf] %v1177
  %1306 = vst [vmem:[%s4 + $0x20] sm:$0xf] %v1178
  %1307 = vst [vmem:[%s4 + $0x24] sm:$0xf] %v1179
  %1308 = vst [vmem:[%s4 + $0x28] sm:$0xf] %v1180
  %1309 = vst [vmem:[%s4 + $0x2c] sm:$0xf] %v1181
  %1310 = vst [vmem:[%s4 + $0x30] sm:$0xf] %v1182
  %1311 = vst [vmem:[%s4 + $0x34] sm:$0xf] %v1183
  %1312 = vst [vmem:[%s4 + $0x38] sm:$0xf] %v1184
  %1313 = vst [vmem:[%s4 + $0x3c] sm:$0xf] %v1185
  %1314 = vst [vmem:[%s4 + $0x40] sm:$0xf] %v1186
  %1315 = vst [vmem:[%s4 + $0x44] sm:$0xf] %v1187
  %1316 = vst [vmem:[%s4 + $0x48] sm:$0xf] %v1188
  %1317 = vst [vmem:[%s4 + $0x4c] sm:$0xf] %v1189
  %1318 = vst [vmem:[%s4 + $0x50] sm:$0xf] %v1190
  %1319 = vst [vmem:[%s4 + $0x54] sm:$0xf] %v1191
  %1320 = vst [vmem:[%s4 + $0x58] sm:$0xf] %v1192
  %1321 = vst [vmem:[%s4 + $0x5c] sm:$0xf] %v1193
  %1322 = vst [vmem:[%s4 + $0x60] sm:$0xf] %v1194
  %1323 = vst [vmem:[%s4 + $0x64] sm:$0xf] %v1195
  %1324 = vst [vmem:[%s4 + $0x68] sm:$0xf] %v1196
  %1325 = vst [vmem:[%s4 + $0x6c] sm:$0xf] %v1197
  %1326 = vst [vmem:[%s4 + $0x70] sm:$0xf] %v1198
  %1327 = vst [vmem:[%s4 + $0x74] sm:$0xf] %v1199
  %1328 = vst [vmem:[%s4 + $0x78] sm:$0xf] %v1200
  %1329 = vst [vmem:[%s4 + $0x7c] sm:$0xf] %v1201
  %1330 = vst [vmem:[%s4 + $0x80] sm:$0xf] %v1202
  %1331 = vst [vmem:[%s4 + $0x84] sm:$0xf] %v1203
  %1332 = vst [vmem:[%s4 + $0x88] sm:$0xf] %v1204
  %1333 = vst [vmem:[%s4 + $0x8c] sm:$0xf] %v1205
  %1334 = vst [vmem:[%s4 + $0x90] sm:$0xf] %v1206
  %1335 = vst [vmem:[%s4 + $0x94] sm:$0xf] %v1207
  %1336 = vst [vmem:[%s4 + $0x98] sm:$0xf] %v1208
  %1337 = vst [vmem:[%s4 + $0x9c] sm:$0xf] %v1209
  %1338 = vst [vmem:[%s4 + $0xa0] sm:$0xf] %v1210
  %1339 = vst [vmem:[%s4 + $0xa4] sm:$0xf] %v1211
  %1340 = vst [vmem:[%s4 + $0xa8] sm:$0xf] %v1212
  %1341 = vst [vmem:[%s4 + $0xac] sm:$0xf] %v1213
  %1342 = vst [vmem:[%s4 + $0xb0] sm:$0xf] %v1214
  %1343 = vst [vmem:[%s4 + $0xb4] sm:$0xf] %v1215
  %1344 = vst [vmem:[%s4 + $0xb8] sm:$0xf] %v1216
  %1345 = vst [vmem:[%s4 + $0xbc] sm:$0xf] %v1217
  %1346 = vst [vmem:[%s4 + $0xc0] sm:$0xf] %v1218
  %1347 = vst [vmem:[%s4 + $0xc4] sm:$0xf] %v1219
  %1348 = vst [vmem:[%s4 + $0xc8] sm:$0xf] %v1220
  %1349 = vst [vmem:[%s4 + $0xcc] sm:$0xf] %v1221
  %1350 = vst [vmem:[%s4 + $0xd0] sm:$0xf] %v1222
  %1351 = vst [vmem:[%s4 + $0xd4] sm:$0xf] %v1223
  %1352 = vst [vmem:[%s4 + $0xd8] sm:$0xf] %v1224
  %1353 = vst [vmem:[%s4 + $0xdc] sm:$0xf] %v1225
  %1354 = vst [vmem:[%s4 + $0xe0] sm:$0xf] %v1226
  %1355 = vst [vmem:[%s4 + $0xe4] sm:$0xf] %v1227
  %1356 = vst [vmem:[%s4 + $0xe8] sm:$0xf] %v1228
  %1357 = vst [vmem:[%s4 + $0xec] sm:$0xf] %v1229
  %1358 = vst [vmem:[%s4 + $0xf0] sm:$0xf] %v1230
  %1359 = vst [vmem:[%s4 + $0xf4] sm:$0xf] %v1231
  %1360 = vst [vmem:[%s4 + $0xf8] sm:$0xf] %v1232
  %1361 = vst [vmem:[%s4 + $0xfc] sm:$0xf] %v1233
  // Predicated region
  $region18: #{mixed4a_forward.5} parent=0 // pred_check
    _
  $region19: #{mixed4a_forward.5} parent=0 // pred_check_branch
    %1363 = sbr.rel (0) target = $region21
  $region20: #{mixed4a_forward.5} parent=0 // pred_region
    _
  $region21: #{mixed4a_forward.5} parent=0 // pred_fallthru
    _
  // Predicated region
  $region22: #{mixed4a_forward.5} parent=0 // pred_check
    _
  $region23: #{mixed4a_forward.5} parent=0 // pred_check_branch
    %1365 = sbr.rel (0) target = $region25
  $region24: #{mixed4a_forward.5} parent=0 // pred_region
    _
  $region25: #{mixed4a_forward.5} parent=0 // pred_fallthru
    _

// kernel: mixed4a_forward.7
$region0: #{mixed4a_forward.7}
  #allocation0 [shape = 'u32[]', space=smem, size = 0x4, offset = 0x4, fixed_abs, tag = 'smem constant byte address 0x4 - core index']
  #allocation1 [shape = 'u32[144,128]{1,0:T(1,128)}', space=vmem, size = 0x12000, scoped, tag = 'internal scratch']
  #allocation2 [shape = 'f32[112,64]{1,0:T(8,128)}', space=vmem, size = 0xe000, scoped, tag = 'scratch operand']
  #allocation3 [shape = 'bf16[112,448]{1,0:T(16,128)(2,1)}', space=vmem, size = 0x1c000, scoped, tag = 'scratch operand']
  %s0 = inlined_call_operand.vmem [shape: bf16[2,4,118,64], index: 0, kind: input, shape index: {}]
  %s1 = inlined_call_operand.vmem [shape: bf16[1,448,64], index: 1, kind: input, shape index: {}]
  %s2 = inlined_call_operand.vmem [shape: f32[1,64], index: 2, kind: input, shape index: {}]
  %s3 = inlined_call_operand.vmem [shape: f32[1,64], index: 3, kind: input, shape index: {}]
  %s4 = inlined_call_operand.vmem [shape: bf16[2,4,112,64], index: 4, kind: output, shape index: {}]
  %s5 = sld [smem:[#allocation0]]
  $region57: #{mixed4a_forward.7} parent=0
    _
  %s7 = ssub.s32 1, %s5
  %s8 = scalar_select 0, %s7, %s5
  loop: start=0, step=1, limit=10
  $region2: #{mixed4a_forward.7} parent=0 // loop_pre_header
    _
  $region3: #{mixed4a_forward.7} parent=0 // loop_header
    %s10 = sphi 0, %s14
    %p11 = scmp.ge.s32.totalorder %s10, 10
    %s17 = sphi 0, %s36
    %s18 = sphi 0, %s32
    %s19 = sphi 0, %s28
    %s20 = sphi 0, %s17
    %s21 = sphi 0, %s18
    %s22 = sphi 0, %s19
    %s23 = sphi 0, %s20
    %s24 = sphi 0, %s21
    %s25 = sphi 0, %s22
    %s43 = sphi 0, %s45
    %s46 = sphi 0, %s43
    %s47 = sphi 0, %s46
    %s63 = sphi 0, %s47
    %s69 = sphi 0, %s71
    %s72 = sphi 0, %s69
    %s73 = sphi 0, %s72
    %s89 = sphi 0, %s73
    %s93 = sphi 0, %s93
    %s95 = sphi 0, %s93
    %s96 = sphi 0, %s95
    %s110 = sphi 0, %s96
    %s114 = sphi 0, %s114
    %s116 = sphi 0, %s114
    %s117 = sphi 0, %s116
    %s131 = sphi 0, %s117
    %s139 = sphi 0, %s141
    %s142 = sphi 0, %s139
    %s143 = sphi 0, %s142
    %s159 = sphi 0, %s143
  $region4: #{mixed4a_forward.7} parent=0 // loop_header_branch
    %13 = sbr.rel (%p11) target = $region8
  $region5: #{mixed4a_forward.7} parent=0 // loop_body
    %s15 = ssub.s32 %s10, 1
    %s16 = ssub.s32 %s10, 2
    %s26 = sadd.s32 1, %s19
    %p27 = scmp.ge.s32.totalorder %s26, 1
    %s28 = scalar_select %p27, 0, %s26
    %s29 = sadd.s32 1, %s18
    %s30 = scalar_select %p27, %s29, %s18
    %p31 = scmp.ge.s32.totalorder %s30, 4
    %s32 = scalar_select %p31, 0, %s30
    %s33 = sadd.s32 1, %s17
    %s34 = scalar_select %p31, %s33, %s17
    %p35 = scmp.ge.s32.totalorder %s34, 2
    %s36 = scalar_select %p35, 0, %s34
    %s37 = sadd.s32 %s18, %s19
    %s38 = sadd.s32 %s32, %s28
    %s39 = ssub.s32 %s17, %s36
    %s40 = ssub.s32 %s37, %s38
    %s41 = sor.u32 %s39, %s40
    %p42 = scmp.eq.s32.totalorder %s41, 0
    %s44 = sadd.s32 %s43, 1
    %s45 = scalar_select %p42, %s43, %s44
    %p48 = pneg %p42
    %p49 = scmp.eq.s32.totalorder %s10, 7
    %p50 = por %p48, %p49
    %p51 = scmp.ne.s32.totalorder %s43, %s46
    %p52 = scmp.eq.s32.totalorder %s10, 0
    %p53 = por %p51, %p52
    %p54 = scmp.ne.s32.totalorder %s43, %s46
    %p55 = scmp.eq.s32.totalorder %s15, 7
    %p56 = por %p54, %p55
    %p57 = scmp.ne.s32.totalorder %s46, %s47
    %p58 = scmp.eq.s32.totalorder %s15, 0
    %p59 = por %p57, %p58
    %p60 = scmp.ne.s32.totalorder %s46, %s47
    %p61 = scmp.eq.s32.totalorder %s16, 7
    %p62 = por %p60, %p61
    %p64 = scmp.ne.s32.totalorder %s47, %s63
    %p65 = scmp.eq.s32.totalorder %s16, 0
    %p66 = por %p64, %p65
    %s67 = ssub.s32 %s19, %s28
    %p68 = scmp.eq.s32.totalorder %s67, 0
    %s70 = sadd.s32 %s69, 1
    %s71 = scalar_select %p68, %s69, %s70
    %p74 = pneg %p68
    %p75 = scmp.eq.s32.totalorder %s10, 7
    %p76 = por %p74, %p75
    %p77 = scmp.ne.s32.totalorder %s69, %s72
    %p78 = scmp.eq.s32.totalorder %s10, 0
    %p79 = por %p77, %p78
    %p80 = scmp.ne.s32.totalorder %s69, %s72
    %p81 = scmp.eq.s32.totalorder %s15, 7
    %p82 = por %p80, %p81
    %p83 = scmp.ne.s32.totalorder %s72, %s73
    %p84 = scmp.eq.s32.totalorder %s15, 0
    %p85 = por %p83, %p84
    %p86 = scmp.ne.s32.totalorder %s72, %s73
    %p87 = scmp.eq.s32.totalorder %s16, 7
    %p88 = por %p86, %p87
    %p90 = scmp.ne.s32.totalorder %s73, %s89
    %p91 = scmp.eq.s32.totalorder %s16, 0
    %p92 = por %p90, %p91
    %s94 = sadd.s32 %s93, 1
    %p97 = scmp.eq.s32.totalorder %s10, 7
    %p98 = scmp.ne.s32.totalorder %s93, %s95
    %p99 = scmp.eq.s32.totalorder %s10, 0
    %p100 = por %p98, %p99
    %p101 = scmp.ne.s32.totalorder %s93, %s95
    %p102 = scmp.eq.s32.totalorder %s15, 7
    %p103 = por %p101, %p102
    %p104 = scmp.ne.s32.totalorder %s95, %s96
    %p105 = scmp.eq.s32.totalorder %s15, 0
    %p106 = por %p104, %p105
    %p107 = scmp.ne.s32.totalorder %s95, %s96
    %p108 = scmp.eq.s32.totalorder %s16, 7
    %p109 = por %p107, %p108
    %p111 = scmp.ne.s32.totalorder %s96, %s110
    %p112 = scmp.eq.s32.totalorder %s16, 0
    %p113 = por %p111, %p112
    %s115 = sadd.s32 %s114, 1
    %p118 = scmp.eq.s32.totalorder %s10, 7
    %p119 = scmp.ne.s32.totalorder %s114, %s116
    %p120 = scmp.eq.s32.totalorder %s10, 0
    %p121 = por %p119, %p120
    %p122 = scmp.ne.s32.totalorder %s114, %s116
    %p123 = scmp.eq.s32.totalorder %s15, 7
    %p124 = por %p122, %p123
    %p125 = scmp.ne.s32.totalorder %s116, %s117
    %p126 = scmp.eq.s32.totalorder %s15, 0
    %p127 = por %p125, %p126
    %p128 = scmp.ne.s32.totalorder %s116, %s117
    %p129 = scmp.eq.s32.totalorder %s16, 7
    %p130 = por %p128, %p129
    %p132 = scmp.ne.s32.totalorder %s117, %s131
    %p133 = scmp.eq.s32.totalorder %s16, 0
    %p134 = por %p132, %p133
    %s135 = ssub.s32 %s17, %s36
    %s136 = ssub.s32 %s18, %s32
    %s137 = sor.u32 %s135, %s136
    %p138 = scmp.eq.s32.totalorder %s137, 0
    %s140 = sadd.s32 %s139, 1
    %s141 = scalar_select %p138, %s139, %s140
    %p144 = pneg %p138
    %p145 = scmp.eq.s32.totalorder %s10, 7
    %p146 = por %p144, %p145
    %p147 = scmp.ne.s32.totalorder %s139, %s142
    %p148 = scmp.eq.s32.totalorder %s10, 0
    %p149 = por %p147, %p148
    %p150 = scmp.ne.s32.totalorder %s139, %s142
    %p151 = scmp.eq.s32.totalorder %s15, 7
    %p152 = por %p150, %p151
    %p153 = scmp.ne.s32.totalorder %s142, %s143
    %p154 = scmp.eq.s32.totalorder %s15, 0
    %p155 = por %p153, %p154
    %p156 = scmp.ne.s32.totalorder %s142, %s143
    %p157 = scmp.eq.s32.totalorder %s16, 7
    %p158 = por %p156, %p157
    %p160 = scmp.ne.s32.totalorder %s143, %s159
    %p161 = scmp.eq.s32.totalorder %s16, 0
    %p162 = por %p160, %p161
    %p163 = scmp.le.s32.totalorder 1, %s10
    %p164 = scmp.lt.s32.totalorder %s10, 9
    %p165 = pnand %p163, %p164
    %p166 = pneg %p165
    // Predicated region
    $region9: #{mixed4a_forward.7} parent=5 // pred_check
      _
    $region10: #{mixed4a_forward.7} parent=5 // pred_check_branch
      %168 = sbr.rel (%p165) target = $region12
    $region11: #{mixed4a_forward.7} parent=5 // pred_region
      %s169 = ssub.s32 %s10, 1
      // Predicated region
      $region13: #{mixed4a_forward.7} parent=11 // pred_check
        %p170 = pneg %p85
      $region14: #{mixed4a_forward.7} parent=11 // pred_check_branch
        %172 = sbr.rel (%p170) target = $region16
      $region15: #{mixed4a_forward.7} parent=11 // pred_region
        %p173 = scmp.lt.s32.totalorder %s22, 0
        %s174 = scalar_select %p173, %s22, 0
        %s175 = smul.addr %s174, 56
        %s176 = smul.addr %s175, 4
        %s177 = scalar_lea.vmem %s1, %s176
      $region16: #{mixed4a_forward.7} parent=11 // pred_fallthru
        _
      // Predicated region
      $region17: #{mixed4a_forward.7} parent=11 // pred_check
        %p178 = pneg %p106
      $region18: #{mixed4a_forward.7} parent=11 // pred_check_branch
        %180 = sbr.rel (%p178) target = $region20
      $region19: #{mixed4a_forward.7} parent=11 // pred_region
        _
      $region20: #{mixed4a_forward.7} parent=11 // pred_fallthru
        _
      // Predicated region
      $region21: #{mixed4a_forward.7} parent=11 // pred_check
        %p181 = pneg %p127
      $region22: #{mixed4a_forward.7} parent=11 // pred_check_branch
        %183 = sbr.rel (%p181) target = $region24
      $region23: #{mixed4a_forward.7} parent=11 // pred_region
        _
      $region24: #{mixed4a_forward.7} parent=11 // pred_fallthru
        _
    $region12: #{mixed4a_forward.7} parent=5 // pred_fallthru
      _
    %p184 = scmp.lt.s32.totalorder %s10, 8
    // Predicated region
    $region25: #{mixed4a_forward.7} parent=5 // pred_check
      %p185 = pneg %p184
    $region26: #{mixed4a_forward.7} parent=5 // pred_check_branch
      %187 = sbr.rel (%p185) target = $region28
    $region27: #{mixed4a_forward.7} parent=5 // pred_region
      // Predicated region
      $region29: #{mixed4a_forward.7} parent=27 // pred_check
        %p188 = pneg %p53
      $region30: #{mixed4a_forward.7} parent=27 // pred_check_branch
        %190 = sbr.rel (%p188) target = $region32
      $region31: #{mixed4a_forward.7} parent=27 // pred_region
        %s191 = sadd.s32 %s18, %s19
        %p192 = scmp.lt.s32.totalorder %s17, 1
        %s193 = scalar_select %p192, %s17, 1
        %p194 = scmp.lt.s32.totalorder %s191, 3
        %s195 = scalar_select %p194, %s191, 3
        %s196 = smul.addr %s195, 15
        %s197 = smul.addr %s193, 60
        %s198 = sadd.s32 %s196, %s197
        %s199 = smul.addr %s198, 4
        %s200 = scalar_lea.vmem %s0, %s199
        %s201 = sadd.s32 %s18, %s19
      $region32: #{mixed4a_forward.7} parent=27 // pred_fallthru
        _
    $region28: #{mixed4a_forward.7} parent=5 // pred_fallthru
      _
    %p202 = scmp.le.s32.totalorder 1, %s10
    %p203 = scmp.lt.s32.totalorder %s10, 9
    %p204 = pnand %p202, %p203
    %p205 = pneg %p204
    // Predicated region
    $region33: #{mixed4a_forward.7} parent=5 // pred_check
      _
    $region34: #{mixed4a_forward.7} parent=5 // pred_check_branch
      %207 = sbr.rel (%p204) target = $region36
    $region35: #{mixed4a_forward.7} parent=5 // pred_region
      %s208 = ssub.s32 %s10, 1
      %s209 = sadd.s32 %s21, %s22
      %p210 = scmp.lt.s32.totalorder %s20, 1
      %s211 = scalar_select %p210, %s20, 1
      %p212 = scmp.lt.s32.totalorder %s209, 3
      %s213 = scalar_select %p212, %s209, 3
      %s214 = smul.addr %s213, 15
      %s215 = smul.addr %s211, 60
      %s216 = sadd.s32 %s214, %s215
      %s217 = smul.addr %s216, 4
      %s218 = scalar_lea.vmem %s0, %s217
      %p219 = pneg %p59
      %p220 = pneg %p56
      %p221 = scmp.lt.s32.totalorder %s22, 0
      %s222 = scalar_select %p221, %s22, 0
      %s223 = smul.addr %s222, 56
      %s224 = smul.addr %s223, 4
      %s225 = scalar_lea.vmem %s1, %s224
      %p226 = pneg %p85
      %p227 = pneg %p82
      %p228 = pneg %p106
      %p229 = pneg %p103
      %p230 = pneg %p127
      %p231 = pneg %p124
      %p232 = pneg %p155
      %p233 = pneg %p152
      %p234 = scmp.lt.s32.totalorder %s20, 1
      %s235 = scalar_select %p234, %s20, 1
      %p236 = scmp.lt.s32.totalorder %s21, 3
      %s237 = scalar_select %p236, %s21, 3
      %s238 = smul.addr %s237, 14
      %s239 = smul.addr %s235, 56
      %s240 = sadd.s32 %s238, %s239
      %s241 = smul.addr %s240, 4
      %s242 = scalar_lea.vmem %s4, %s241
      %s243 = sadd.s32 %s21, %s22
      %p244 = scmp.lt.s32.totalorder %s20, 1
      %s245 = scalar_select %p244, %s20, 1
      %p246 = scmp.lt.s32.totalorder %s243, 3
      %s247 = scalar_select %p246, %s243, 3
      %s248 = smul.addr %s247, 15
      %s249 = smul.addr %s245, 60
      %s250 = sadd.s32 %s248, %s249
      %s251 = smul.addr %s250, 4
      %s252 = scalar_lea.vmem %s0, %s251
      %s253 = sadd.s32 %s21, %s22
      %p254 = scmp.lt.s32.totalorder %s22, 0
      %s255 = scalar_select %p254, %s22, 0
      %s256 = smul.addr %s255, 56
      %s257 = smul.addr %s256, 4
      %s258 = scalar_lea.vmem %s1, %s257
      %p259 = scmp.lt.s32.totalorder %s20, 1
      %s260 = scalar_select %p259, %s20, 1
      %p261 = scmp.lt.s32.totalorder %s21, 3
      %s262 = scalar_select %p261, %s21, 3
      %s263 = smul.addr %s262, 14
      %s264 = smul.addr %s260, 56
      %s265 = sadd.s32 %s263, %s264
      %s266 = smul.addr %s265, 4
      %s267 = scalar_lea.vmem %s4, %s266
      %p269 = scmp.eq.s32.totalorder %s22, 0
      // Predicated region
      $region37: #{mixed4a_forward.7} parent=35 // pred_check
        %p270 = pneg %p269
      $region38: #{mixed4a_forward.7} parent=35 // pred_check_branch
        %272 = sbr.rel (%p270) target = $region40
      $region39: #{mixed4a_forward.7} parent=35 // pred_region
        %vm273 = vcmask 523264
        %274 = vst.msk [vmem:[#allocation2] sm:$0xff] %vm273, 0.0
        %275 = vst.msk [vmem:[#allocation2 + $0x8] sm:$0xff] %vm273, 0.0
        %276 = vst.msk [vmem:[#allocation2 + $0x10] sm:$0xff] %vm273, 0.0
        %277 = vst.msk [vmem:[#allocation2 + $0x18] sm:$0xff] %vm273, 0.0
        %278 = vst.msk [vmem:[#allocation2 + $0x20] sm:$0xff] %vm273, 0.0
        %279 = vst.msk [vmem:[#allocation2 + $0x28] sm:$0xff] %vm273, 0.0
        %280 = vst.msk [vmem:[#allocation2 + $0x30] sm:$0xff] %vm273, 0.0
        %281 = vst.msk [vmem:[#allocation2 + $0x38] sm:$0xff] %vm273, 0.0
        %282 = vst.msk [vmem:[#allocation2 + $0x40] sm:$0xff] %vm273, 0.0
        %283 = vst.msk [vmem:[#allocation2 + $0x48] sm:$0xff] %vm273, 0.0
        %284 = vst.msk [vmem:[#allocation2 + $0x50] sm:$0xff] %vm273, 0.0
        %285 = vst.msk [vmem:[#allocation2 + $0x58] sm:$0xff] %vm273, 0.0
        %286 = vst.msk [vmem:[#allocation2 + $0x60] sm:$0xff] %vm273, 0.0
        %287 = vst.msk [vmem:[#allocation2 + $0x68] sm:$0xff] %vm273, 0.0
      $region40: #{mixed4a_forward.7} parent=35 // pred_fallthru
        _
      %v288 = vld [vmem:[%s252] sm:$0xf]
      %v289 = vld [vmem:[%s252 + $0x4] sm:$0xf]
      %v290 = vld [vmem:[%s252 + $0x8] sm:$0xf]
      %v291 = vld [vmem:[%s252 + $0xc] sm:$0xf]
      %v292 = vld [vmem:[%s252 + $0x10] sm:$0xf]
      %v293 = vld [vmem:[%s252 + $0x14] sm:$0xf]
      %v294 = vld [vmem:[%s252 + $0x18] sm:$0xf]
      %v295 = vld [vmem:[%s252 + $0x1c] sm:$0xf]
      %v296 = vld [vmem:[%s252 + $0x20] sm:$0xf]
      %v297 = vld [vmem:[%s252 + $0x24] sm:$0xf]
      %v298 = vld [vmem:[%s252 + $0x28] sm:$0xf]
      %v299 = vld [vmem:[%s252 + $0x2c] sm:$0xf]
      %v300 = vld [vmem:[%s252 + $0x30] sm:$0xf]
      %v301 = vld [vmem:[%s252 + $0x34] sm:$0xf]
      %v316 = vunpack.c.l.b16 %v288
      %v317 = vunpack.c.l.b16 %v289
      %v318 = vunpack.c.l.b16 %v290
      %v319 = vunpack.c.l.b16 %v291
      %v320 = vunpack.c.l.b16 %v292
      %v321 = vunpack.c.l.b16 %v293
      %v322 = vunpack.c.l.b16 %v294
      %v323 = vunpack.c.l.b16 %v295
      %v324 = vunpack.c.l.b16 %v296
      %v325 = vunpack.c.l.b16 %v297
      %v326 = vunpack.c.l.b16 %v298
      %v327 = vunpack.c.l.b16 %v299
      %v328 = vunpack.c.l.b16 %v300
      %v329 = vunpack.c.l.b16 %v301
      %v330 = vpack.c.b16 %v317, %v316
      %v331 = vpack.c.b16 %v319, %v318
      %v332 = vpack.c.b16 %v321, %v320
      %v333 = vpack.c.b16 %v323, %v322
      %v334 = vpack.c.b16 %v325, %v324
      %v335 = vpack.c.b16 %v327, %v326
      %v336 = vpack.c.b16 %v329, %v328
      %vm344 = vcmask 523264
      %345 = vst.msk [vmem:[#allocation3] sm:$0xff] %vm344, %v330
      %346 = vst.msk [vmem:[#allocation3 + $0x20] sm:$0xff] %vm344, %v331
      %347 = vst.msk [vmem:[#allocation3 + $0x40] sm:$0xff] %vm344, %v332
      %348 = vst.msk [vmem:[#allocation3 + $0x60] sm:$0xff] %vm344, %v333
      %349 = vst.msk [vmem:[#allocation3 + $0x80] sm:$0xff] %vm344, %v334
      %350 = vst.msk [vmem:[#allocation3 + $0xa0] sm:$0xff] %vm344, %v335
      %351 = vst.msk [vmem:[#allocation3 + $0xc0] sm:$0xff] %vm344, %v336
      %v352 = vld [vmem:[%s252] sm:$0xf]
      %v353 = vld [vmem:[%s252 + $0x4] sm:$0xf]
      %v354 = vld [vmem:[%s252 + $0x8] sm:$0xf]
      %v355 = vld [vmem:[%s252 + $0xc] sm:$0xf]
      %v356 = vld [vmem:[%s252 + $0x10] sm:$0xf]
      %v357 = vld [vmem:[%s252 + $0x14] sm:$0xf]
      %v358 = vld [vmem:[%s252 + $0x18] sm:$0xf]
      %v359 = vld [vmem:[%s252 + $0x1c] sm:$0xf]
      %v360 = vld [vmem:[%s252 + $0x20] sm:$0xf]
      %v361 = vld [vmem:[%s252 + $0x24] sm:$0xf]
      %v362 = vld [vmem:[%s252 + $0x28] sm:$0xf]
      %v363 = vld [vmem:[%s252 + $0x2c] sm:$0xf]
      %v364 = vld [vmem:[%s252 + $0x30] sm:$0xf]
      %v365 = vld [vmem:[%s252 + $0x34] sm:$0xf]
      %v366 = vld [vmem:[%s252 + $0x38] sm:$0x1]
      %v382 = vunpack.c.l.b16 %v352
      %v383 = vunpack.c.l.b16 %v353
      %v384 = vunpack.c.l.b16 %v354
      %v385 = vunpack.c.l.b16 %v355
      %v386 = vunpack.c.l.b16 %v356
      %v387 = vunpack.c.l.b16 %v357
      %v388 = vunpack.c.l.b16 %v358
      %v389 = vunpack.c.l.b16 %v359
      %v390 = vunpack.c.l.b16 %v360
      %v391 = vunpack.c.l.b16 %v361
      %v392 = vunpack.c.l.b16 %v362
      %v393 = vunpack.c.l.b16 %v363
      %v394 = vunpack.c.l.b16 %v364
      %v395 = vunpack.c.l.b16 %v365
      %v396 = vunpack.c.l.b16 %v366
      %v397 = vpack.c.b16 %v383, %v382
      %v398 = vpack.c.b16 %v385, %v384
      %v399 = vpack.c.b16 %v387, %v386
      %v400 = vpack.c.b16 %v389, %v388
      %v401 = vpack.c.b16 %v391, %v390
      %v402 = vpack.c.b16 %v393, %v392
      %v403 = vpack.c.b16 %v395, %v394
      %v404 = vpack.c.b16 %v396, %v396
      %vm405 = vsmask.f32 7424
      %v407 = vshrl.u32 %v397, 16
      %v409 = vshll.u32 %v397, 16
      %v411 = vrot.slane %v409, 1
      %v412 = vor.u32 %v407, %v411
      %v414 = vshll.u32 %v398, 16
      %v416 = vrot.slane %v414, 1
      %v417 = vsel %vm405, %v412, %v416
      %v418 = vshrl.u32 %v398, 16
      %v420 = vor.u32 %v418, %v416
      %v422 = vshll.u32 %v399, 16
      %v424 = vrot.slane %v422, 1
      %v425 = vsel %vm405, %v420, %v424
      %v426 = vshrl.u32 %v399, 16
      %v428 = vor.u32 %v426, %v424
      %v430 = vshll.u32 %v400, 16
      %v432 = vrot.slane %v430, 1
      %v433 = vsel %vm405, %v428, %v432
      %v434 = vshrl.u32 %v400, 16
      %v436 = vor.u32 %v434, %v432
      %v438 = vshll.u32 %v401, 16
      %v440 = vrot.slane %v438, 1
      %v441 = vsel %vm405, %v436, %v440
      %v442 = vshrl.u32 %v401, 16
      %v444 = vor.u32 %v442, %v440
      %v446 = vshll.u32 %v402, 16
      %v448 = vrot.slane %v446, 1
      %v449 = vsel %vm405, %v444, %v448
      %v450 = vshrl.u32 %v402, 16
      %v452 = vor.u32 %v450, %v448
      %v454 = vshll.u32 %v403, 16
      %v456 = vrot.slane %v454, 1
      %v457 = vsel %vm405, %v452, %v456
      %v458 = vshrl.u32 %v403, 16
      %v460 = vor.u32 %v458, %v456
      %v462 = vshll.u32 %v404, 16
      %v464 = vrot.slane %v462, 1
      %v465 = vsel %vm405, %v460, %v464
      %466 = vrot.lane.b32.xlu0 %v417, 64
      %v467 = vpop.permute.xlu0 %466
      %468 = vrot.lane.b32.xlu0 %v425, 64
      %v469 = vpop.permute.xlu0 %468
      %470 = vrot.lane.b32.xlu0 %v433, 64
      %v471 = vpop.permute.xlu0 %470
      %472 = vrot.lane.b32.xlu0 %v441, 64
      %v473 = vpop.permute.xlu0 %472
      %474 = vrot.lane.b32.xlu0 %v449, 64
      %v475 = vpop.permute.xlu0 %474
      %476 = vrot.lane.b32.xlu0 %v457, 64
      %v477 = vpop.permute.xlu0 %476
      %478 = vrot.lane.b32.xlu0 %v465, 64
      %v479 = vpop.permute.xlu0 %478
      %vm487 = vcmask 1048064
      %488 = vst.msk [vmem:[#allocation3] sm:$0xff] %vm487, %v467
      %489 = vst.msk [vmem:[#allocation3 + $0x20] sm:$0xff] %vm487, %v469
      %490 = vst.msk [vmem:[#allocation3 + $0x40] sm:$0xff] %vm487, %v471
      %491 = vst.msk [vmem:[#allocation3 + $0x60] sm:$0xff] %vm487, %v473
      %492 = vst.msk [vmem:[#allocation3 + $0x80] sm:$0xff] %vm487, %v475
      %493 = vst.msk [vmem:[#allocation3 + $0xa0] sm:$0xff] %vm487, %v477
      %494 = vst.msk [vmem:[#allocation3 + $0xc0] sm:$0xff] %vm487, %v479
      %v495 = vld [vmem:[%s252] sm:$0xe]
      %v496 = vld [vmem:[%s252 + $0x4] sm:$0xf]
      %v497 = vld [vmem:[%s252 + $0x8] sm:$0xf]
      %v498 = vld [vmem:[%s252 + $0xc] sm:$0xf]
      %v499 = vld [vmem:[%s252 + $0x10] sm:$0xf]
      %v500 = vld [vmem:[%s252 + $0x14] sm:$0xf]
      %v501 = vld [vmem:[%s252 + $0x18] sm:$0xf]
      %v502 = vld [vmem:[%s252 + $0x1c] sm:$0xf]
      %v503 = vld [vmem:[%s252 + $0x20] sm:$0xf]
      %v504 = vld [vmem:[%s252 + $0x24] sm:$0xf]
      %v505 = vld [vmem:[%s252 + $0x28] sm:$0xf]
      %v506 = vld [vmem:[%s252 + $0x2c] sm:$0xf]
      %v507 = vld [vmem:[%s252 + $0x30] sm:$0xf]
      %v508 = vld [vmem:[%s252 + $0x34] sm:$0xf]
      %v509 = vld [vmem:[%s252 + $0x38] sm:$0x1]
      %v525 = vunpack.c.l.b16 %v495
      %v526 = vunpack.c.l.b16 %v496
      %v527 = vunpack.c.l.b16 %v497
      %v528 = vunpack.c.l.b16 %v498
      %v529 = vunpack.c.l.b16 %v499
      %v530 = vunpack.c.l.b16 %v500
      %v531 = vunpack.c.l.b16 %v501
      %v532 = vunpack.c.l.b16 %v502
      %v533 = vunpack.c.l.b16 %v503
      %v534 = vunpack.c.l.b16 %v504
      %v535 = vunpack.c.l.b16 %v505
      %v536 = vunpack.c.l.b16 %v506
      %v537 = vunpack.c.l.b16 %v507
      %v538 = vunpack.c.l.b16 %v508
      %v539 = vunpack.c.l.b16 %v509
      %v540 = vpack.c.b16 %v526, %v525
      %v541 = vpack.c.b16 %v528, %v527
      %v542 = vpack.c.b16 %v530, %v529
      %v543 = vpack.c.b16 %v532, %v531
      %v544 = vpack.c.b16 %v534, %v533
      %v545 = vpack.c.b16 %v536, %v535
      %v546 = vpack.c.b16 %v538, %v537
      %v547 = vpack.c.b16 %v539, %v539
      %vm548 = vcmask 1046528
      %v549 = vrot.slane %v540, 1
      %v550 = vrot.slane %v541, 1
      %v551 = vsel %vm548, %v549, %v550
      %v552 = vrot.slane %v542, 1
      %v553 = vsel %vm548, %v550, %v552
      %v554 = vrot.slane %v543, 1
      %v555 = vsel %vm548, %v552, %v554
      %v556 = vrot.slane %v544, 1
      %v557 = vsel %vm548, %v554, %v556
      %v558 = vrot.slane %v545, 1
      %v559 = vsel %vm548, %v556, %v558
      %v560 = vrot.slane %v546, 1
      %v561 = vsel %vm548, %v558, %v560
      %v562 = vrot.slane %v547, 1
      %v563 = vsel %vm548, %v560, %v562
      %571 = vst.msk [vmem:[#allocation3 + $0x8] sm:$0xff] %vm344, %v551
      %572 = vst.msk [vmem:[#allocation3 + $0x28] sm:$0xff] %vm344, %v553
      %573 = vst.msk [vmem:[#allocation3 + $0x48] sm:$0xff] %vm344, %v555
      %574 = vst.msk [vmem:[#allocation3 + $0x68] sm:$0xff] %vm344, %v557
      %575 = vst.msk [vmem:[#allocation3 + $0x88] sm:$0xff] %vm344, %v559
      %576 = vst.msk [vmem:[#allocation3 + $0xa8] sm:$0xff] %vm344, %v561
      %577 = vst.msk [vmem:[#allocation3 + $0xc8] sm:$0xff] %vm344, %v563
      %v578 = vld [vmem:[%s252] sm:$0xe]
      %v579 = vld [vmem:[%s252 + $0x4] sm:$0xf]
      %v580 = vld [vmem:[%s252 + $0x8] sm:$0xf]
      %v581 = vld [vmem:[%s252 + $0xc] sm:$0xf]
      %v582 = vld [vmem:[%s252 + $0x10] sm:$0xf]
      %v583 = vld [vmem:[%s252 + $0x14] sm:$0xf]
      %v584 = vld [vmem:[%s252 + $0x18] sm:$0xf]
      %v585 = vld [vmem:[%s252 + $0x1c] sm:$0xf]
      %v586 = vld [vmem:[%s252 + $0x20] sm:$0xf]
      %v587 = vld [vmem:[%s252 + $0x24] sm:$0xf]
      %v588 = vld [vmem:[%s252 + $0x28] sm:$0xf]
      %v589 = vld [vmem:[%s252 + $0x2c] sm:$0xf]
      %v590 = vld [vmem:[%s252 + $0x30] sm:$0xf]
      %v591 = vld [vmem:[%s252 + $0x34] sm:$0xf]
      %v592 = vld [vmem:[%s252 + $0x38] sm:$0x3]
      %v608 = vunpack.c.l.b16 %v578
      %v609 = vunpack.c.l.b16 %v579
      %v610 = vunpack.c.l.b16 %v580
      %v611 = vunpack.c.l.b16 %v581
      %v612 = vunpack.c.l.b16 %v582
      %v613 = vunpack.c.l.b16 %v583
      %v614 = vunpack.c.l.b16 %v584
      %v615 = vunpack.c.l.b16 %v585
      %v616 = vunpack.c.l.b16 %v586
      %v617 = vunpack.c.l.b16 %v587
      %v618 = vunpack.c.l.b16 %v588
      %v619 = vunpack.c.l.b16 %v589
      %v620 = vunpack.c.l.b16 %v590
      %v621 = vunpack.c.l.b16 %v591
      %v622 = vunpack.c.l.b16 %v592
      %v623 = vpack.c.b16 %v609, %v608
      %v624 = vpack.c.b16 %v611, %v610
      %v625 = vpack.c.b16 %v613, %v612
      %v626 = vpack.c.b16 %v615, %v614
      %v627 = vpack.c.b16 %v617, %v616
      %v628 = vpack.c.b16 %v619, %v618
      %v629 = vpack.c.b16 %v621, %v620
      %v630 = vpack.c.b16 %v622, %v622
      %vm631 = vsmask.f32 6400
      %v633 = vshrl.u32 %v623, 16
      %v635 = vrot.slane %v633, 1
      %v636 = vshll.u32 %v623, 16
      %v638 = vrot.slane %v636, 2
      %v639 = vor.u32 %v635, %v638
      %v641 = vshrl.u32 %v624, 16
      %v643 = vrot.slane %v641, 1
      %v644 = vshll.u32 %v624, 16
      %v646 = vrot.slane %v644, 2
      %v647 = vor.u32 %v643, %v646
      %v648 = vsel %vm631, %v639, %v647
      %v650 = vshrl.u32 %v625, 16
      %v652 = vrot.slane %v650, 1
      %v653 = vshll.u32 %v625, 16
      %v655 = vrot.slane %v653, 2
      %v656 = vor.u32 %v652, %v655
      %v657 = vsel %vm631, %v647, %v656
      %v659 = vshrl.u32 %v626, 16
      %v661 = vrot.slane %v659, 1
      %v662 = vshll.u32 %v626, 16
      %v664 = vrot.slane %v662, 2
      %v665 = vor.u32 %v661, %v664
      %v666 = vsel %vm631, %v656, %v665
      %v668 = vshrl.u32 %v627, 16
      %v670 = vrot.slane %v668, 1
      %v671 = vshll.u32 %v627, 16
      %v673 = vrot.slane %v671, 2
      %v674 = vor.u32 %v670, %v673
      %v675 = vsel %vm631, %v665, %v674
      %v677 = vshrl.u32 %v628, 16
      %v679 = vrot.slane %v677, 1
      %v680 = vshll.u32 %v628, 16
      %v682 = vrot.slane %v680, 2
      %v683 = vor.u32 %v679, %v682
      %v684 = vsel %vm631, %v674, %v683
      %v686 = vshrl.u32 %v629, 16
      %v688 = vrot.slane %v686, 1
      %v689 = vshll.u32 %v629, 16
      %v691 = vrot.slane %v689, 2
      %v692 = vor.u32 %v688, %v691
      %v693 = vsel %vm631, %v683, %v692
      %v695 = vshrl.u32 %v630, 16
      %v697 = vrot.slane %v695, 1
      %v698 = vshll.u32 %v630, 16
      %v700 = vrot.slane %v698, 2
      %v701 = vor.u32 %v697, %v700
      %v702 = vsel %vm631, %v692, %v701
      %703 = vrot.lane.b32.xlu0 %v648, 64
      %v704 = vpop.permute.xlu0 %703
      %705 = vrot.lane.b32.xlu0 %v657, 64
      %v706 = vpop.permute.xlu0 %705
      %707 = vrot.lane.b32.xlu0 %v666, 64
      %v708 = vpop.permute.xlu0 %707
      %709 = vrot.lane.b32.xlu0 %v675, 64
      %v710 = vpop.permute.xlu0 %709
      %711 = vrot.lane.b32.xlu0 %v684, 64
      %v712 = vpop.permute.xlu0 %711
      %713 = vrot.lane.b32.xlu0 %v693, 64
      %v714 = vpop.permute.xlu0 %713
      %715 = vrot.lane.b32.xlu0 %v702, 64
      %v716 = vpop.permute.xlu0 %715
      %724 = vst.msk [vmem:[#allocation3 + $0x8] sm:$0xff] %vm487, %v704
      %725 = vst.msk [vmem:[#allocation3 + $0x28] sm:$0xff] %vm487, %v706
      %726 = vst.msk [vmem:[#allocation3 + $0x48] sm:$0xff] %vm487, %v708
      %727 = vst.msk [vmem:[#allocation3 + $0x68] sm:$0xff] %vm487, %v710
      %728 = vst.msk [vmem:[#allocation3 + $0x88] sm:$0xff] %vm487, %v712
      %729 = vst.msk [vmem:[#allocation3 + $0xa8] sm:$0xff] %vm487, %v714
      %730 = vst.msk [vmem:[#allocation3 + $0xc8] sm:$0xff] %vm487, %v716
      %v731 = vld [vmem:[%s252] sm:$0xc]
      %v732 = vld [vmem:[%s252 + $0x4] sm:$0xf]
      %v733 = vld [vmem:[%s252 + $0x8] sm:$0xf]
      %v734 = vld [vmem:[%s252 + $0xc] sm:$0xf]
      %v735 = vld [vmem:[%s252 + $0x10] sm:$0xf]
      %v736 = vld [vmem:[%s252 + $0x14] sm:$0xf]
      %v737 = vld [vmem:[%s252 + $0x18] sm:$0xf]
      %v738 = vld [vmem:[%s252 + $0x1c] sm:$0xf]
      %v739 = vld [vmem:[%s252 + $0x20] sm:$0xf]
      %v740 = vld [vmem:[%s252 + $0x24] sm:$0xf]
      %v741 = vld [vmem:[%s252 + $0x28] sm:$0xf]
      %v742 = vld [vmem:[%s252 + $0x2c] sm:$0xf]
      %v743 = vld [vmem:[%s252 + $0x30] sm:$0xf]
      %v744 = vld [vmem:[%s252 + $0x34] sm:$0xf]
      %v745 = vld [vmem:[%s252 + $0x38] sm:$0x3]
      %v761 = vunpack.c.l.b16 %v731
      %v762 = vunpack.c.l.b16 %v732
      %v763 = vunpack.c.l.b16 %v733
      %v764 = vunpack.c.l.b16 %v734
      %v765 = vunpack.c.l.b16 %v735
      %v766 = vunpack.c.l.b16 %v736
      %v767 = vunpack.c.l.b16 %v737
      %v768 = vunpack.c.l.b16 %v738
      %v769 = vunpack.c.l.b16 %v739
      %v770 = vunpack.c.l.b16 %v740
      %v771 = vunpack.c.l.b16 %v741
      %v772 = vunpack.c.l.b16 %v742
      %v773 = vunpack.c.l.b16 %v743
      %v774 = vunpack.c.l.b16 %v744
      %v775 = vunpack.c.l.b16 %v745
      %v776 = vpack.c.b16 %v762, %v761
      %v777 = vpack.c.b16 %v764, %v763
      %v778 = vpack.c.b16 %v766, %v765
      %v779 = vpack.c.b16 %v768, %v767
      %v780 = vpack.c.b16 %v770, %v769
      %v781 = vpack.c.b16 %v772, %v771
      %v782 = vpack.c.b16 %v774, %v773
      %v783 = vpack.c.b16 %v775, %v775
      %vm784 = vcmask 1045504
      %v785 = vrot.slane %v776, 2
      %v786 = vrot.slane %v777, 2
      %v787 = vsel %vm784, %v785, %v786
      %v788 = vrot.slane %v778, 2
      %v789 = vsel %vm784, %v786, %v788
      %v790 = vrot.slane %v779, 2
      %v791 = vsel %vm784, %v788, %v790
      %v792 = vrot.slane %v780, 2
      %v793 = vsel %vm784, %v790, %v792
      %v794 = vrot.slane %v781, 2
      %v795 = vsel %vm784, %v792, %v794
      %v796 = vrot.slane %v782, 2
      %v797 = vsel %vm784, %v794, %v796
      %v798 = vrot.slane %v783, 2
      %v799 = vsel %vm784, %v796, %v798
      %807 = vst.msk [vmem:[#allocation3 + $0x10] sm:$0xff] %vm344, %v787
      %808 = vst.msk [vmem:[#allocation3 + $0x30] sm:$0xff] %vm344, %v789
      %809 = vst.msk [vmem:[#allocation3 + $0x50] sm:$0xff] %vm344, %v791
      %810 = vst.msk [vmem:[#allocation3 + $0x70] sm:$0xff] %vm344, %v793
      %811 = vst.msk [vmem:[#allocation3 + $0x90] sm:$0xff] %vm344, %v795
      %812 = vst.msk [vmem:[#allocation3 + $0xb0] sm:$0xff] %vm344, %v797
      %813 = vst.msk [vmem:[#allocation3 + $0xd0] sm:$0xff] %vm344, %v799
      %v814 = vld [vmem:[%s252] sm:$0xc]
      %v815 = vld [vmem:[%s252 + $0x4] sm:$0xf]
      %v816 = vld [vmem:[%s252 + $0x8] sm:$0xf]
      %v817 = vld [vmem:[%s252 + $0xc] sm:$0xf]
      %v818 = vld [vmem:[%s252 + $0x10] sm:$0xf]
      %v819 = vld [vmem:[%s252 + $0x14] sm:$0xf]
      %v820 = vld [vmem:[%s252 + $0x18] sm:$0xf]
      %v821 = vld [vmem:[%s252 + $0x1c] sm:$0xf]
      %v822 = vld [vmem:[%s252 + $0x20] sm:$0xf]
      %v823 = vld [vmem:[%s252 + $0x24] sm:$0xf]
      %v824 = vld [vmem:[%s252 + $0x28] sm:$0xf]
      %v825 = vld [vmem:[%s252 + $0x2c] sm:$0xf]
      %v826 = vld [vmem:[%s252 + $0x30] sm:$0xf]
      %v827 = vld [vmem:[%s252 + $0x34] sm:$0xf]
      %v828 = vld [vmem:[%s252 + $0x38] sm:$0x7]
      %v844 = vunpack.c.l.b16 %v814
      %v845 = vunpack.c.l.b16 %v815
      %v846 = vunpack.c.l.b16 %v816
      %v847 = vunpack.c.l.b16 %v817
      %v848 = vunpack.c.l.b16 %v818
      %v849 = vunpack.c.l.b16 %v819
      %v850 = vunpack.c.l.b16 %v820
      %v851 = vunpack.c.l.b16 %v821
      %v852 = vunpack.c.l.b16 %v822
      %v853 = vunpack.c.l.b16 %v823
      %v854 = vunpack.c.l.b16 %v824
      %v855 = vunpack.c.l.b16 %v825
      %v856 = vunpack.c.l.b16 %v826
      %v857 = vunpack.c.l.b16 %v827
      %v858 = vunpack.c.l.b16 %v828
      %v859 = vpack.c.b16 %v845, %v844
      %v860 = vpack.c.b16 %v847, %v846
      %v861 = vpack.c.b16 %v849, %v848
      %v862 = vpack.c.b16 %v851, %v850
      %v863 = vpack.c.b16 %v853, %v852
      %v864 = vpack.c.b16 %v855, %v854
      %v865 = vpack.c.b16 %v857, %v856
      %v866 = vpack.c.b16 %v858, %v858
      %vm867 = vsmask.f32 5376
      %v869 = vshrl.u32 %v859, 16
      %v871 = vrot.slane %v869, 2
      %v872 = vshll.u32 %v859, 16
      %v874 = vrot.slane %v872, 3
      %v875 = vor.u32 %v871, %v874
      %v877 = vshrl.u32 %v860, 16
      %v879 = vrot.slane %v877, 2
      %v880 = vshll.u32 %v860, 16
      %v882 = vrot.slane %v880, 3
      %v883 = vor.u32 %v879, %v882
      %v884 = vsel %vm867, %v875, %v883
      %v886 = vshrl.u32 %v861, 16
      %v888 = vrot.slane %v886, 2
      %v889 = vshll.u32 %v861, 16
      %v891 = vrot.slane %v889, 3
      %v892 = vor.u32 %v888, %v891
      %v893 = vsel %vm867, %v883, %v892
      %v895 = vshrl.u32 %v862, 16
      %v897 = vrot.slane %v895, 2
      %v898 = vshll.u32 %v862, 16
      %v900 = vrot.slane %v898, 3
      %v901 = vor.u32 %v897, %v900
      %v902 = vsel %vm867, %v892, %v901
      %v904 = vshrl.u32 %v863, 16
      %v906 = vrot.slane %v904, 2
      %v907 = vshll.u32 %v863, 16
      %v909 = vrot.slane %v907, 3
      %v910 = vor.u32 %v906, %v909
      %v911 = vsel %vm867, %v901, %v910
      %v913 = vshrl.u32 %v864, 16
      %v915 = vrot.slane %v913, 2
      %v916 = vshll.u32 %v864, 16
      %v918 = vrot.slane %v916, 3
      %v919 = vor.u32 %v915, %v918
      %v920 = vsel %vm867, %v910, %v919
      %v922 = vshrl.u32 %v865, 16
      %v924 = vrot.slane %v922, 2
      %v925 = vshll.u32 %v865, 16
      %v927 = vrot.slane %v925, 3
      %v928 = vor.u32 %v924, %v927
      %v929 = vsel %vm867, %v919, %v928
      %v931 = vshrl.u32 %v866, 16
      %v933 = vrot.slane %v931, 2
      %v934 = vshll.u32 %v866, 16
      %v936 = vrot.slane %v934, 3
      %v937 = vor.u32 %v933, %v936
      %v938 = vsel %vm867, %v928, %v937
      %939 = vrot.lane.b32.xlu0 %v884, 64
      %v940 = vpop.permute.xlu0 %939
      %941 = vrot.lane.b32.xlu0 %v893, 64
      %v942 = vpop.permute.xlu0 %941
      %943 = vrot.lane.b32.xlu0 %v902, 64
      %v944 = vpop.permute.xlu0 %943
      %945 = vrot.lane.b32.xlu0 %v911, 64
      %v946 = vpop.permute.xlu0 %945
      %947 = vrot.lane.b32.xlu0 %v920, 64
      %v948 = vpop.permute.xlu0 %947
      %949 = vrot.lane.b32.xlu0 %v929, 64
      %v950 = vpop.permute.xlu0 %949
      %951 = vrot.lane.b32.xlu0 %v938, 64
      %v952 = vpop.permute.xlu0 %951
      %960 = vst.msk [vmem:[#allocation3 + $0x10] sm:$0xff] %vm487, %v940
      %961 = vst.msk [vmem:[#allocation3 + $0x30] sm:$0xff] %vm487, %v942
      %962 = vst.msk [vmem:[#allocation3 + $0x50] sm:$0xff] %vm487, %v944
      %963 = vst.msk [vmem:[#allocation3 + $0x70] sm:$0xff] %vm487, %v946
      %964 = vst.msk [vmem:[#allocation3 + $0x90] sm:$0xff] %vm487, %v948
      %965 = vst.msk [vmem:[#allocation3 + $0xb0] sm:$0xff] %vm487, %v950
      %966 = vst.msk [vmem:[#allocation3 + $0xd0] sm:$0xff] %vm487, %v952
      %v967 = vld [vmem:[%s252] sm:$0x8]
      %v968 = vld [vmem:[%s252 + $0x4] sm:$0xf]
      %v969 = vld [vmem:[%s252 + $0x8] sm:$0xf]
      %v970 = vld [vmem:[%s252 + $0xc] sm:$0xf]
      %v971 = vld [vmem:[%s252 + $0x10] sm:$0xf]
      %v972 = vld [vmem:[%s252 + $0x14] sm:$0xf]
      %v973 = vld [vmem:[%s252 + $0x18] sm:$0xf]
      %v974 = vld [vmem:[%s252 + $0x1c] sm:$0xf]
      %v975 = vld [vmem:[%s252 + $0x20] sm:$0xf]
      %v976 = vld [vmem:[%s252 + $0x24] sm:$0xf]
      %v977 = vld [vmem:[%s252 + $0x28] sm:$0xf]
      %v978 = vld [vmem:[%s252 + $0x2c] sm:$0xf]
      %v979 = vld [vmem:[%s252 + $0x30] sm:$0xf]
      %v980 = vld [vmem:[%s252 + $0x34] sm:$0xf]
      %v981 = vld [vmem:[%s252 + $0x38] sm:$0x7]
      %v997 = vunpack.c.l.b16 %v967
      %v998 = vunpack.c.l.b16 %v968
      %v999 = vunpack.c.l.b16 %v969
      %v1000 = vunpack.c.l.b16 %v970
      %v1001 = vunpack.c.l.b16 %v971
      %v1002 = vunpack.c.l.b16 %v972
      %v1003 = vunpack.c.l.b16 %v973
      %v1004 = vunpack.c.l.b16 %v974
      %v1005 = vunpack.c.l.b16 %v975
      %v1006 = vunpack.c.l.b16 %v976
      %v1007 = vunpack.c.l.b16 %v977
      %v1008 = vunpack.c.l.b16 %v978
      %v1009 = vunpack.c.l.b16 %v979
      %v1010 = vunpack.c.l.b16 %v980
      %v1011 = vunpack.c.l.b16 %v981
      %v1012 = vpack.c.b16 %v998, %v997
      %v1013 = vpack.c.b16 %v1000, %v999
      %v1014 = vpack.c.b16 %v1002, %v1001
      %v1015 = vpack.c.b16 %v1004, %v1003
      %v1016 = vpack.c.b16 %v1006, %v1005
      %v1017 = vpack.c.b16 %v1008, %v1007
      %v1018 = vpack.c.b16 %v1010, %v1009
      %v1019 = vpack.c.b16 %v1011, %v1011
      %vm1020 = vcmask 1044480
      %v1021 = vrot.slane %v1012, 3
      %v1022 = vrot.slane %v1013, 3
      %v1023 = vsel %vm1020, %v1021, %v1022
      %v1024 = vrot.slane %v1014, 3
      %v1025 = vsel %vm1020, %v1022, %v1024
      %v1026 = vrot.slane %v1015, 3
      %v1027 = vsel %vm1020, %v1024, %v1026
      %v1028 = vrot.slane %v1016, 3
      %v1029 = vsel %vm1020, %v1026, %v1028
      %v1030 = vrot.slane %v1017, 3
      %v1031 = vsel %vm1020, %v1028, %v1030
      %v1032 = vrot.slane %v1018, 3
      %v1033 = vsel %vm1020, %v1030, %v1032
      %v1034 = vrot.slane %v1019, 3
      %v1035 = vsel %vm1020, %v1032, %v1034
      %1043 = vst.msk [vmem:[#allocation3 + $0x18] sm:$0xff] %vm344, %v1023
      %1044 = vst.msk [vmem:[#allocation3 + $0x38] sm:$0xff] %vm344, %v1025
      %1045 = vst.msk [vmem:[#allocation3 + $0x58] sm:$0xff] %vm344, %v1027
      %1046 = vst.msk [vmem:[#allocation3 + $0x78] sm:$0xff] %vm344, %v1029
      %1047 = vst.msk [vmem:[#allocation3 + $0x98] sm:$0xff] %vm344, %v1031
      %1048 = vst.msk [vmem:[#allocation3 + $0xb8] sm:$0xff] %vm344, %v1033
      %1049 = vst.msk [vmem:[#allocation3 + $0xd8] sm:$0xff] %vm344, %v1035
      %v1050 = vld [vmem:[#allocation2] sm:$0xff]
      %v1051 = vld [vmem:[#allocation2 + $0x8] sm:$0xff]
      %v1052 = vld [vmem:[#allocation2 + $0x10] sm:$0xff]
      %v1053 = vld [vmem:[#allocation2 + $0x18] sm:$0xff]
      %v1054 = vld [vmem:[#allocation2 + $0x20] sm:$0xff]
      %v1055 = vld [vmem:[#allocation2 + $0x28] sm:$0xff]
      %v1056 = vld [vmem:[#allocation2 + $0x30] sm:$0xff]
      %v1057 = vld [vmem:[#allocation2 + $0x38] sm:$0xff]
      %v1058 = vld [vmem:[#allocation2 + $0x40] sm:$0xff]
      %v1059 = vld [vmem:[#allocation2 + $0x48] sm:$0xff]
      %v1060 = vld [vmem:[#allocation2 + $0x50] sm:$0xff]
      %v1061 = vld [vmem:[#allocation2 + $0x58] sm:$0xff]
      %v1062 = vld [vmem:[#allocation2 + $0x60] sm:$0xff]
      %v1063 = vld [vmem:[#allocation2 + $0x68] sm:$0xff]
      %v1064 = vld [vmem:[#allocation3] sm:$0xff]
      %v1065 = vld [vmem:[#allocation3 + $0x8] sm:$0xff]
      %v1066 = vld [vmem:[#allocation3 + $0x10] sm:$0xff]
      %v1067 = vld [vmem:[#allocation3 + $0x18] sm:$0xff]
      %v1068 = vld [vmem:[#allocation3 + $0x20] sm:$0xff]
      %v1069 = vld [vmem:[#allocation3 + $0x28] sm:$0xff]
      %v1070 = vld [vmem:[#allocation3 + $0x30] sm:$0xff]
      %v1071 = vld [vmem:[#allocation3 + $0x38] sm:$0xff]
      %v1072 = vld [vmem:[#allocation3 + $0x40] sm:$0xff]
      %v1073 = vld [vmem:[#allocation3 + $0x48] sm:$0xff]
      %v1074 = vld [vmem:[#allocation3 + $0x50] sm:$0xff]
      %v1075 = vld [vmem:[#allocation3 + $0x58] sm:$0xff]
      %v1076 = vld [vmem:[#allocation3 + $0x60] sm:$0xff]
      %v1077 = vld [vmem:[#allocation3 + $0x68] sm:$0xff]
      %v1078 = vld [vmem:[#allocation3 + $0x70] sm:$0xff]
      %v1079 = vld [vmem:[#allocation3 + $0x78] sm:$0xff]
      %v1080 = vld [vmem:[#allocation3 + $0x80] sm:$0xff]
      %v1081 = vld [vmem:[#allocation3 + $0x88] sm:$0xff]
      %v1082 = vld [vmem:[#allocation3 + $0x90] sm:$0xff]
      %v1083 = vld [vmem:[#allocation3 + $0x98] sm:$0xff]
      %v1084 = vld [vmem:[#allocation3 + $0xa0] sm:$0xff]
      %v1085 = vld [vmem:[#allocation3 + $0xa8] sm:$0xff]
      %v1086 = vld [vmem:[#allocation3 + $0xb0] sm:$0xff]
      %v1087 = vld [vmem:[#allocation3 + $0xb8] sm:$0xff]
      %v1088 = vld [vmem:[#allocation3 + $0xc0] sm:$0xff]
      %v1089 = vld [vmem:[#allocation3 + $0xc8] sm:$0xff]
      %v1090 = vld [vmem:[#allocation3 + $0xd0] sm:$0xff]
      %v1091 = vld [vmem:[#allocation3 + $0xd8] sm:$0xff]
      %v1092 = vld [vmem:[%s258] sm:$0xf]
      %v1093 = vld [vmem:[%s258 + $0x4] sm:$0xf]
      %v1094 = vld [vmem:[%s258 + $0x8] sm:$0xf]
      %v1095 = vld [vmem:[%s258 + $0xc] sm:$0xf]
      %v1096 = vld [vmem:[%s258 + $0x10] sm:$0xf]
      %v1097 = vld [vmem:[%s258 + $0x14] sm:$0xf]
      %v1098 = vld [vmem:[%s258 + $0x18] sm:$0xf]
      %v1099 = vld [vmem:[%s258 + $0x1c] sm:$0xf]
      %v1100 = vld [vmem:[%s258 + $0x20] sm:$0xf]
      %v1101 = vld [vmem:[%s258 + $0x24] sm:$0xf]
      %v1102 = vld [vmem:[%s258 + $0x28] sm:$0xf]
      %v1103 = vld [vmem:[%s258 + $0x2c] sm:$0xf]
      %v1104 = vld [vmem:[%s258 + $0x30] sm:$0xf]
      %v1105 = vld [vmem:[%s258 + $0x34] sm:$0xf]
      %v1106 = vld [vmem:[%s258 + $0x38] sm:$0xf]
      %v1107 = vld [vmem:[%s258 + $0x3c] sm:$0xf]
      %v1108 = vld [vmem:[%s258 + $0x40] sm:$0xf]
      %v1109 = vld [vmem:[%s258 + $0x44] sm:$0xf]
      %v1110 = vld [vmem:[%s258 + $0x48] sm:$0xf]
      %v1111 = vld [vmem:[%s258 + $0x4c] sm:$0xf]
      %v1112 = vld [vmem:[%s258 + $0x50] sm:$0xf]
      %v1113 = vld [vmem:[%s258 + $0x54] sm:$0xf]
      %v1114 = vld [vmem:[%s258 + $0x58] sm:$0xf]
      %v1115 = vld [vmem:[%s258 + $0x5c] sm:$0xf]
      %v1116 = vld [vmem:[%s258 + $0x60] sm:$0xf]
      %v1117 = vld [vmem:[%s258 + $0x64] sm:$0xf]
      %v1118 = vld [vmem:[%s258 + $0x68] sm:$0xf]
      %v1119 = vld [vmem:[%s258 + $0x6c] sm:$0xf]
      %v1120 = vld [vmem:[%s258 + $0x70] sm:$0xf]
      %v1121 = vld [vmem:[%s258 + $0x74] sm:$0xf]
      %v1122 = vld [vmem:[%s258 + $0x78] sm:$0xf]
      %v1123 = vld [vmem:[%s258 + $0x7c] sm:$0xf]
      %v1124 = vld [vmem:[%s258 + $0x80] sm:$0xf]
      %v1125 = vld [vmem:[%s258 + $0x84] sm:$0xf]
      %v1126 = vld [vmem:[%s258 + $0x88] sm:$0xf]
      %v1127 = vld [vmem:[%s258 + $0x8c] sm:$0xf]
      %v1128 = vld [vmem:[%s258 + $0x90] sm:$0xf]
      %v1129 = vld [vmem:[%s258 + $0x94] sm:$0xf]
      %v1130 = vld [vmem:[%s258 + $0x98] sm:$0xf]
      %v1131 = vld [vmem:[%s258 + $0x9c] sm:$0xf]
      %v1132 = vld [vmem:[%s258 + $0xa0] sm:$0xf]
      %v1133 = vld [vmem:[%s258 + $0xa4] sm:$0xf]
      %v1134 = vld [vmem:[%s258 + $0xa8] sm:$0xf]
      %v1135 = vld [vmem:[%s258 + $0xac] sm:$0xf]
      %v1136 = vld [vmem:[%s258 + $0xb0] sm:$0xf]
      %v1137 = vld [vmem:[%s258 + $0xb4] sm:$0xf]
      %v1138 = vld [vmem:[%s258 + $0xb8] sm:$0xf]
      %v1139 = vld [vmem:[%s258 + $0xbc] sm:$0xf]
      %v1140 = vld [vmem:[%s258 + $0xc0] sm:$0xf]
      %v1141 = vld [vmem:[%s258 + $0xc4] sm:$0xf]
      %v1142 = vld [vmem:[%s258 + $0xc8] sm:$0xf]
      %v1143 = vld [vmem:[%s258 + $0xcc] sm:$0xf]
      %v1144 = vld [vmem:[%s258 + $0xd0] sm:$0xf]
      %v1145 = vld [vmem:[%s258 + $0xd4] sm:$0xf]
      %v1146 = vld [vmem:[%s258 + $0xd8] sm:$0xf]
      %v1147 = vld [vmem:[%s258 + $0xdc] sm:$0xf]
      %v1204 = vunpack.c.l.b16 %v1092
      %v1205 = vunpack.c.l.b16 %v1093
      %v1206 = vunpack.c.l.b16 %v1094
      %v1207 = vunpack.c.l.b16 %v1095
      %v1208 = vunpack.c.l.b16 %v1096
      %v1209 = vunpack.c.l.b16 %v1097
      %v1210 = vunpack.c.l.b16 %v1098
      %v1211 = vunpack.c.l.b16 %v1099
      %v1212 = vunpack.c.l.b16 %v1100
      %v1213 = vunpack.c.l.b16 %v1101
      %v1214 = vunpack.c.l.b16 %v1102
      %v1215 = vunpack.c.l.b16 %v1103
      %v1216 = vunpack.c.l.b16 %v1104
      %v1217 = vunpack.c.l.b16 %v1105
      %v1218 = vunpack.c.l.b16 %v1106
      %v1219 = vunpack.c.l.b16 %v1107
      %v1220 = vunpack.c.l.b16 %v1108
      %v1221 = vunpack.c.l.b16 %v1109
      %v1222 = vunpack.c.l.b16 %v1110
      %v1223 = vunpack.c.l.b16 %v1111
      %v1224 = vunpack.c.l.b16 %v1112
      %v1225 = vunpack.c.l.b16 %v1113
      %v1226 = vunpack.c.l.b16 %v1114
      %v1227 = vunpack.c.l.b16 %v1115
      %v1228 = vunpack.c.l.b16 %v1116
      %v1229 = vunpack.c.l.b16 %v1117
      %v1230 = vunpack.c.l.b16 %v1118
      %v1231 = vunpack.c.l.b16 %v1119
      %v1232 = vunpack.c.l.b16 %v1120
      %v1233 = vunpack.c.l.b16 %v1121
      %v1234 = vunpack.c.l.b16 %v1122
      %v1235 = vunpack.c.l.b16 %v1123
      %v1236 = vunpack.c.l.b16 %v1124
      %v1237 = vunpack.c.l.b16 %v1125
      %v1238 = vunpack.c.l.b16 %v1126
      %v1239 = vunpack.c.l.b16 %v1127
      %v1240 = vunpack.c.l.b16 %v1128
      %v1241 = vunpack.c.l.b16 %v1129
      %v1242 = vunpack.c.l.b16 %v1130
      %v1243 = vunpack.c.l.b16 %v1131
      %v1244 = vunpack.c.l.b16 %v1132
      %v1245 = vunpack.c.l.b16 %v1133
      %v1246 = vunpack.c.l.b16 %v1134
      %v1247 = vunpack.c.l.b16 %v1135
      %v1248 = vunpack.c.l.b16 %v1136
      %v1249 = vunpack.c.l.b16 %v1137
      %v1250 = vunpack.c.l.b16 %v1138
      %v1251 = vunpack.c.l.b16 %v1139
      %v1252 = vunpack.c.l.b16 %v1140
      %v1253 = vunpack.c.l.b16 %v1141
      %v1254 = vunpack.c.l.b16 %v1142
      %v1255 = vunpack.c.l.b16 %v1143
      %v1256 = vunpack.c.l.b16 %v1144
      %v1257 = vunpack.c.l.b16 %v1145
      %v1258 = vunpack.c.l.b16 %v1146
      %v1259 = vunpack.c.l.b16 %v1147
      %v1260 = vpack.c.b16 %v1205, %v1204
      %v1261 = vpack.c.b16 %v1207, %v1206
      %v1262 = vpack.c.b16 %v1209, %v1208
      %v1263 = vpack.c.b16 %v1211, %v1210
      %v1264 = vpack.c.b16 %v1213, %v1212
      %v1265 = vpack.c.b16 %v1215, %v1214
      %v1266 = vpack.c.b16 %v1217, %v1216
      %v1267 = vpack.c.b16 %v1219, %v1218
      %v1268 = vpack.c.b16 %v1221, %v1220
      %v1269 = vpack.c.b16 %v1223, %v1222
      %v1270 = vpack.c.b16 %v1225, %v1224
      %v1271 = vpack.c.b16 %v1227, %v1226
      %v1272 = vpack.c.b16 %v1229, %v1228
      %v1273 = vpack.c.b16 %v1231, %v1230
      %v1274 = vpack.c.b16 %v1233, %v1232
      %v1275 = vpack.c.b16 %v1235, %v1234
      %v1276 = vpack.c.b16 %v1237, %v1236
      %v1277 = vpack.c.b16 %v1239, %v1238
      %v1278 = vpack.c.b16 %v1241, %v1240
      %v1279 = vpack.c.b16 %v1243, %v1242
      %v1280 = vpack.c.b16 %v1245, %v1244
      %v1281 = vpack.c.b16 %v1247, %v1246
      %v1282 = vpack.c.b16 %v1249, %v1248
      %v1283 = vpack.c.b16 %v1251, %v1250
      %v1284 = vpack.c.b16 %v1253, %v1252
      %v1285 = vpack.c.b16 %v1255, %v1254
      %v1286 = vpack.c.b16 %v1257, %v1256
      %v1287 = vpack.c.b16 %v1259, %v1258
      %v1317 = vsel %vm344, %v1067, 0
      %v1320 = vsel %vm344, %v1071, 0
      %v1323 = vsel %vm344, %v1075, 0
      %v1326 = vsel %vm344, %v1079, 0
      %v1329 = vsel %vm344, %v1083, 0
      %v1332 = vsel %vm344, %v1087, 0
      %v1335 = vsel %vm344, %v1091, 0
      %1337 = vmatprep.subr.bf16.mxu0 0
      %1338 = vmatpush1.bf16.msra.mxu0 %v1260
      %1339 = vmatprep.subr.bf16.mxu0 0
      %1340 = vmatpush1.bf16.msra.mxu0 %v1261
      %1341 = vmatprep.subr.bf16.mxu0 0
      %1342 = vmatpush1.bf16.msra.mxu0 %v1262
      %1343 = vmatprep.subr.bf16.mxu0 0
      %1344 = vmatpush1.bf16.msra.mxu0 %v1263
      %1345 = vmatprep.subr.bf16.mxu0 0
      %1346 = vmatpush1.bf16.msra.mxu0 %v1264
      %1347 = vmatprep.subr.bf16.mxu0 0
      %1348 = vmatpush1.bf16.msra.mxu0 %v1265
      %1349 = vmatprep.subr.bf16.mxu0 0
      %1350 = vmatpush1.bf16.msra.mxu0 %v1266
      %1351 = vmatprep.subr.bf16.mxu0 0
      %1352 = vmatpush1.bf16.msra.mxu0 %v1267
      %1353 = vmatprep.subr.bf16.mxu0 0
      %1354 = vmatpush1.bf16.msra.mxu0 %v1268
      %1355 = vmatprep.subr.bf16.mxu0 0
      %1356 = vmatpush1.bf16.msra.mxu0 %v1269
      %1357 = vmatprep.subr.bf16.mxu0 0
      %1358 = vmatpush1.bf16.msra.mxu0 %v1270
      %1359 = vmatprep.subr.bf16.mxu0 0
      %1360 = vmatpush1.bf16.msra.mxu0 %v1271
      %1361 = vmatprep.subr.bf16.mxu0 0
      %1362 = vmatpush1.bf16.msra.mxu0 %v1272
      %1363 = vmatprep.subr.bf16.mxu0 0
      %1364 = vmatpush1.bf16.msra.mxu0 %v1273
      %1365 = vmatprep.subr.bf16.mxu0 0
      %1366 = vmatpush1.bf16.msra.mxu0 %v1274
      %1367 = vmatprep.subr.bf16.mxu0 0
      %1368 = vmatpush1.bf16.msra.mxu0 %v1275
      %1369 = vmatprep.mubr.bf16.mxu0 %v1065
      %1370 = vmatmul.mubr.bf16.gmra.mrb[0].mxu0 %v1064
      %v1371 = vpop.f32.mrb[0].mxu0
      %v1372 = vadd.f32 0.0, %v1371
      %v1373 = vpop.f32.mrb[0].mxu0
      %v1374 = vpop.f32.mrb[0].mxu0
      %v1375 = vadd.f32 0.0, %v1374
      %v1376 = vpop.f32.mrb[0].mxu0
      %1377 = vmatprep.mubr.bf16.mxu0 %v1069
      %1378 = vmatmul.mubr.bf16.gmra.mrb[0].mxu0 %v1068
      %v1379 = vpop.f32.mrb[0].mxu0
      %v1380 = vadd.f32 0.0, %v1379
      %v1381 = vpop.f32.mrb[0].mxu0
      %v1382 = vpop.f32.mrb[0].mxu0
      %v1383 = vadd.f32 0.0, %v1382
      %v1384 = vpop.f32.mrb[0].mxu0
      %1385 = vmatprep.mubr.bf16.mxu0 %v1073
      %1386 = vmatmul.mubr.bf16.gmra.mrb[0].mxu0 %v1072
      %v1387 = vpop.f32.mrb[0].mxu0
      %v1388 = vadd.f32 0.0, %v1387
      %v1389 = vpop.f32.mrb[0].mxu0
      %v1390 = vpop.f32.mrb[0].mxu0
      %v1391 = vadd.f32 0.0, %v1390
      %v1392 = vpop.f32.mrb[0].mxu0
      %1393 = vmatprep.mubr.bf16.mxu0 %v1077
      %1394 = vmatmul.mubr.bf16.gmra.mrb[0].mxu0 %v1076
      %v1395 = vpop.f32.mrb[0].mxu0
      %v1396 = vadd.f32 0.0, %v1395
      %v1397 = vpop.f32.mrb[0].mxu0
      %v1398 = vpop.f32.mrb[0].mxu0
      %v1399 = vadd.f32 0.0, %v1398
      %v1400 = vpop.f32.mrb[0].mxu0
      %1401 = vmatprep.mubr.bf16.mxu0 %v1081
      %1402 = vmatmul.mubr.bf16.gmra.mrb[0].mxu0 %v1080
      %v1403 = vpop.f32.mrb[0].mxu0
      %v1404 = vadd.f32 0.0, %v1403
      %v1405 = vpop.f32.mrb[0].mxu0
      %v1406 = vpop.f32.mrb[0].mxu0
      %v1407 = vadd.f32 0.0, %v1406
      %v1408 = vpop.f32.mrb[0].mxu0
      %1409 = vmatprep.mubr.bf16.mxu0 %v1085
      %1410 = vmatmul.mubr.bf16.gmra.mrb[0].mxu0 %v1084
      %v1411 = vpop.f32.mrb[0].mxu0
      %v1412 = vadd.f32 0.0, %v1411
      %v1413 = vpop.f32.mrb[0].mxu0
      %v1414 = vpop.f32.mrb[0].mxu0
      %v1415 = vadd.f32 0.0, %v1414
      %v1416 = vpop.f32.mrb[0].mxu0
      %1417 = vmatprep.mubr.bf16.mxu0 %v1089
      %1418 = vmatmul.mubr.bf16.gmra.mrb[0].mxu0 %v1088
      %v1419 = vpop.f32.mrb[0].mxu0
      %v1420 = vadd.f32 0.0, %v1419
      %v1421 = vpop.f32.mrb[0].mxu0
      %v1422 = vpop.f32.mrb[0].mxu0
      %v1423 = vadd.f32 0.0, %v1422
      %v1424 = vpop.f32.mrb[0].mxu0
      %1425 = vdwg.mxu0
      %1426 = vmatprep.subr.bf16.mxu0 0
      %1427 = vmatpush1.bf16.msra.mxu0 %v1276
      %1428 = vmatprep.subr.bf16.mxu0 0
      %1429 = vmatpush1.bf16.msra.mxu0 %v1277
      %1430 = vmatprep.subr.bf16.mxu0 0
      %1431 = vmatpush1.bf16.msra.mxu0 %v1278
      %1432 = vmatprep.subr.bf16.mxu0 0
      %1433 = vmatpush1.bf16.msra.mxu0 %v1279
      %1434 = vmatprep.subr.bf16.mxu0 0
      %1435 = vmatpush1.bf16.msra.mxu0 %v1280
      %1436 = vmatprep.subr.bf16.mxu0 0
      %1437 = vmatpush1.bf16.msra.mxu0 %v1281
      %1438 = vmatprep.subr.bf16.mxu0 0
      %1439 = vmatpush1.bf16.msra.mxu0 %v1282
      %1440 = vmatprep.subr.bf16.mxu0 0
      %1441 = vmatpush1.bf16.msra.mxu0 %v1283
      %1442 = vmatprep.subr.bf16.mxu0 0
      %1443 = vmatpush1.bf16.msra.mxu0 %v1284
      %1444 = vmatprep.subr.bf16.mxu0 0
      %1445 = vmatpush1.bf16.msra.mxu0 %v1285
      %1446 = vmatprep.subr.bf16.mxu0 0
      %1447 = vmatpush1.bf16.msra.mxu0 %v1286
      %1448 = vmatprep.subr.bf16.mxu0 0
      %1449 = vmatpush1.bf16.msra.mxu0 %v1287
      %1450 = vmatprep.subr.bf16.mxu0 0
      %1451 = vmatpush1.bf16.msra.mxu0 0
      %1452 = vmatprep.subr.bf16.mxu0 0
      %1453 = vmatpush1.bf16.msra.mxu0 0
      %1454 = vmatprep.subr.bf16.mxu0 0
      %1455 = vmatpush1.bf16.msra.mxu0 0
      %1456 = vmatprep.subr.bf16.mxu0 0
      %1457 = vmatpush1.bf16.msra.mxu0 0
      %1458 = vmatprep.mubr.bf16.mxu0 %v1317
      %1459 = vmatmul.mubr.bf16.gmra.mrb[0].mxu0 %v1066
      %v1460 = vpop.f32.mrb[0].mxu0
      %v1461 = vadd.f32 %v1372, %v1460
      %v1462 = vpop.f32.mrb[0].mxu0
      %v1463 = vpop.f32.mrb[0].mxu0
      %v1464 = vadd.f32 %v1375, %v1463
      %v1465 = vpop.f32.mrb[0].mxu0
      %1466 = vmatprep.mubr.bf16.mxu0 %v1320
      %1467 = vmatmul.mubr.bf16.gmra.mrb[0].mxu0 %v1070
      %v1468 = vpop.f32.mrb[0].mxu0
      %v1469 = vadd.f32 %v1380, %v1468
      %v1470 = vpop.f32.mrb[0].mxu0
      %v1471 = vpop.f32.mrb[0].mxu0
      %v1472 = vadd.f32 %v1383, %v1471
      %v1473 = vpop.f32.mrb[0].mxu0
      %1474 = vmatprep.mubr.bf16.mxu0 %v1323
      %1475 = vmatmul.mubr.bf16.gmra.mrb[0].mxu0 %v1074
      %v1476 = vpop.f32.mrb[0].mxu0
      %v1477 = vadd.f32 %v1388, %v1476
      %v1478 = vpop.f32.mrb[0].mxu0
      %v1479 = vpop.f32.mrb[0].mxu0
      %v1480 = vadd.f32 %v1391, %v1479
      %v1481 = vpop.f32.mrb[0].mxu0
      %1482 = vmatprep.mubr.bf16.mxu0 %v1326
      %1483 = vmatmul.mubr.bf16.gmra.mrb[0].mxu0 %v1078
      %v1484 = vpop.f32.mrb[0].mxu0
      %v1485 = vadd.f32 %v1396, %v1484
      %v1486 = vpop.f32.mrb[0].mxu0
      %v1487 = vpop.f32.mrb[0].mxu0
      %v1488 = vadd.f32 %v1399, %v1487
      %v1489 = vpop.f32.mrb[0].mxu0
      %1490 = vmatprep.mubr.bf16.mxu0 %v1329
      %1491 = vmatmul.mubr.bf16.gmra.mrb[0].mxu0 %v1082
      %v1492 = vpop.f32.mrb[0].mxu0
      %v1493 = vadd.f32 %v1404, %v1492
      %v1494 = vpop.f32.mrb[0].mxu0
      %v1495 = vpop.f32.mrb[0].mxu0
      %v1496 = vadd.f32 %v1407, %v1495
      %v1497 = vpop.f32.mrb[0].mxu0
      %1498 = vmatprep.mubr.bf16.mxu0 %v1332
      %1499 = vmatmul.mubr.bf16.gmra.mrb[0].mxu0 %v1086
      %v1500 = vpop.f32.mrb[0].mxu0
      %v1501 = vadd.f32 %v1412, %v1500
      %v1502 = vpop.f32.mrb[0].mxu0
      %v1503 = vpop.f32.mrb[0].mxu0
      %v1504 = vadd.f32 %v1415, %v1503
      %v1505 = vpop.f32.mrb[0].mxu0
      %1506 = vmatprep.mubr.bf16.mxu0 %v1335
      %1507 = vmatmul.mubr.bf16.gmra.mrb[0].mxu0 %v1090
      %v1508 = vpop.f32.mrb[0].mxu0
      %v1509 = vadd.f32 %v1420, %v1508
      %v1510 = vpop.f32.mrb[0].mxu0
      %v1511 = vpop.f32.mrb[0].mxu0
      %v1512 = vadd.f32 %v1423, %v1511
      %v1513 = vpop.f32.mrb[0].mxu0
      %1514 = vdwg.mxu0
      %v1515 = vadd.f32 %v1050, %v1461
      %v1516 = vadd.f32 %v1051, %v1464
      %v1517 = vadd.f32 %v1052, %v1469
      %v1518 = vadd.f32 %v1053, %v1472
      %v1519 = vadd.f32 %v1054, %v1477
      %v1520 = vadd.f32 %v1055, %v1480
      %v1521 = vadd.f32 %v1056, %v1485
      %v1522 = vadd.f32 %v1057, %v1488
      %v1523 = vadd.f32 %v1058, %v1493
      %v1524 = vadd.f32 %v1059, %v1496
      %v1525 = vadd.f32 %v1060, %v1501
      %v1526 = vadd.f32 %v1061, %v1504
      %v1527 = vadd.f32 %v1062, %v1509
      %v1528 = vadd.f32 %v1063, %v1512
      %1529 = vst.msk [vmem:[#allocation2] sm:$0xff] %vm344, %v1515
      %1530 = vst.msk [vmem:[#allocation2 + $0x8] sm:$0xff] %vm344, %v1516
      %1531 = vst.msk [vmem:[#allocation2 + $0x10] sm:$0xff] %vm344, %v1517
      %1532 = vst.msk [vmem:[#allocation2 + $0x18] sm:$0xff] %vm344, %v1518
      %1533 = vst.msk [vmem:[#allocation2 + $0x20] sm:$0xff] %vm344, %v1519
      %1534 = vst.msk [vmem:[#allocation2 + $0x28] sm:$0xff] %vm344, %v1520
      %1535 = vst.msk [vmem:[#allocation2 + $0x30] sm:$0xff] %vm344, %v1521
      %1536 = vst.msk [vmem:[#allocation2 + $0x38] sm:$0xff] %vm344, %v1522
      %1537 = vst.msk [vmem:[#allocation2 + $0x40] sm:$0xff] %vm344, %v1523
      %1538 = vst.msk [vmem:[#allocation2 + $0x48] sm:$0xff] %vm344, %v1524
      %1539 = vst.msk [vmem:[#allocation2 + $0x50] sm:$0xff] %vm344, %v1525
      %1540 = vst.msk [vmem:[#allocation2 + $0x58] sm:$0xff] %vm344, %v1526
      %1541 = vst.msk [vmem:[#allocation2 + $0x60] sm:$0xff] %vm344, %v1527
      %1542 = vst.msk [vmem:[#allocation2 + $0x68] sm:$0xff] %vm344, %v1528
      // Predicated region
      $region41: #{mixed4a_forward.7} parent=35 // pred_check
        %p1543 = pneg %p269
      $region42: #{mixed4a_forward.7} parent=35 // pred_check_branch
        %1545 = sbr.rel (%p1543) target = $region44
      $region43: #{mixed4a_forward.7} parent=35 // pred_region
        %v1546 = vld [vmem:[#allocation2] sm:$0xff]
        %v1547 = vld [vmem:[#allocation2 + $0x8] sm:$0xff]
        %v1548 = vld [vmem:[#allocation2 + $0x10] sm:$0xff]
        %v1549 = vld [vmem:[#allocation2 + $0x18] sm:$0xff]
        %v1550 = vld [vmem:[#allocation2 + $0x20] sm:$0xff]
        %v1551 = vld [vmem:[#allocation2 + $0x28] sm:$0xff]
        %v1552 = vld [vmem:[#allocation2 + $0x30] sm:$0xff]
        %v1553 = vld [vmem:[#allocation2 + $0x38] sm:$0xff]
        %v1554 = vld [vmem:[#allocation2 + $0x40] sm:$0xff]
        %v1555 = vld [vmem:[#allocation2 + $0x48] sm:$0xff]
        %v1556 = vld [vmem:[#allocation2 + $0x50] sm:$0xff]
        %v1557 = vld [vmem:[#allocation2 + $0x58] sm:$0xff]
        %v1558 = vld [vmem:[#allocation2 + $0x60] sm:$0xff]
        %v1559 = vld [vmem:[#allocation2 + $0x68] sm:$0xff]
        %v1560 = vld [vmem:[%s2] sm:$0x1]
        %v1562 = vlaneseq
        %v1563 = vshrl.u32 %v1562, 7
        %v1564 = vsub.s32 0, %v1563
        %v1565 = vrot.slane %v1560, %v1564
        %v1567 = vmul.f32 %v1546, %v1565
        %v1568 = vmul.f32 %v1547, %v1565
        %v1569 = vmul.f32 %v1548, %v1565
        %v1570 = vmul.f32 %v1549, %v1565
        %v1571 = vmul.f32 %v1550, %v1565
        %v1572 = vmul.f32 %v1551, %v1565
        %v1573 = vmul.f32 %v1552, %v1565
        %v1574 = vmul.f32 %v1553, %v1565
        %v1575 = vmul.f32 %v1554, %v1565
        %v1576 = vmul.f32 %v1555, %v1565
        %v1577 = vmul.f32 %v1556, %v1565
        %v1578 = vmul.f32 %v1557, %v1565
        %v1579 = vmul.f32 %v1558, %v1565
        %v1580 = vmul.f32 %v1559, %v1565
        %v1581 = vld [vmem:[%s3] sm:$0x1]
        %v1583 = vlaneseq
        %v1584 = vshrl.u32 %v1583, 7
        %v1585 = vsub.s32 0, %v1584
        %v1586 = vrot.slane %v1581, %v1585
        %v1588 = vadd.f32 %v1567, %v1586
        %v1589 = vadd.f32 %v1568, %v1586
        %v1590 = vadd.f32 %v1569, %v1586
        %v1591 = vadd.f32 %v1570, %v1586
        %v1592 = vadd.f32 %v1571, %v1586
        %v1593 = vadd.f32 %v1572, %v1586
        %v1594 = vadd.f32 %v1573, %v1586
        %v1595 = vadd.f32 %v1574, %v1586
        %v1596 = vadd.f32 %v1575, %v1586
        %v1597 = vadd.f32 %v1576, %v1586
        %v1598 = vadd.f32 %v1577, %v1586
        %v1599 = vadd.f32 %v1578, %v1586
        %v1600 = vadd.f32 %v1579, %v1586
        %v1601 = vadd.f32 %v1580, %v1586
        %v1602 = vmax.f32 %v1588, 0.0
        %v1603 = vmax.f32 %v1589, 0.0
        %v1604 = vmax.f32 %v1590, 0.0
        %v1605 = vmax.f32 %v1591, 0.0
        %v1606 = vmax.f32 %v1592, 0.0
        %v1607 = vmax.f32 %v1593, 0.0
        %v1608 = vmax.f32 %v1594, 0.0
        %v1609 = vmax.f32 %v1595, 0.0
        %v1610 = vmax.f32 %v1596, 0.0
        %v1611 = vmax.f32 %v1597, 0.0
        %v1612 = vmax.f32 %v1598, 0.0
        %v1613 = vmax.f32 %v1599, 0.0
        %v1614 = vmax.f32 %v1600, 0.0
        %v1615 = vmax.f32 %v1601, 0.0
        %v1616 = vpack.c.bf16 %v1603, %v1602
        %v1617 = vpack.c.bf16 %v1605, %v1604
        %v1618 = vpack.c.bf16 %v1607, %v1606
        %v1619 = vpack.c.bf16 %v1609, %v1608
        %v1620 = vpack.c.bf16 %v1611, %v1610
        %v1621 = vpack.c.bf16 %v1613, %v1612
        %v1622 = vpack.c.bf16 %v1615, %v1614
        %v1630 = vunpack.c.l.b16 %v1616
        %v1631 = vunpack.c.h.b16 %v1616
        %v1632 = vunpack.c.l.b16 %v1617
        %v1633 = vunpack.c.h.b16 %v1617
        %v1634 = vunpack.c.l.b16 %v1618
        %v1635 = vunpack.c.h.b16 %v1618
        %v1636 = vunpack.c.l.b16 %v1619
        %v1637 = vunpack.c.h.b16 %v1619
        %v1638 = vunpack.c.l.b16 %v1620
        %v1639 = vunpack.c.h.b16 %v1620
        %v1640 = vunpack.c.l.b16 %v1621
        %v1641 = vunpack.c.h.b16 %v1621
        %v1642 = vunpack.c.l.b16 %v1622
        %v1643 = vunpack.c.h.b16 %v1622
        %v1644 = vpack.c.b16 %v1630, %v1630
        %v1645 = vpack.c.b16 %v1631, %v1631
        %v1646 = vpack.c.b16 %v1632, %v1632
        %v1647 = vpack.c.b16 %v1633, %v1633
        %v1648 = vpack.c.b16 %v1634, %v1634
        %v1649 = vpack.c.b16 %v1635, %v1635
        %v1650 = vpack.c.b16 %v1636, %v1636
        %v1651 = vpack.c.b16 %v1637, %v1637
        %v1652 = vpack.c.b16 %v1638, %v1638
        %v1653 = vpack.c.b16 %v1639, %v1639
        %v1654 = vpack.c.b16 %v1640, %v1640
        %v1655 = vpack.c.b16 %v1641, %v1641
        %v1656 = vpack.c.b16 %v1642, %v1642
        %v1657 = vpack.c.b16 %v1643, %v1643
        %vm1672 = vcmask 519168
        %1673 = vst.msk [vmem:[%s267] sm:$0xf] %vm1672, %v1644
        %1674 = vst.msk [vmem:[%s267 + $0x4] sm:$0xf] %vm1672, %v1645
        %1675 = vst.msk [vmem:[%s267 + $0x8] sm:$0xf] %vm1672, %v1646
        %1676 = vst.msk [vmem:[%s267 + $0xc] sm:$0xf] %vm1672, %v1647
        %1677 = vst.msk [vmem:[%s267 + $0x10] sm:$0xf] %vm1672, %v1648
        %1678 = vst.msk [vmem:[%s267 + $0x14] sm:$0xf] %vm1672, %v1649
        %1679 = vst.msk [vmem:[%s267 + $0x18] sm:$0xf] %vm1672, %v1650
        %1680 = vst.msk [vmem:[%s267 + $0x1c] sm:$0xf] %vm1672, %v1651
        %1681 = vst.msk [vmem:[%s267 + $0x20] sm:$0xf] %vm1672, %v1652
        %1682 = vst.msk [vmem:[%s267 + $0x24] sm:$0xf] %vm1672, %v1653
        %1683 = vst.msk [vmem:[%s267 + $0x28] sm:$0xf] %vm1672, %v1654
        %1684 = vst.msk [vmem:[%s267 + $0x2c] sm:$0xf] %vm1672, %v1655
        %1685 = vst.msk [vmem:[%s267 + $0x30] sm:$0xf] %vm1672, %v1656
        %1686 = vst.msk [vmem:[%s267 + $0x34] sm:$0xf] %vm1672, %v1657
      $region44: #{mixed4a_forward.7} parent=35 // pred_fallthru
        _
      %p1687 = scmp.lt.s32.totalorder %s20, 1
      %s1688 = scalar_select %p1687, %s20, 1
      %p1689 = scmp.lt.s32.totalorder %s21, 3
      %s1690 = scalar_select %p1689, %s21, 3
      %s1691 = smul.addr %s1690, 14
      %s1692 = smul.addr %s1688, 56
      %s1693 = sadd.s32 %s1691, %s1692
      %s1694 = smul.addr %s1693, 4
      %s1695 = scalar_lea.vmem %s4, %s1694
      // Predicated region
      $region45: #{mixed4a_forward.7} parent=35 // pred_check
        %p1696 = pneg %p152
      $region46: #{mixed4a_forward.7} parent=35 // pred_check_branch
        %1698 = sbr.rel (%p1696) target = $region48
      $region47: #{mixed4a_forward.7} parent=35 // pred_region
        _
      $region48: #{mixed4a_forward.7} parent=35 // pred_fallthru
        _
    $region36: #{mixed4a_forward.7} parent=5 // pred_fallthru
      _
    %p1699 = scmp.le.s32.totalorder 2, %s10
    // Predicated region
    $region49: #{mixed4a_forward.7} parent=5 // pred_check
      %p1700 = pneg %p1699
    $region50: #{mixed4a_forward.7} parent=5 // pred_check_branch
      %1702 = sbr.rel (%p1700) target = $region52
    $region51: #{mixed4a_forward.7} parent=5 // pred_region
      %s1703 = ssub.s32 %s10, 2
      // Predicated region
      $region53: #{mixed4a_forward.7} parent=51 // pred_check
        %p1704 = pneg %p158
      $region54: #{mixed4a_forward.7} parent=51 // pred_check_branch
        %1706 = sbr.rel (%p1704) target = $region56
      $region55: #{mixed4a_forward.7} parent=51 // pred_region
        %p1707 = scmp.lt.s32.totalorder %s23, 1
        %s1708 = scalar_select %p1707, %s23, 1
        %p1709 = scmp.lt.s32.totalorder %s24, 3
        %s1710 = scalar_select %p1709, %s24, 3
        %s1711 = smul.addr %s1710, 14
        %s1712 = smul.addr %s1708, 56
        %s1713 = sadd.s32 %s1711, %s1712
        %s1714 = smul.addr %s1713, 4
        %s1715 = scalar_lea.vmem %s4, %s1714
      $region56: #{mixed4a_forward.7} parent=51 // pred_fallthru
        _
    $region52: #{mixed4a_forward.7} parent=5 // pred_fallthru
      _
  $region6: #{mixed4a_forward.7} parent=0 // loop_footer
    %s14 = sadd.s32 1, %s10
  $region7: #{mixed4a_forward.7} parent=0 // loop_footer_branch
    %9 = sbr.rel target = $region3
  $region8: #{mixed4a_forward.7} parent=0 // loop_exit
    _

// kernel: mixed4a_forward.8
$region0: #{mixed4a_forward.8}
  #allocation0 [shape = 'u32[]', space=smem, size = 0x4, offset = 0x4, fixed_abs, tag = 'smem constant byte address 0x4 - core index']
  #allocation1 [shape = 'u32[144,128]{1,0:T(1,128)}', space=vmem, size = 0x12000, scoped, tag = 'internal scratch']
  #allocation2 [shape = 'f32[64,64]{1,0:T(8,128)}', space=vmem, size = 0x8000, scoped, tag = 'scratch operand']
  #allocation3 [shape = 'bf16[64,448]{1,0:T(16,128)(2,1)}', space=vmem, size = 0x10000, scoped, tag = 'scratch operand']
  %s0 = inlined_call_operand.vmem [shape: bf16[2,4,112,64], index: 0, kind: input, shape index: {}]
  %s1 = inlined_call_operand.vmem [shape: bf16[1,448,64], index: 1, kind: input, shape index: {}]
  %s2 = inlined_call_operand.vmem [shape: f32[1,64], index: 2, kind: input, shape index: {}]
  %s3 = inlined_call_operand.vmem [shape: f32[1,64], index: 3, kind: input, shape index: {}]
  %s4 = inlined_call_operand.vmem [shape: bf16[2,4,64,64], index: 4, kind: output, shape index: {}]
  %s5 = sld [smem:[#allocation0]]
  $region57: #{mixed4a_forward.8} parent=0
    _
  %s7 = ssub.s32 1, %s5
  %s8 = scalar_select 0, %s7, %s5
  loop: start=0, step=1, limit=10
  $region2: #{mixed4a_forward.8} parent=0 // loop_pre_header
    _
  $region3: #{mixed4a_forward.8} parent=0 // loop_header
    %s10 = sphi 0, %s14
    %p11 = scmp.ge.s32.totalorder %s10, 10
    %s17 = sphi 0, %s36
    %s18 = sphi 0, %s32
    %s19 = sphi 0, %s28
    %s20 = sphi 0, %s17
    %s21 = sphi 0, %s18
    %s22 = sphi 0, %s19
    %s23 = sphi 0, %s20
    %s24 = sphi 0, %s21
    %s25 = sphi 0, %s22
    %s43 = sphi 0, %s45
    %s46 = sphi 0, %s43
    %s47 = sphi 0, %s46
    %s63 = sphi 0, %s47
    %s69 = sphi 0, %s71
    %s72 = sphi 0, %s69
    %s73 = sphi 0, %s72
    %s89 = sphi 0, %s73
    %s93 = sphi 0, %s93
    %s95 = sphi 0, %s93
    %s96 = sphi 0, %s95
    %s110 = sphi 0, %s96
    %s114 = sphi 0, %s114
    %s116 = sphi 0, %s114
    %s117 = sphi 0, %s116
    %s131 = sphi 0, %s117
    %s139 = sphi 0, %s141
    %s142 = sphi 0, %s139
    %s143 = sphi 0, %s142
    %s159 = sphi 0, %s143
  $region4: #{mixed4a_forward.8} parent=0 // loop_header_branch
    %13 = sbr.rel (%p11) target = $region8
  $region5: #{mixed4a_forward.8} parent=0 // loop_body
    %s15 = ssub.s32 %s10, 1
    %s16 = ssub.s32 %s10, 2
    %s26 = sadd.s32 1, %s19
    %p27 = scmp.ge.s32.totalorder %s26, 1
    %s28 = scalar_select %p27, 0, %s26
    %s29 = sadd.s32 1, %s18
    %s30 = scalar_select %p27, %s29, %s18
    %p31 = scmp.ge.s32.totalorder %s30, 4
    %s32 = scalar_select %p31, 0, %s30
    %s33 = sadd.s32 1, %s17
    %s34 = scalar_select %p31, %s33, %s17
    %p35 = scmp.ge.s32.totalorder %s34, 2
    %s36 = scalar_select %p35, 0, %s34
    %s37 = sadd.s32 %s18, %s19
    %s38 = sadd.s32 %s32, %s28
    %s39 = ssub.s32 %s17, %s36
    %s40 = ssub.s32 %s37, %s38
    %s41 = sor.u32 %s39, %s40
    %p42 = scmp.eq.s32.totalorder %s41, 0
    %s44 = sadd.s32 %s43, 1
    %s45 = scalar_select %p42, %s43, %s44
    %p48 = pneg %p42
    %p49 = scmp.eq.s32.totalorder %s10, 7
    %p50 = por %p48, %p49
    %p51 = scmp.ne.s32.totalorder %s43, %s46
    %p52 = scmp.eq.s32.totalorder %s10, 0
    %p53 = por %p51, %p52
    %p54 = scmp.ne.s32.totalorder %s43, %s46
    %p55 = scmp.eq.s32.totalorder %s15, 7
    %p56 = por %p54, %p55
    %p57 = scmp.ne.s32.totalorder %s46, %s47
    %p58 = scmp.eq.s32.totalorder %s15, 0
    %p59 = por %p57, %p58
    %p60 = scmp.ne.s32.totalorder %s46, %s47
    %p61 = scmp.eq.s32.totalorder %s16, 7
    %p62 = por %p60, %p61
    %p64 = scmp.ne.s32.totalorder %s47, %s63
    %p65 = scmp.eq.s32.totalorder %s16, 0
    %p66 = por %p64, %p65
    %s67 = ssub.s32 %s19, %s28
    %p68 = scmp.eq.s32.totalorder %s67, 0
    %s70 = sadd.s32 %s69, 1
    %s71 = scalar_select %p68, %s69, %s70
    %p74 = pneg %p68
    %p75 = scmp.eq.s32.totalorder %s10, 7
    %p76 = por %p74, %p75
    %p77 = scmp.ne.s32.totalorder %s69, %s72
    %p78 = scmp.eq.s32.totalorder %s10, 0
    %p79 = por %p77, %p78
    %p80 = scmp.ne.s32.totalorder %s69, %s72
    %p81 = scmp.eq.s32.totalorder %s15, 7
    %p82 = por %p80, %p81
    %p83 = scmp.ne.s32.totalorder %s72, %s73
    %p84 = scmp.eq.s32.totalorder %s15, 0
    %p85 = por %p83, %p84
    %p86 = scmp.ne.s32.totalorder %s72, %s73
    %p87 = scmp.eq.s32.totalorder %s16, 7
    %p88 = por %p86, %p87
    %p90 = scmp.ne.s32.totalorder %s73, %s89
    %p91 = scmp.eq.s32.totalorder %s16, 0
    %p92 = por %p90, %p91
    %s94 = sadd.s32 %s93, 1
    %p97 = scmp.eq.s32.totalorder %s10, 7
    %p98 = scmp.ne.s32.totalorder %s93, %s95
    %p99 = scmp.eq.s32.totalorder %s10, 0
    %p100 = por %p98, %p99
    %p101 = scmp.ne.s32.totalorder %s93, %s95
    %p102 = scmp.eq.s32.totalorder %s15, 7
    %p103 = por %p101, %p102
    %p104 = scmp.ne.s32.totalorder %s95, %s96
    %p105 = scmp.eq.s32.totalorder %s15, 0
    %p106 = por %p104, %p105
    %p107 = scmp.ne.s32.totalorder %s95, %s96
    %p108 = scmp.eq.s32.totalorder %s16, 7
    %p109 = por %p107, %p108
    %p111 = scmp.ne.s32.totalorder %s96, %s110
    %p112 = scmp.eq.s32.totalorder %s16, 0
    %p113 = por %p111, %p112
    %s115 = sadd.s32 %s114, 1
    %p118 = scmp.eq.s32.totalorder %s10, 7
    %p119 = scmp.ne.s32.totalorder %s114, %s116
    %p120 = scmp.eq.s32.totalorder %s10, 0
    %p121 = por %p119, %p120
    %p122 = scmp.ne.s32.totalorder %s114, %s116
    %p123 = scmp.eq.s32.totalorder %s15, 7
    %p124 = por %p122, %p123
    %p125 = scmp.ne.s32.totalorder %s116, %s117
    %p126 = scmp.eq.s32.totalorder %s15, 0
    %p127 = por %p125, %p126
    %p128 = scmp.ne.s32.totalorder %s116, %s117
    %p129 = scmp.eq.s32.totalorder %s16, 7
    %p130 = por %p128, %p129
    %p132 = scmp.ne.s32.totalorder %s117, %s131
    %p133 = scmp.eq.s32.totalorder %s16, 0
    %p134 = por %p132, %p133
    %s135 = ssub.s32 %s17, %s36
    %s136 = ssub.s32 %s18, %s32
    %s137 = sor.u32 %s135, %s136
    %p138 = scmp.eq.s32.totalorder %s137, 0
    %s140 = sadd.s32 %s139, 1
    %s141 = scalar_select %p138, %s139, %s140
    %p144 = pneg %p138
    %p145 = scmp.eq.s32.totalorder %s10, 7
    %p146 = por %p144, %p145
    %p147 = scmp.ne.s32.totalorder %s139, %s142
    %p148 = scmp.eq.s32.totalorder %s10, 0
    %p149 = por %p147, %p148
    %p150 = scmp.ne.s32.totalorder %s139, %s142
    %p151 = scmp.eq.s32.totalorder %s15, 7
    %p152 = por %p150, %p151
    %p153 = scmp.ne.s32.totalorder %s142, %s143
    %p154 = scmp.eq.s32.totalorder %s15, 0
    %p155 = por %p153, %p154
    %p156 = scmp.ne.s32.totalorder %s142, %s143
    %p157 = scmp.eq.s32.totalorder %s16, 7
    %p158 = por %p156, %p157
    %p160 = scmp.ne.s32.totalorder %s143, %s159
    %p161 = scmp.eq.s32.totalorder %s16, 0
    %p162 = por %p160, %p161
    %p163 = scmp.le.s32.totalorder 1, %s10
    %p164 = scmp.lt.s32.totalorder %s10, 9
    %p165 = pnand %p163, %p164
    %p166 = pneg %p165
    // Predicated region
    $region9: #{mixed4a_forward.8} parent=5 // pred_check
      _
    $region10: #{mixed4a_forward.8} parent=5 // pred_check_branch
      %168 = sbr.rel (%p165) target = $region12
    $region11: #{mixed4a_forward.8} parent=5 // pred_region
      %s169 = ssub.s32 %s10, 1
      // Predicated region
      $region13: #{mixed4a_forward.8} parent=11 // pred_check
        %p170 = pneg %p85
      $region14: #{mixed4a_forward.8} parent=11 // pred_check_branch
        %172 = sbr.rel (%p170) target = $region16
      $region15: #{mixed4a_forward.8} parent=11 // pred_region
        %p173 = scmp.lt.s32.totalorder %s22, 0
        %s174 = scalar_select %p173, %s22, 0
        %s175 = smul.addr %s174, 56
        %s176 = smul.addr %s175, 4
        %s177 = scalar_lea.vmem %s1, %s176
      $region16: #{mixed4a_forward.8} parent=11 // pred_fallthru
        _
      // Predicated region
      $region17: #{mixed4a_forward.8} parent=11 // pred_check
        %p178 = pneg %p106
      $region18: #{mixed4a_forward.8} parent=11 // pred_check_branch
        %180 = sbr.rel (%p178) target = $region20
      $region19: #{mixed4a_forward.8} parent=11 // pred_region
        _
      $region20: #{mixed4a_forward.8} parent=11 // pred_fallthru
        _
      // Predicated region
      $region21: #{mixed4a_forward.8} parent=11 // pred_check
        %p181 = pneg %p127
      $region22: #{mixed4a_forward.8} parent=11 // pred_check_branch
        %183 = sbr.rel (%p181) target = $region24
      $region23: #{mixed4a_forward.8} parent=11 // pred_region
        _
      $region24: #{mixed4a_forward.8} parent=11 // pred_fallthru
        _
    $region12: #{mixed4a_forward.8} parent=5 // pred_fallthru
      _
    %p184 = scmp.lt.s32.totalorder %s10, 8
    // Predicated region
    $region25: #{mixed4a_forward.8} parent=5 // pred_check
      %p185 = pneg %p184
    $region26: #{mixed4a_forward.8} parent=5 // pred_check_branch
      %187 = sbr.rel (%p185) target = $region28
    $region27: #{mixed4a_forward.8} parent=5 // pred_region
      // Predicated region
      $region29: #{mixed4a_forward.8} parent=27 // pred_check
        %p188 = pneg %p53
      $region30: #{mixed4a_forward.8} parent=27 // pred_check_branch
        %190 = sbr.rel (%p188) target = $region32
      $region31: #{mixed4a_forward.8} parent=27 // pred_region
        %s191 = sadd.s32 %s18, %s19
        %p192 = scmp.lt.s32.totalorder %s17, 1
        %s193 = scalar_select %p192, %s17, 1
        %p194 = scmp.lt.s32.totalorder %s191, 3
        %s195 = scalar_select %p194, %s191, 3
        %s196 = smul.addr %s195, 14
        %s197 = smul.addr %s193, 56
        %s198 = sadd.s32 %s196, %s197
        %s199 = smul.addr %s198, 4
        %s200 = scalar_lea.vmem %s0, %s199
        %s201 = sadd.s32 %s18, %s19
      $region32: #{mixed4a_forward.8} parent=27 // pred_fallthru
        _
    $region28: #{mixed4a_forward.8} parent=5 // pred_fallthru
      _
    %p202 = scmp.le.s32.totalorder 1, %s10
    %p203 = scmp.lt.s32.totalorder %s10, 9
    %p204 = pnand %p202, %p203
    %p205 = pneg %p204
    // Predicated region
    $region33: #{mixed4a_forward.8} parent=5 // pred_check
      _
    $region34: #{mixed4a_forward.8} parent=5 // pred_check_branch
      %207 = sbr.rel (%p204) target = $region36
    $region35: #{mixed4a_forward.8} parent=5 // pred_region
      %s208 = ssub.s32 %s10, 1
      %s209 = sadd.s32 %s21, %s22
      %p210 = scmp.lt.s32.totalorder %s20, 1
      %s211 = scalar_select %p210, %s20, 1
      %p212 = scmp.lt.s32.totalorder %s209, 3
      %s213 = scalar_select %p212, %s209, 3
      %s214 = smul.addr %s213, 14
      %s215 = smul.addr %s211, 56
      %s216 = sadd.s32 %s214, %s215
      %s217 = smul.addr %s216, 4
      %s218 = scalar_lea.vmem %s0, %s217
      %p219 = pneg %p59
      %p220 = pneg %p56
      %p221 = scmp.lt.s32.totalorder %s22, 0
      %s222 = scalar_select %p221, %s22, 0
      %s223 = smul.addr %s222, 56
      %s224 = smul.addr %s223, 4
      %s225 = scalar_lea.vmem %s1, %s224
      %p226 = pneg %p85
      %p227 = pneg %p82
      %p228 = pneg %p106
      %p229 = pneg %p103
      %p230 = pneg %p127
      %p231 = pneg %p124
      %p232 = pneg %p155
      %p233 = pneg %p152
      %p234 = scmp.lt.s32.totalorder %s20, 1
      %s235 = scalar_select %p234, %s20, 1
      %p236 = scmp.lt.s32.totalorder %s21, 3
      %s237 = scalar_select %p236, %s21, 3
      %s238 = smul.addr %s237, 8
      %s239 = smul.addr %s235, 32
      %s240 = sadd.s32 %s238, %s239
      %s241 = smul.addr %s240, 4
      %s242 = scalar_lea.vmem %s4, %s241
      %s243 = sadd.s32 %s21, %s22
      %p244 = scmp.lt.s32.totalorder %s20, 1
      %s245 = scalar_select %p244, %s20, 1
      %p246 = scmp.lt.s32.totalorder %s243, 3
      %s247 = scalar_select %p246, %s243, 3
      %s248 = smul.addr %s247, 14
      %s249 = smul.addr %s245, 56
      %s250 = sadd.s32 %s248, %s249
      %s251 = smul.addr %s250, 4
      %s252 = scalar_lea.vmem %s0, %s251
      %s253 = sadd.s32 %s21, %s22
      %p254 = scmp.lt.s32.totalorder %s22, 0
      %s255 = scalar_select %p254, %s22, 0
      %s256 = smul.addr %s255, 56
      %s257 = smul.addr %s256, 4
      %s258 = scalar_lea.vmem %s1, %s257
      %p259 = scmp.lt.s32.totalorder %s20, 1
      %s260 = scalar_select %p259, %s20, 1
      %p261 = scmp.lt.s32.totalorder %s21, 3
      %s262 = scalar_select %p261, %s21, 3
      %s263 = smul.addr %s262, 8
      %s264 = smul.addr %s260, 32
      %s265 = sadd.s32 %s263, %s264
      %s266 = smul.addr %s265, 4
      %s267 = scalar_lea.vmem %s4, %s266
      %p269 = scmp.eq.s32.totalorder %s22, 0
      // Predicated region
      $region37: #{mixed4a_forward.8} parent=35 // pred_check
        %p270 = pneg %p269
      $region38: #{mixed4a_forward.8} parent=35 // pred_check_branch
        %272 = sbr.rel (%p270) target = $region40
      $region39: #{mixed4a_forward.8} parent=35 // pred_region
        %vm273 = vcmask 523264
        %274 = vst.msk [vmem:[#allocation2] sm:$0xff] %vm273, 0.0
        %275 = vst.msk [vmem:[#allocation2 + $0x8] sm:$0xff] %vm273, 0.0
        %276 = vst.msk [vmem:[#allocation2 + $0x10] sm:$0xff] %vm273, 0.0
        %277 = vst.msk [vmem:[#allocation2 + $0x18] sm:$0xff] %vm273, 0.0
        %278 = vst.msk [vmem:[#allocation2 + $0x20] sm:$0xff] %vm273, 0.0
        %279 = vst.msk [vmem:[#allocation2 + $0x28] sm:$0xff] %vm273, 0.0
        %280 = vst.msk [vmem:[#allocation2 + $0x30] sm:$0xff] %vm273, 0.0
        %281 = vst.msk [vmem:[#allocation2 + $0x38] sm:$0xff] %vm273, 0.0
      $region40: #{mixed4a_forward.8} parent=35 // pred_fallthru
        _
      %v282 = vld [vmem:[%s252] sm:$0xf]
      %v283 = vld [vmem:[%s252 + $0x4] sm:$0xf]
      %v284 = vld [vmem:[%s252 + $0x8] sm:$0xf]
      %v285 = vld [vmem:[%s252 + $0xc] sm:$0xf]
      %v286 = vld [vmem:[%s252 + $0x10] sm:$0xf]
      %v287 = vld [vmem:[%s252 + $0x14] sm:$0xf]
      %v288 = vld [vmem:[%s252 + $0x18] sm:$0xf]
      %v289 = vld [vmem:[%s252 + $0x1c] sm:$0xf]
      %v298 = vunpack.c.l.b16 %v282
      %v299 = vunpack.c.l.b16 %v283
      %v300 = vunpack.c.l.b16 %v284
      %v301 = vunpack.c.l.b16 %v285
      %v302 = vunpack.c.l.b16 %v286
      %v303 = vunpack.c.l.b16 %v287
      %v304 = vunpack.c.l.b16 %v288
      %v305 = vunpack.c.l.b16 %v289
      %v306 = vpack.c.b16 %v299, %v298
      %v307 = vpack.c.b16 %v301, %v300
      %v308 = vpack.c.b16 %v303, %v302
      %v309 = vpack.c.b16 %v305, %v304
      %vm314 = vcmask 523264
      %315 = vst.msk [vmem:[#allocation3] sm:$0xff] %vm314, %v306
      %316 = vst.msk [vmem:[#allocation3 + $0x20] sm:$0xff] %vm314, %v307
      %317 = vst.msk [vmem:[#allocation3 + $0x40] sm:$0xff] %vm314, %v308
      %318 = vst.msk [vmem:[#allocation3 + $0x60] sm:$0xff] %vm314, %v309
      %v319 = vld [vmem:[%s252 + $0x4] sm:$0xf]
      %v320 = vld [vmem:[%s252 + $0x8] sm:$0xf]
      %v321 = vld [vmem:[%s252 + $0xc] sm:$0xf]
      %v322 = vld [vmem:[%s252 + $0x10] sm:$0xf]
      %v323 = vld [vmem:[%s252 + $0x14] sm:$0xf]
      %v324 = vld [vmem:[%s252 + $0x18] sm:$0xf]
      %v325 = vld [vmem:[%s252 + $0x1c] sm:$0xf]
      %v326 = vld [vmem:[%s252 + $0x20] sm:$0xf]
      %v335 = vunpack.c.l.b16 %v319
      %v336 = vunpack.c.l.b16 %v320
      %v337 = vunpack.c.l.b16 %v321
      %v338 = vunpack.c.l.b16 %v322
      %v339 = vunpack.c.l.b16 %v323
      %v340 = vunpack.c.l.b16 %v324
      %v341 = vunpack.c.l.b16 %v325
      %v342 = vunpack.c.l.b16 %v326
      %v343 = vpack.c.b16 %v336, %v335
      %v344 = vpack.c.b16 %v338, %v337
      %v345 = vpack.c.b16 %v340, %v339
      %v346 = vpack.c.b16 %v342, %v341
      %347 = vrot.lane.b32.xlu0 %v343, 64
      %v348 = vpop.permute.xlu0 %347
      %349 = vrot.lane.b32.xlu0 %v344, 64
      %v350 = vpop.permute.xlu0 %349
      %351 = vrot.lane.b32.xlu0 %v345, 64
      %v352 = vpop.permute.xlu0 %351
      %353 = vrot.lane.b32.xlu0 %v346, 64
      %v354 = vpop.permute.xlu0 %353
      %vm359 = vcmask 1048064
      %360 = vst.msk [vmem:[#allocation3] sm:$0xff] %vm359, %v348
      %361 = vst.msk [vmem:[#allocation3 + $0x20] sm:$0xff] %vm359, %v350
      %362 = vst.msk [vmem:[#allocation3 + $0x40] sm:$0xff] %vm359, %v352
      %363 = vst.msk [vmem:[#allocation3 + $0x60] sm:$0xff] %vm359, %v354
      %v364 = vld [vmem:[%s252 + $0x8] sm:$0xf]
      %v365 = vld [vmem:[%s252 + $0xc] sm:$0xf]
      %v366 = vld [vmem:[%s252 + $0x10] sm:$0xf]
      %v367 = vld [vmem:[%s252 + $0x14] sm:$0xf]
      %v368 = vld [vmem:[%s252 + $0x18] sm:$0xf]
      %v369 = vld [vmem:[%s252 + $0x1c] sm:$0xf]
      %v370 = vld [vmem:[%s252 + $0x20] sm:$0xf]
      %v371 = vld [vmem:[%s252 + $0x24] sm:$0xf]
      %v380 = vunpack.c.l.b16 %v364
      %v381 = vunpack.c.l.b16 %v365
      %v382 = vunpack.c.l.b16 %v366
      %v383 = vunpack.c.l.b16 %v367
      %v384 = vunpack.c.l.b16 %v368
      %v385 = vunpack.c.l.b16 %v369
      %v386 = vunpack.c.l.b16 %v370
      %v387 = vunpack.c.l.b16 %v371
      %v388 = vpack.c.b16 %v381, %v380
      %v389 = vpack.c.b16 %v383, %v382
      %v390 = vpack.c.b16 %v385, %v384
      %v391 = vpack.c.b16 %v387, %v386
      %396 = vst.msk [vmem:[#allocation3 + $0x8] sm:$0xff] %vm314, %v388
      %397 = vst.msk [vmem:[#allocation3 + $0x28] sm:$0xff] %vm314, %v389
      %398 = vst.msk [vmem:[#allocation3 + $0x48] sm:$0xff] %vm314, %v390
      %399 = vst.msk [vmem:[#allocation3 + $0x68] sm:$0xff] %vm314, %v391
      %v400 = vld [vmem:[%s252 + $0xc] sm:$0xf]
      %v401 = vld [vmem:[%s252 + $0x10] sm:$0xf]
      %v402 = vld [vmem:[%s252 + $0x14] sm:$0xf]
      %v403 = vld [vmem:[%s252 + $0x18] sm:$0xf]
      %v404 = vld [vmem:[%s252 + $0x1c] sm:$0xf]
      %v405 = vld [vmem:[%s252 + $0x20] sm:$0xf]
      %v406 = vld [vmem:[%s252 + $0x24] sm:$0xf]
      %v407 = vld [vmem:[%s252 + $0x28] sm:$0xf]
      %v416 = vunpack.c.l.b16 %v400
      %v417 = vunpack.c.l.b16 %v401
      %v418 = vunpack.c.l.b16 %v402
      %v419 = vunpack.c.l.b16 %v403
      %v420 = vunpack.c.l.b16 %v404
      %v421 = vunpack.c.l.b16 %v405
      %v422 = vunpack.c.l.b16 %v406
      %v423 = vunpack.c.l.b16 %v407
      %v424 = vpack.c.b16 %v417, %v416
      %v425 = vpack.c.b16 %v419, %v418
      %v426 = vpack.c.b16 %v421, %v420
      %v427 = vpack.c.b16 %v423, %v422
      %428 = vrot.lane.b32.xlu0 %v424, 64
      %v429 = vpop.permute.xlu0 %428
      %430 = vrot.lane.b32.xlu0 %v425, 64
      %v431 = vpop.permute.xlu0 %430
      %432 = vrot.lane.b32.xlu0 %v426, 64
      %v433 = vpop.permute.xlu0 %432
      %434 = vrot.lane.b32.xlu0 %v427, 64
      %v435 = vpop.permute.xlu0 %434
      %440 = vst.msk [vmem:[#allocation3 + $0x8] sm:$0xff] %vm359, %v429
      %441 = vst.msk [vmem:[#allocation3 + $0x28] sm:$0xff] %vm359, %v431
      %442 = vst.msk [vmem:[#allocation3 + $0x48] sm:$0xff] %vm359, %v433
      %443 = vst.msk [vmem:[#allocation3 + $0x68] sm:$0xff] %vm359, %v435
      %v444 = vld [vmem:[%s252 + $0x10] sm:$0xf]
      %v445 = vld [vmem:[%s252 + $0x14] sm:$0xf]
      %v446 = vld [vmem:[%s252 + $0x18] sm:$0xf]
      %v447 = vld [vmem:[%s252 + $0x1c] sm:$0xf]
      %v448 = vld [vmem:[%s252 + $0x20] sm:$0xf]
      %v449 = vld [vmem:[%s252 + $0x24] sm:$0xf]
      %v450 = vld [vmem:[%s252 + $0x28] sm:$0xf]
      %v451 = vld [vmem:[%s252 + $0x2c] sm:$0xf]
      %v460 = vunpack.c.l.b16 %v444
      %v461 = vunpack.c.l.b16 %v445
      %v462 = vunpack.c.l.b16 %v446
      %v463 = vunpack.c.l.b16 %v447
      %v464 = vunpack.c.l.b16 %v448
      %v465 = vunpack.c.l.b16 %v449
      %v466 = vunpack.c.l.b16 %v450
      %v467 = vunpack.c.l.b16 %v451
      %v468 = vpack.c.b16 %v461, %v460
      %v469 = vpack.c.b16 %v463, %v462
      %v470 = vpack.c.b16 %v465, %v464
      %v471 = vpack.c.b16 %v467, %v466
      %476 = vst.msk [vmem:[#allocation3 + $0x10] sm:$0xff] %vm314, %v468
      %477 = vst.msk [vmem:[#allocation3 + $0x30] sm:$0xff] %vm314, %v469
      %478 = vst.msk [vmem:[#allocation3 + $0x50] sm:$0xff] %vm314, %v470
      %479 = vst.msk [vmem:[#allocation3 + $0x70] sm:$0xff] %vm314, %v471
      %v480 = vld [vmem:[%s252 + $0x14] sm:$0xf]
      %v481 = vld [vmem:[%s252 + $0x18] sm:$0xf]
      %v482 = vld [vmem:[%s252 + $0x1c] sm:$0xf]
      %v483 = vld [vmem:[%s252 + $0x20] sm:$0xf]
      %v484 = vld [vmem:[%s252 + $0x24] sm:$0xf]
      %v485 = vld [vmem:[%s252 + $0x28] sm:$0xf]
      %v486 = vld [vmem:[%s252 + $0x2c] sm:$0xf]
      %v487 = vld [vmem:[%s252 + $0x30] sm:$0xf]
      %v496 = vunpack.c.l.b16 %v480
      %v497 = vunpack.c.l.b16 %v481
      %v498 = vunpack.c.l.b16 %v482
      %v499 = vunpack.c.l.b16 %v483
      %v500 = vunpack.c.l.b16 %v484
      %v501 = vunpack.c.l.b16 %v485
      %v502 = vunpack.c.l.b16 %v486
      %v503 = vunpack.c.l.b16 %v487
      %v504 = vpack.c.b16 %v497, %v496
      %v505 = vpack.c.b16 %v499, %v498
      %v506 = vpack.c.b16 %v501, %v500
      %v507 = vpack.c.b16 %v503, %v502
      %508 = vrot.lane.b32.xlu0 %v504, 64
      %v509 = vpop.permute.xlu0 %508
      %510 = vrot.lane.b32.xlu0 %v505, 64
      %v511 = vpop.permute.xlu0 %510
      %512 = vrot.lane.b32.xlu0 %v506, 64
      %v513 = vpop.permute.xlu0 %512
      %514 = vrot.lane.b32.xlu0 %v507, 64
      %v515 = vpop.permute.xlu0 %514
      %520 = vst.msk [vmem:[#allocation3 + $0x10] sm:$0xff] %vm359, %v509
      %521 = vst.msk [vmem:[#allocation3 + $0x30] sm:$0xff] %vm359, %v511
      %522 = vst.msk [vmem:[#allocation3 + $0x50] sm:$0xff] %vm359, %v513
      %523 = vst.msk [vmem:[#allocation3 + $0x70] sm:$0xff] %vm359, %v515
      %v524 = vld [vmem:[%s252 + $0x18] sm:$0xf]
      %v525 = vld [vmem:[%s252 + $0x1c] sm:$0xf]
      %v526 = vld [vmem:[%s252 + $0x20] sm:$0xf]
      %v527 = vld [vmem:[%s252 + $0x24] sm:$0xf]
      %v528 = vld [vmem:[%s252 + $0x28] sm:$0xf]
      %v529 = vld [vmem:[%s252 + $0x2c] sm:$0xf]
      %v530 = vld [vmem:[%s252 + $0x30] sm:$0xf]
      %v531 = vld [vmem:[%s252 + $0x34] sm:$0xf]
      %v540 = vunpack.c.l.b16 %v524
      %v541 = vunpack.c.l.b16 %v525
      %v542 = vunpack.c.l.b16 %v526
      %v543 = vunpack.c.l.b16 %v527
      %v544 = vunpack.c.l.b16 %v528
      %v545 = vunpack.c.l.b16 %v529
      %v546 = vunpack.c.l.b16 %v530
      %v547 = vunpack.c.l.b16 %v531
      %v548 = vpack.c.b16 %v541, %v540
      %v549 = vpack.c.b16 %v543, %v542
      %v550 = vpack.c.b16 %v545, %v544
      %v551 = vpack.c.b16 %v547, %v546
      %556 = vst.msk [vmem:[#allocation3 + $0x18] sm:$0xff] %vm314, %v548
      %557 = vst.msk [vmem:[#allocation3 + $0x38] sm:$0xff] %vm314, %v549
      %558 = vst.msk [vmem:[#allocation3 + $0x58] sm:$0xff] %vm314, %v550
      %559 = vst.msk [vmem:[#allocation3 + $0x78] sm:$0xff] %vm314, %v551
      %v560 = vld [vmem:[#allocation2] sm:$0xff]
      %v561 = vld [vmem:[#allocation2 + $0x8] sm:$0xff]
      %v562 = vld [vmem:[#allocation2 + $0x10] sm:$0xff]
      %v563 = vld [vmem:[#allocation2 + $0x18] sm:$0xff]
      %v564 = vld [vmem:[#allocation2 + $0x20] sm:$0xff]
      %v565 = vld [vmem:[#allocation2 + $0x28] sm:$0xff]
      %v566 = vld [vmem:[#allocation2 + $0x30] sm:$0xff]
      %v567 = vld [vmem:[#allocation2 + $0x38] sm:$0xff]
      %v568 = vld [vmem:[#allocation3] sm:$0xff]
      %v569 = vld [vmem:[#allocation3 + $0x8] sm:$0xff]
      %v570 = vld [vmem:[#allocation3 + $0x10] sm:$0xff]
      %v571 = vld [vmem:[#allocation3 + $0x18] sm:$0xff]
      %v572 = vld [vmem:[#allocation3 + $0x20] sm:$0xff]
      %v573 = vld [vmem:[#allocation3 + $0x28] sm:$0xff]
      %v574 = vld [vmem:[#allocation3 + $0x30] sm:$0xff]
      %v575 = vld [vmem:[#allocation3 + $0x38] sm:$0xff]
      %v576 = vld [vmem:[#allocation3 + $0x40] sm:$0xff]
      %v577 = vld [vmem:[#allocation3 + $0x48] sm:$0xff]
      %v578 = vld [vmem:[#allocation3 + $0x50] sm:$0xff]
      %v579 = vld [vmem:[#allocation3 + $0x58] sm:$0xff]
      %v580 = vld [vmem:[#allocation3 + $0x60] sm:$0xff]
      %v581 = vld [vmem:[#allocation3 + $0x68] sm:$0xff]
      %v582 = vld [vmem:[#allocation3 + $0x70] sm:$0xff]
      %v583 = vld [vmem:[#allocation3 + $0x78] sm:$0xff]
      %v584 = vld [vmem:[%s258] sm:$0xf]
      %v585 = vld [vmem:[%s258 + $0x4] sm:$0xf]
      %v586 = vld [vmem:[%s258 + $0x8] sm:$0xf]
      %v587 = vld [vmem:[%s258 + $0xc] sm:$0xf]
      %v588 = vld [vmem:[%s258 + $0x10] sm:$0xf]
      %v589 = vld [vmem:[%s258 + $0x14] sm:$0xf]
      %v590 = vld [vmem:[%s258 + $0x18] sm:$0xf]
      %v591 = vld [vmem:[%s258 + $0x1c] sm:$0xf]
      %v592 = vld [vmem:[%s258 + $0x20] sm:$0xf]
      %v593 = vld [vmem:[%s258 + $0x24] sm:$0xf]
      %v594 = vld [vmem:[%s258 + $0x28] sm:$0xf]
      %v595 = vld [vmem:[%s258 + $0x2c] sm:$0xf]
      %v596 = vld [vmem:[%s258 + $0x30] sm:$0xf]
      %v597 = vld [vmem:[%s258 + $0x34] sm:$0xf]
      %v598 = vld [vmem:[%s258 + $0x38] sm:$0xf]
      %v599 = vld [vmem:[%s258 + $0x3c] sm:$0xf]
      %v600 = vld [vmem:[%s258 + $0x40] sm:$0xf]
      %v601 = vld [vmem:[%s258 + $0x44] sm:$0xf]
      %v602 = vld [vmem:[%s258 + $0x48] sm:$0xf]
      %v603 = vld [vmem:[%s258 + $0x4c] sm:$0xf]
      %v604 = vld [vmem:[%s258 + $0x50] sm:$0xf]
      %v605 = vld [vmem:[%s258 + $0x54] sm:$0xf]
      %v606 = vld [vmem:[%s258 + $0x58] sm:$0xf]
      %v607 = vld [vmem:[%s258 + $0x5c] sm:$0xf]
      %v608 = vld [vmem:[%s258 + $0x60] sm:$0xf]
      %v609 = vld [vmem:[%s258 + $0x64] sm:$0xf]
      %v610 = vld [vmem:[%s258 + $0x68] sm:$0xf]
      %v611 = vld [vmem:[%s258 + $0x6c] sm:$0xf]
      %v612 = vld [vmem:[%s258 + $0x70] sm:$0xf]
      %v613 = vld [vmem:[%s258 + $0x74] sm:$0xf]
      %v614 = vld [vmem:[%s258 + $0x78] sm:$0xf]
      %v615 = vld [vmem:[%s258 + $0x7c] sm:$0xf]
      %v616 = vld [vmem:[%s258 + $0x80] sm:$0xf]
      %v617 = vld [vmem:[%s258 + $0x84] sm:$0xf]
      %v618 = vld [vmem:[%s258 + $0x88] sm:$0xf]
      %v619 = vld [vmem:[%s258 + $0x8c] sm:$0xf]
      %v620 = vld [vmem:[%s258 + $0x90] sm:$0xf]
      %v621 = vld [vmem:[%s258 + $0x94] sm:$0xf]
      %v622 = vld [vmem:[%s258 + $0x98] sm:$0xf]
      %v623 = vld [vmem:[%s258 + $0x9c] sm:$0xf]
      %v624 = vld [vmem:[%s258 + $0xa0] sm:$0xf]
      %v625 = vld [vmem:[%s258 + $0xa4] sm:$0xf]
      %v626 = vld [vmem:[%s258 + $0xa8] sm:$0xf]
      %v627 = vld [vmem:[%s258 + $0xac] sm:$0xf]
      %v628 = vld [vmem:[%s258 + $0xb0] sm:$0xf]
      %v629 = vld [vmem:[%s258 + $0xb4] sm:$0xf]
      %v630 = vld [vmem:[%s258 + $0xb8] sm:$0xf]
      %v631 = vld [vmem:[%s258 + $0xbc] sm:$0xf]
      %v632 = vld [vmem:[%s258 + $0xc0] sm:$0xf]
      %v633 = vld [vmem:[%s258 + $0xc4] sm:$0xf]
      %v634 = vld [vmem:[%s258 + $0xc8] sm:$0xf]
      %v635 = vld [vmem:[%s258 + $0xcc] sm:$0xf]
      %v636 = vld [vmem:[%s258 + $0xd0] sm:$0xf]
      %v637 = vld [vmem:[%s258 + $0xd4] sm:$0xf]
      %v638 = vld [vmem:[%s258 + $0xd8] sm:$0xf]
      %v639 = vld [vmem:[%s258 + $0xdc] sm:$0xf]
      %v696 = vunpack.c.l.b16 %v584
      %v697 = vunpack.c.l.b16 %v585
      %v698 = vunpack.c.l.b16 %v586
      %v699 = vunpack.c.l.b16 %v587
      %v700 = vunpack.c.l.b16 %v588
      %v701 = vunpack.c.l.b16 %v589
      %v702 = vunpack.c.l.b16 %v590
      %v703 = vunpack.c.l.b16 %v591
      %v704 = vunpack.c.l.b16 %v592
      %v705 = vunpack.c.l.b16 %v593
      %v706 = vunpack.c.l.b16 %v594
      %v707 = vunpack.c.l.b16 %v595
      %v708 = vunpack.c.l.b16 %v596
      %v709 = vunpack.c.l.b16 %v597
      %v710 = vunpack.c.l.b16 %v598
      %v711 = vunpack.c.l.b16 %v599
      %v712 = vunpack.c.l.b16 %v600
      %v713 = vunpack.c.l.b16 %v601
      %v714 = vunpack.c.l.b16 %v602
      %v715 = vunpack.c.l.b16 %v603
      %v716 = vunpack.c.l.b16 %v604
      %v717 = vunpack.c.l.b16 %v605
      %v718 = vunpack.c.l.b16 %v606
      %v719 = vunpack.c.l.b16 %v607
      %v720 = vunpack.c.l.b16 %v608
      %v721 = vunpack.c.l.b16 %v609
      %v722 = vunpack.c.l.b16 %v610
      %v723 = vunpack.c.l.b16 %v611
      %v724 = vunpack.c.l.b16 %v612
      %v725 = vunpack.c.l.b16 %v613
      %v726 = vunpack.c.l.b16 %v614
      %v727 = vunpack.c.l.b16 %v615
      %v728 = vunpack.c.l.b16 %v616
      %v729 = vunpack.c.l.b16 %v617
      %v730 = vunpack.c.l.b16 %v618
      %v731 = vunpack.c.l.b16 %v619
      %v732 = vunpack.c.l.b16 %v620
      %v733 = vunpack.c.l.b16 %v621
      %v734 = vunpack.c.l.b16 %v622
      %v735 = vunpack.c.l.b16 %v623
      %v736 = vunpack.c.l.b16 %v624
      %v737 = vunpack.c.l.b16 %v625
      %v738 = vunpack.c.l.b16 %v626
      %v739 = vunpack.c.l.b16 %v627
      %v740 = vunpack.c.l.b16 %v628
      %v741 = vunpack.c.l.b16 %v629
      %v742 = vunpack.c.l.b16 %v630
      %v743 = vunpack.c.l.b16 %v631
      %v744 = vunpack.c.l.b16 %v632
      %v745 = vunpack.c.l.b16 %v633
      %v746 = vunpack.c.l.b16 %v634
      %v747 = vunpack.c.l.b16 %v635
      %v748 = vunpack.c.l.b16 %v636
      %v749 = vunpack.c.l.b16 %v637
      %v750 = vunpack.c.l.b16 %v638
      %v751 = vunpack.c.l.b16 %v639
      %v752 = vpack.c.b16 %v697, %v696
      %v753 = vpack.c.b16 %v699, %v698
      %v754 = vpack.c.b16 %v701, %v700
      %v755 = vpack.c.b16 %v703, %v702
      %v756 = vpack.c.b16 %v705, %v704
      %v757 = vpack.c.b16 %v707, %v706
      %v758 = vpack.c.b16 %v709, %v708
      %v759 = vpack.c.b16 %v711, %v710
      %v760 = vpack.c.b16 %v713, %v712
      %v761 = vpack.c.b16 %v715, %v714
      %v762 = vpack.c.b16 %v717, %v716
      %v763 = vpack.c.b16 %v719, %v718
      %v764 = vpack.c.b16 %v721, %v720
      %v765 = vpack.c.b16 %v723, %v722
      %v766 = vpack.c.b16 %v725, %v724
      %v767 = vpack.c.b16 %v727, %v726
      %v768 = vpack.c.b16 %v729, %v728
      %v769 = vpack.c.b16 %v731, %v730
      %v770 = vpack.c.b16 %v733, %v732
      %v771 = vpack.c.b16 %v735, %v734
      %v772 = vpack.c.b16 %v737, %v736
      %v773 = vpack.c.b16 %v739, %v738
      %v774 = vpack.c.b16 %v741, %v740
      %v775 = vpack.c.b16 %v743, %v742
      %v776 = vpack.c.b16 %v745, %v744
      %v777 = vpack.c.b16 %v747, %v746
      %v778 = vpack.c.b16 %v749, %v748
      %v779 = vpack.c.b16 %v751, %v750
      %v809 = vsel %vm314, %v571, 0
      %v812 = vsel %vm314, %v575, 0
      %v815 = vsel %vm314, %v579, 0
      %v818 = vsel %vm314, %v583, 0
      %820 = vmatprep.subr.bf16.mxu0 0
      %821 = vmatpush1.bf16.msra.mxu0 %v752
      %822 = vmatprep.subr.bf16.mxu0 0
      %823 = vmatpush1.bf16.msra.mxu0 %v753
      %824 = vmatprep.subr.bf16.mxu0 0
      %825 = vmatpush1.bf16.msra.mxu0 %v754
      %826 = vmatprep.subr.bf16.mxu0 0
      %827 = vmatpush1.bf16.msra.mxu0 %v755
      %828 = vmatprep.subr.bf16.mxu0 0
      %829 = vmatpush1.bf16.msra.mxu0 %v756
      %830 = vmatprep.subr.bf16.mxu0 0
      %831 = vmatpush1.bf16.msra.mxu0 %v757
      %832 = vmatprep.subr.bf16.mxu0 0
      %833 = vmatpush1.bf16.msra.mxu0 %v758
      %834 = vmatprep.subr.bf16.mxu0 0
      %835 = vmatpush1.bf16.msra.mxu0 %v759
      %836 = vmatprep.subr.bf16.mxu0 0
      %837 = vmatpush1.bf16.msra.mxu0 %v760
      %838 = vmatprep.subr.bf16.mxu0 0
      %839 = vmatpush1.bf16.msra.mxu0 %v761
      %840 = vmatprep.subr.bf16.mxu0 0
      %841 = vmatpush1.bf16.msra.mxu0 %v762
      %842 = vmatprep.subr.bf16.mxu0 0
      %843 = vmatpush1.bf16.msra.mxu0 %v763
      %844 = vmatprep.subr.bf16.mxu0 0
      %845 = vmatpush1.bf16.msra.mxu0 %v764
      %846 = vmatprep.subr.bf16.mxu0 0
      %847 = vmatpush1.bf16.msra.mxu0 %v765
      %848 = vmatprep.subr.bf16.mxu0 0
      %849 = vmatpush1.bf16.msra.mxu0 %v766
      %850 = vmatprep.subr.bf16.mxu0 0
      %851 = vmatpush1.bf16.msra.mxu0 %v767
      %852 = vmatprep.mubr.bf16.mxu0 %v569
      %853 = vmatmul.mubr.bf16.gmra.mrb[0].mxu0 %v568
      %v854 = vpop.f32.mrb[0].mxu0
      %v855 = vadd.f32 0.0, %v854
      %v856 = vpop.f32.mrb[0].mxu0
      %v857 = vpop.f32.mrb[0].mxu0
      %v858 = vadd.f32 0.0, %v857
      %v859 = vpop.f32.mrb[0].mxu0
      %860 = vmatprep.mubr.bf16.mxu0 %v573
      %861 = vmatmul.mubr.bf16.gmra.mrb[0].mxu0 %v572
      %v862 = vpop.f32.mrb[0].mxu0
      %v863 = vadd.f32 0.0, %v862
      %v864 = vpop.f32.mrb[0].mxu0
      %v865 = vpop.f32.mrb[0].mxu0
      %v866 = vadd.f32 0.0, %v865
      %v867 = vpop.f32.mrb[0].mxu0
      %868 = vmatprep.mubr.bf16.mxu0 %v577
      %869 = vmatmul.mubr.bf16.gmra.mrb[0].mxu0 %v576
      %v870 = vpop.f32.mrb[0].mxu0
      %v871 = vadd.f32 0.0, %v870
      %v872 = vpop.f32.mrb[0].mxu0
      %v873 = vpop.f32.mrb[0].mxu0
      %v874 = vadd.f32 0.0, %v873
      %v875 = vpop.f32.mrb[0].mxu0
      %876 = vmatprep.mubr.bf16.mxu0 %v581
      %877 = vmatmul.mubr.bf16.gmra.mrb[0].mxu0 %v580
      %v878 = vpop.f32.mrb[0].mxu0
      %v879 = vadd.f32 0.0, %v878
      %v880 = vpop.f32.mrb[0].mxu0
      %v881 = vpop.f32.mrb[0].mxu0
      %v882 = vadd.f32 0.0, %v881
      %v883 = vpop.f32.mrb[0].mxu0
      %884 = vdwg.mxu0
      %885 = vmatprep.subr.bf16.mxu0 0
      %886 = vmatpush1.bf16.msra.mxu0 %v768
      %887 = vmatprep.subr.bf16.mxu0 0
      %888 = vmatpush1.bf16.msra.mxu0 %v769
      %889 = vmatprep.subr.bf16.mxu0 0
      %890 = vmatpush1.bf16.msra.mxu0 %v770
      %891 = vmatprep.subr.bf16.mxu0 0
      %892 = vmatpush1.bf16.msra.mxu0 %v771
      %893 = vmatprep.subr.bf16.mxu0 0
      %894 = vmatpush1.bf16.msra.mxu0 %v772
      %895 = vmatprep.subr.bf16.mxu0 0
      %896 = vmatpush1.bf16.msra.mxu0 %v773
      %897 = vmatprep.subr.bf16.mxu0 0
      %898 = vmatpush1.bf16.msra.mxu0 %v774
      %899 = vmatprep.subr.bf16.mxu0 0
      %900 = vmatpush1.bf16.msra.mxu0 %v775
      %901 = vmatprep.subr.bf16.mxu0 0
      %902 = vmatpush1.bf16.msra.mxu0 %v776
      %903 = vmatprep.subr.bf16.mxu0 0
      %904 = vmatpush1.bf16.msra.mxu0 %v777
      %905 = vmatprep.subr.bf16.mxu0 0
      %906 = vmatpush1.bf16.msra.mxu0 %v778
      %907 = vmatprep.subr.bf16.mxu0 0
      %908 = vmatpush1.bf16.msra.mxu0 %v779
      %909 = vmatprep.subr.bf16.mxu0 0
      %910 = vmatpush1.bf16.msra.mxu0 0
      %911 = vmatprep.subr.bf16.mxu0 0
      %912 = vmatpush1.bf16.msra.mxu0 0
      %913 = vmatprep.subr.bf16.mxu0 0
      %914 = vmatpush1.bf16.msra.mxu0 0
      %915 = vmatprep.subr.bf16.mxu0 0
      %916 = vmatpush1.bf16.msra.mxu0 0
      %917 = vmatprep.mubr.bf16.mxu0 %v809
      %918 = vmatmul.mubr.bf16.gmra.mrb[0].mxu0 %v570
      %v919 = vpop.f32.mrb[0].mxu0
      %v920 = vadd.f32 %v855, %v919
      %v921 = vpop.f32.mrb[0].mxu0
      %v922 = vpop.f32.mrb[0].mxu0
      %v923 = vadd.f32 %v858, %v922
      %v924 = vpop.f32.mrb[0].mxu0
      %925 = vmatprep.mubr.bf16.mxu0 %v812
      %926 = vmatmul.mubr.bf16.gmra.mrb[0].mxu0 %v574
      %v927 = vpop.f32.mrb[0].mxu0
      %v928 = vadd.f32 %v863, %v927
      %v929 = vpop.f32.mrb[0].mxu0
      %v930 = vpop.f32.mrb[0].mxu0
      %v931 = vadd.f32 %v866, %v930
      %v932 = vpop.f32.mrb[0].mxu0
      %933 = vmatprep.mubr.bf16.mxu0 %v815
      %934 = vmatmul.mubr.bf16.gmra.mrb[0].mxu0 %v578
      %v935 = vpop.f32.mrb[0].mxu0
      %v936 = vadd.f32 %v871, %v935
      %v937 = vpop.f32.mrb[0].mxu0
      %v938 = vpop.f32.mrb[0].mxu0
      %v939 = vadd.f32 %v874, %v938
      %v940 = vpop.f32.mrb[0].mxu0
      %941 = vmatprep.mubr.bf16.mxu0 %v818
      %942 = vmatmul.mubr.bf16.gmra.mrb[0].mxu0 %v582
      %v943 = vpop.f32.mrb[0].mxu0
      %v944 = vadd.f32 %v879, %v943
      %v945 = vpop.f32.mrb[0].mxu0
      %v946 = vpop.f32.mrb[0].mxu0
      %v947 = vadd.f32 %v882, %v946
      %v948 = vpop.f32.mrb[0].mxu0
      %949 = vdwg.mxu0
      %v950 = vadd.f32 %v560, %v920
      %v951 = vadd.f32 %v561, %v923
      %v952 = vadd.f32 %v562, %v928
      %v953 = vadd.f32 %v563, %v931
      %v954 = vadd.f32 %v564, %v936
      %v955 = vadd.f32 %v565, %v939
      %v956 = vadd.f32 %v566, %v944
      %v957 = vadd.f32 %v567, %v947
      %958 = vst.msk [vmem:[#allocation2] sm:$0xff] %vm314, %v950
      %959 = vst.msk [vmem:[#allocation2 + $0x8] sm:$0xff] %vm314, %v951
      %960 = vst.msk [vmem:[#allocation2 + $0x10] sm:$0xff] %vm314, %v952
      %961 = vst.msk [vmem:[#allocation2 + $0x18] sm:$0xff] %vm314, %v953
      %962 = vst.msk [vmem:[#allocation2 + $0x20] sm:$0xff] %vm314, %v954
      %963 = vst.msk [vmem:[#allocation2 + $0x28] sm:$0xff] %vm314, %v955
      %964 = vst.msk [vmem:[#allocation2 + $0x30] sm:$0xff] %vm314, %v956
      %965 = vst.msk [vmem:[#allocation2 + $0x38] sm:$0xff] %vm314, %v957
      // Predicated region
      $region41: #{mixed4a_forward.8} parent=35 // pred_check
        %p966 = pneg %p269
      $region42: #{mixed4a_forward.8} parent=35 // pred_check_branch
        %968 = sbr.rel (%p966) target = $region44
      $region43: #{mixed4a_forward.8} parent=35 // pred_region
        %v969 = vld [vmem:[#allocation2] sm:$0xff]
        %v970 = vld [vmem:[#allocation2 + $0x8] sm:$0xff]
        %v971 = vld [vmem:[#allocation2 + $0x10] sm:$0xff]
        %v972 = vld [vmem:[#allocation2 + $0x18] sm:$0xff]
        %v973 = vld [vmem:[#allocation2 + $0x20] sm:$0xff]
        %v974 = vld [vmem:[#allocation2 + $0x28] sm:$0xff]
        %v975 = vld [vmem:[#allocation2 + $0x30] sm:$0xff]
        %v976 = vld [vmem:[#allocation2 + $0x38] sm:$0xff]
        %v977 = vld [vmem:[%s2] sm:$0x1]
        %v979 = vlaneseq
        %v980 = vshrl.u32 %v979, 7
        %v981 = vsub.s32 0, %v980
        %v982 = vrot.slane %v977, %v981
        %v984 = vmul.f32 %v969, %v982
        %v985 = vmul.f32 %v970, %v982
        %v986 = vmul.f32 %v971, %v982
        %v987 = vmul.f32 %v972, %v982
        %v988 = vmul.f32 %v973, %v982
        %v989 = vmul.f32 %v974, %v982
        %v990 = vmul.f32 %v975, %v982
        %v991 = vmul.f32 %v976, %v982
        %v992 = vld [vmem:[%s3] sm:$0x1]
        %v994 = vlaneseq
        %v995 = vshrl.u32 %v994, 7
        %v996 = vsub.s32 0, %v995
        %v997 = vrot.slane %v992, %v996
        %v999 = vadd.f32 %v984, %v997
        %v1000 = vadd.f32 %v985, %v997
        %v1001 = vadd.f32 %v986, %v997
        %v1002 = vadd.f32 %v987, %v997
        %v1003 = vadd.f32 %v988, %v997
        %v1004 = vadd.f32 %v989, %v997
        %v1005 = vadd.f32 %v990, %v997
        %v1006 = vadd.f32 %v991, %v997
        %v1007 = vmax.f32 %v999, 0.0
        %v1008 = vmax.f32 %v1000, 0.0
        %v1009 = vmax.f32 %v1001, 0.0
        %v1010 = vmax.f32 %v1002, 0.0
        %v1011 = vmax.f32 %v1003, 0.0
        %v1012 = vmax.f32 %v1004, 0.0
        %v1013 = vmax.f32 %v1005, 0.0
        %v1014 = vmax.f32 %v1006, 0.0
        %v1015 = vpack.c.bf16 %v1008, %v1007
        %v1016 = vpack.c.bf16 %v1010, %v1009
        %v1017 = vpack.c.bf16 %v1012, %v1011
        %v1018 = vpack.c.bf16 %v1014, %v1013
        %v1023 = vunpack.c.l.b16 %v1015
        %v1024 = vunpack.c.h.b16 %v1015
        %v1025 = vunpack.c.l.b16 %v1016
        %v1026 = vunpack.c.h.b16 %v1016
        %v1027 = vunpack.c.l.b16 %v1017
        %v1028 = vunpack.c.h.b16 %v1017
        %v1029 = vunpack.c.l.b16 %v1018
        %v1030 = vunpack.c.h.b16 %v1018
        %v1031 = vpack.c.b16 %v1023, %v1023
        %v1032 = vpack.c.b16 %v1024, %v1024
        %v1033 = vpack.c.b16 %v1025, %v1025
        %v1034 = vpack.c.b16 %v1026, %v1026
        %v1035 = vpack.c.b16 %v1027, %v1027
        %v1036 = vpack.c.b16 %v1028, %v1028
        %v1037 = vpack.c.b16 %v1029, %v1029
        %v1038 = vpack.c.b16 %v1030, %v1030
        %vm1047 = vcmask 519168
        %1048 = vst.msk [vmem:[%s267] sm:$0xf] %vm1047, %v1031
        %1049 = vst.msk [vmem:[%s267 + $0x4] sm:$0xf] %vm1047, %v1032
        %1050 = vst.msk [vmem:[%s267 + $0x8] sm:$0xf] %vm1047, %v1033
        %1051 = vst.msk [vmem:[%s267 + $0xc] sm:$0xf] %vm1047, %v1034
        %1052 = vst.msk [vmem:[%s267 + $0x10] sm:$0xf] %vm1047, %v1035
        %1053 = vst.msk [vmem:[%s267 + $0x14] sm:$0xf] %vm1047, %v1036
        %1054 = vst.msk [vmem:[%s267 + $0x18] sm:$0xf] %vm1047, %v1037
        %1055 = vst.msk [vmem:[%s267 + $0x1c] sm:$0xf] %vm1047, %v1038
      $region44: #{mixed4a_forward.8} parent=35 // pred_fallthru
        _
      %p1056 = scmp.lt.s32.totalorder %s20, 1
      %s1057 = scalar_select %p1056, %s20, 1
      %p1058 = scmp.lt.s32.totalorder %s21, 3
      %s1059 = scalar_select %p1058, %s21, 3
      %s1060 = smul.addr %s1059, 8
      %s1061 = smul.addr %s1057, 32
      %s1062 = sadd.s32 %s1060, %s1061
      %s1063 = smul.addr %s1062, 4
      %s1064 = scalar_lea.vmem %s4, %s1063
      // Predicated region
      $region45: #{mixed4a_forward.8} parent=35 // pred_check
        %p1065 = pneg %p152
      $region46: #{mixed4a_forward.8} parent=35 // pred_check_branch
        %1067 = sbr.rel (%p1065) target = $region48
      $region47: #{mixed4a_forward.8} parent=35 // pred_region
        _
      $region48: #{mixed4a_forward.8} parent=35 // pred_fallthru
        _
    $region36: #{mixed4a_forward.8} parent=5 // pred_fallthru
      _
    %p1068 = scmp.le.s32.totalorder 2, %s10
    // Predicated region
    $region49: #{mixed4a_forward.8} parent=5 // pred_check
      %p1069 = pneg %p1068
    $region50: #{mixed4a_forward.8} parent=5 // pred_check_branch
      %1071 = sbr.rel (%p1069) target = $region52
    $region51: #{mixed4a_forward.8} parent=5 // pred_region
      %s1072 = ssub.s32 %s10, 2
      // Predicated region
      $region53: #{mixed4a_forward.8} parent=51 // pred_check
        %p1073 = pneg %p158
      $region54: #{mixed4a_forward.8} parent=51 // pred_check_branch
        %1075 = sbr.rel (%p1073) target = $region56
      $region55: #{mixed4a_forward.8} parent=51 // pred_region
        %p1076 = scmp.lt.s32.totalorder %s23, 1
        %s1077 = scalar_select %p1076, %s23, 1
        %p1078 = scmp.lt.s32.totalorder %s24, 3
        %s1079 = scalar_select %p1078, %s24, 3
        %s1080 = smul.addr %s1079, 8
        %s1081 = smul.addr %s1077, 32
        %s1082 = sadd.s32 %s1080, %s1081
        %s1083 = smul.addr %s1082, 4
        %s1084 = scalar_lea.vmem %s4, %s1083
      $region56: #{mixed4a_forward.8} parent=51 // pred_fallthru
        _
    $region52: #{mixed4a_forward.8} parent=5 // pred_fallthru
      _
  $region6: #{mixed4a_forward.8} parent=0 // loop_footer
    %s14 = sadd.s32 1, %s10
  $region7: #{mixed4a_forward.8} parent=0 // loop_footer_branch
    %9 = sbr.rel target = $region3
  $region8: #{mixed4a_forward.8} parent=0 // loop_exit
    _

// kernel: mixed4a_forward.9
$region0: #{mixed4a_forward.9}
  #allocation0 [shape = 'u32[]', space=smem, size = 0x4, offset = 0x4, fixed_abs, tag = 'smem constant byte address 0x4 - core index']
  #allocation1 [shape = 'u32[144,128]{1,0:T(1,128)}', space=vmem, size = 0x12000, scoped, tag = 'internal scratch']
  #allocation2 [shape = 'f32[48,96]{1,0:T(8,128)}', space=vmem, size = 0x6000, scoped, tag = 'scratch operand']
  #allocation3 [shape = 'bf16[48,576]{1,0:T(16,128)(2,1)}', space=vmem, size = 0xf000, scoped, tag = 'scratch operand']
  %s0 = inlined_call_operand.vmem [shape: bf16[2,4,66,64], index: 0, kind: input, shape index: {}]
  %s1 = inlined_call_operand.vmem [shape: bf16[3,576,96], index: 1, kind: input, shape index: {}]
  %s2 = inlined_call_operand.vmem [shape: f32[1,96], index: 2, kind: input, shape index: {}]
  %s3 = inlined_call_operand.vmem [shape: f32[1,96], index: 3, kind: input, shape index: {}]
  %s4 = inlined_call_operand.vmem [shape: f32[2,2,48,96], index: 4, kind: output, shape index: {}]
  %s5 = sld [smem:[#allocation0]]
  $region57: #{mixed4a_forward.9} parent=0
    _
  %s7 = ssub.s32 1, %s5
  %s8 = scalar_select 0, %s7, %s5
  loop: start=0, step=1, limit=14
  $region2: #{mixed4a_forward.9} parent=0 // loop_pre_header
    _
  $region3: #{mixed4a_forward.9} parent=0 // loop_header
    %s10 = sphi 0, %s14
    %p11 = scmp.ge.s32.totalorder %s10, 14
    %s17 = sphi 0, %s36
    %s18 = sphi 0, %s32
    %s19 = sphi 0, %s28
    %s20 = sphi 0, %s17
    %s21 = sphi 0, %s18
    %s22 = sphi 0, %s19
    %s23 = sphi 0, %s20
    %s24 = sphi 0, %s21
    %s25 = sphi 0, %s22
    %s43 = sphi 0, %s45
    %s46 = sphi 0, %s43
    %s47 = sphi 0, %s46
    %s63 = sphi 0, %s47
    %s69 = sphi 0, %s71
    %s72 = sphi 0, %s69
    %s73 = sphi 0, %s72
    %s89 = sphi 0, %s73
    %s93 = sphi 0, %s93
    %s95 = sphi 0, %s93
    %s96 = sphi 0, %s95
    %s110 = sphi 0, %s96
    %s114 = sphi 0, %s114
    %s116 = sphi 0, %s114
    %s117 = sphi 0, %s116
    %s131 = sphi 0, %s117
    %s139 = sphi 0, %s141
    %s142 = sphi 0, %s139
    %s143 = sphi 0, %s142
    %s159 = sphi 0, %s143
  $region4: #{mixed4a_forward.9} parent=0 // loop_header_branch
    %13 = sbr.rel (%p11) target = $region8
  $region5: #{mixed4a_forward.9} parent=0 // loop_body
    %s15 = ssub.s32 %s10, 1
    %s16 = ssub.s32 %s10, 2
    %s26 = sadd.s32 1, %s19
    %p27 = scmp.ge.s32.totalorder %s26, 3
    %s28 = scalar_select %p27, 0, %s26
    %s29 = sadd.s32 1, %s18
    %s30 = scalar_select %p27, %s29, %s18
    %p31 = scmp.ge.s32.totalorder %s30, 2
    %s32 = scalar_select %p31, 0, %s30
    %s33 = sadd.s32 1, %s17
    %s34 = scalar_select %p31, %s33, %s17
    %p35 = scmp.ge.s32.totalorder %s34, 2
    %s36 = scalar_select %p35, 0, %s34
    %s37 = sadd.s32 %s18, %s19
    %s38 = sadd.s32 %s32, %s28
    %s39 = ssub.s32 %s17, %s36
    %s40 = ssub.s32 %s37, %s38
    %s41 = sor.u32 %s39, %s40
    %p42 = scmp.eq.s32.totalorder %s41, 0
    %s44 = sadd.s32 %s43, 1
    %s45 = scalar_select %p42, %s43, %s44
    %p48 = pneg %p42
    %p49 = scmp.eq.s32.totalorder %s10, 11
    %p50 = por %p48, %p49
    %p51 = scmp.ne.s32.totalorder %s43, %s46
    %p52 = scmp.eq.s32.totalorder %s10, 0
    %p53 = por %p51, %p52
    %p54 = scmp.ne.s32.totalorder %s43, %s46
    %p55 = scmp.eq.s32.totalorder %s15, 11
    %p56 = por %p54, %p55
    %p57 = scmp.ne.s32.totalorder %s46, %s47
    %p58 = scmp.eq.s32.totalorder %s15, 0
    %p59 = por %p57, %p58
    %p60 = scmp.ne.s32.totalorder %s46, %s47
    %p61 = scmp.eq.s32.totalorder %s16, 11
    %p62 = por %p60, %p61
    %p64 = scmp.ne.s32.totalorder %s47, %s63
    %p65 = scmp.eq.s32.totalorder %s16, 0
    %p66 = por %p64, %p65
    %s67 = ssub.s32 %s19, %s28
    %p68 = scmp.eq.s32.totalorder %s67, 0
    %s70 = sadd.s32 %s69, 1
    %s71 = scalar_select %p68, %s69, %s70
    %p74 = pneg %p68
    %p75 = scmp.eq.s32.totalorder %s10, 11
    %p76 = por %p74, %p75
    %p77 = scmp.ne.s32.totalorder %s69, %s72
    %p78 = scmp.eq.s32.totalorder %s10, 0
    %p79 = por %p77, %p78
    %p80 = scmp.ne.s32.totalorder %s69, %s72
    %p81 = scmp.eq.s32.totalorder %s15, 11
    %p82 = por %p80, %p81
    %p83 = scmp.ne.s32.totalorder %s72, %s73
    %p84 = scmp.eq.s32.totalorder %s15, 0
    %p85 = por %p83, %p84
    %p86 = scmp.ne.s32.totalorder %s72, %s73
    %p87 = scmp.eq.s32.totalorder %s16, 11
    %p88 = por %p86, %p87
    %p90 = scmp.ne.s32.totalorder %s73, %s89
    %p91 = scmp.eq.s32.totalorder %s16, 0
    %p92 = por %p90, %p91
    %s94 = sadd.s32 %s93, 1
    %p97 = scmp.eq.s32.totalorder %s10, 11
    %p98 = scmp.ne.s32.totalorder %s93, %s95
    %p99 = scmp.eq.s32.totalorder %s10, 0
    %p100 = por %p98, %p99
    %p101 = scmp.ne.s32.totalorder %s93, %s95
    %p102 = scmp.eq.s32.totalorder %s15, 11
    %p103 = por %p101, %p102
    %p104 = scmp.ne.s32.totalorder %s95, %s96
    %p105 = scmp.eq.s32.totalorder %s15, 0
    %p106 = por %p104, %p105
    %p107 = scmp.ne.s32.totalorder %s95, %s96
    %p108 = scmp.eq.s32.totalorder %s16, 11
    %p109 = por %p107, %p108
    %p111 = scmp.ne.s32.totalorder %s96, %s110
    %p112 = scmp.eq.s32.totalorder %s16, 0
    %p113 = por %p111, %p112
    %s115 = sadd.s32 %s114, 1
    %p118 = scmp.eq.s32.totalorder %s10, 11
    %p119 = scmp.ne.s32.totalorder %s114, %s116
    %p120 = scmp.eq.s32.totalorder %s10, 0
    %p121 = por %p119, %p120
    %p122 = scmp.ne.s32.totalorder %s114, %s116
    %p123 = scmp.eq.s32.totalorder %s15, 11
    %p124 = por %p122, %p123
    %p125 = scmp.ne.s32.totalorder %s116, %s117
    %p126 = scmp.eq.s32.totalorder %s15, 0
    %p127 = por %p125, %p126
    %p128 = scmp.ne.s32.totalorder %s116, %s117
    %p129 = scmp.eq.s32.totalorder %s16, 11
    %p130 = por %p128, %p129
    %p132 = scmp.ne.s32.totalorder %s117, %s131
    %p133 = scmp.eq.s32.totalorder %s16, 0
    %p134 = por %p132, %p133
    %s135 = ssub.s32 %s17, %s36
    %s136 = ssub.s32 %s18, %s32
    %s137 = sor.u32 %s135, %s136
    %p138 = scmp.eq.s32.totalorder %s137, 0
    %s140 = sadd.s32 %s139, 1
    %s141 = scalar_select %p138, %s139, %s140
    %p144 = pneg %p138
    %p145 = scmp.eq.s32.totalorder %s10, 11
    %p146 = por %p144, %p145
    %p147 = scmp.ne.s32.totalorder %s139, %s142
    %p148 = scmp.eq.s32.totalorder %s10, 0
    %p149 = por %p147, %p148
    %p150 = scmp.ne.s32.totalorder %s139, %s142
    %p151 = scmp.eq.s32.totalorder %s15, 11
    %p152 = por %p150, %p151
    %p153 = scmp.ne.s32.totalorder %s142, %s143
    %p154 = scmp.eq.s32.totalorder %s15, 0
    %p155 = por %p153, %p154
    %p156 = scmp.ne.s32.totalorder %s142, %s143
    %p157 = scmp.eq.s32.totalorder %s16, 11
    %p158 = por %p156, %p157
    %p160 = scmp.ne.s32.totalorder %s143, %s159
    %p161 = scmp.eq.s32.totalorder %s16, 0
    %p162 = por %p160, %p161
    %p163 = scmp.le.s32.totalorder 1, %s10
    %p164 = scmp.lt.s32.totalorder %s10, 13
    %p165 = pnand %p163, %p164
    %p166 = pneg %p165
    // Predicated region
    $region9: #{mixed4a_forward.9} parent=5 // pred_check
      _
    $region10: #{mixed4a_forward.9} parent=5 // pred_check_branch
      %168 = sbr.rel (%p165) target = $region12
    $region11: #{mixed4a_forward.9} parent=5 // pred_region
      %s169 = ssub.s32 %s10, 1
      // Predicated region
      $region13: #{mixed4a_forward.9} parent=11 // pred_check
        %p170 = pneg %p106
      $region14: #{mixed4a_forward.9} parent=11 // pred_check_branch
        %172 = sbr.rel (%p170) target = $region16
      $region15: #{mixed4a_forward.9} parent=11 // pred_region
        _
      $region16: #{mixed4a_forward.9} parent=11 // pred_fallthru
        _
      // Predicated region
      $region17: #{mixed4a_forward.9} parent=11 // pred_check
        %p173 = pneg %p127
      $region18: #{mixed4a_forward.9} parent=11 // pred_check_branch
        %175 = sbr.rel (%p173) target = $region20
      $region19: #{mixed4a_forward.9} parent=11 // pred_region
        _
      $region20: #{mixed4a_forward.9} parent=11 // pred_fallthru
        _
    $region12: #{mixed4a_forward.9} parent=5 // pred_fallthru
      _
    %p176 = scmp.lt.s32.totalorder %s10, 12
    // Predicated region
    $region21: #{mixed4a_forward.9} parent=5 // pred_check
      %p177 = pneg %p176
    $region22: #{mixed4a_forward.9} parent=5 // pred_check_branch
      %179 = sbr.rel (%p177) target = $region24
    $region23: #{mixed4a_forward.9} parent=5 // pred_region
      // Predicated region
      $region25: #{mixed4a_forward.9} parent=23 // pred_check
        %p180 = pneg %p53
      $region26: #{mixed4a_forward.9} parent=23 // pred_check_branch
        %182 = sbr.rel (%p180) target = $region28
      $region27: #{mixed4a_forward.9} parent=23 // pred_region
        %s183 = sadd.s32 %s18, %s19
        %p184 = scmp.lt.s32.totalorder %s17, 1
        %s185 = scalar_select %p184, %s17, 1
        %p186 = scmp.lt.s32.totalorder %s183, 3
        %s187 = scalar_select %p186, %s183, 3
        %s188 = smul.addr %s187, 9
        %s189 = smul.addr %s185, 36
        %s190 = sadd.s32 %s188, %s189
        %s191 = smul.addr %s190, 4
        %s192 = scalar_lea.vmem %s0, %s191
        %s193 = sadd.s32 %s18, %s19
      $region28: #{mixed4a_forward.9} parent=23 // pred_fallthru
        _
      // Predicated region
      $region29: #{mixed4a_forward.9} parent=23 // pred_check
        %p194 = pneg %p79
      $region30: #{mixed4a_forward.9} parent=23 // pred_check_branch
        %196 = sbr.rel (%p194) target = $region32
      $region31: #{mixed4a_forward.9} parent=23 // pred_region
        %p197 = scmp.lt.s32.totalorder %s19, 2
        %s198 = scalar_select %p197, %s19, 2
        %s199 = smul.addr %s198, 72
        %s200 = smul.addr %s199, 4
        %s201 = scalar_lea.vmem %s1, %s200
      $region32: #{mixed4a_forward.9} parent=23 // pred_fallthru
        _
    $region24: #{mixed4a_forward.9} parent=5 // pred_fallthru
      _
    %p202 = scmp.le.s32.totalorder 1, %s10
    %p203 = scmp.lt.s32.totalorder %s10, 13
    %p204 = pnand %p202, %p203
    %p205 = pneg %p204
    // Predicated region
    $region33: #{mixed4a_forward.9} parent=5 // pred_check
      _
    $region34: #{mixed4a_forward.9} parent=5 // pred_check_branch
      %207 = sbr.rel (%p204) target = $region36
    $region35: #{mixed4a_forward.9} parent=5 // pred_region
      %s208 = ssub.s32 %s10, 1
      %s209 = sadd.s32 %s21, %s22
      %p210 = scmp.lt.s32.totalorder %s20, 1
      %s211 = scalar_select %p210, %s20, 1
      %p212 = scmp.lt.s32.totalorder %s209, 3
      %s213 = scalar_select %p212, %s209, 3
      %s214 = smul.addr %s213, 9
      %s215 = smul.addr %s211, 36
      %s216 = sadd.s32 %s214, %s215
      %s217 = smul.addr %s216, 4
      %s218 = scalar_lea.vmem %s0, %s217
      %p219 = pneg %p59
      %p220 = pneg %p56
      %p221 = scmp.lt.s32.totalorder %s22, 2
      %s222 = scalar_select %p221, %s22, 2
      %s223 = smul.addr %s222, 72
      %s224 = smul.addr %s223, 4
      %s225 = scalar_lea.vmem %s1, %s224
      %p226 = pneg %p85
      %p227 = pneg %p82
      %p228 = pneg %p106
      %p229 = pneg %p103
      %p230 = pneg %p127
      %p231 = pneg %p124
      %p232 = pneg %p155
      %p233 = pneg %p152
      %p234 = scmp.lt.s32.totalorder %s20, 1
      %s235 = scalar_select %p234, %s20, 1
      %p236 = scmp.lt.s32.totalorder %s21, 1
      %s237 = scalar_select %p236, %s21, 1
      %s238 = smul.addr %s237, 6
      %s239 = smul.addr %s235, 12
      %s240 = sadd.s32 %s238, %s239
      %s241 = smul.addr %s240, 8
      %s242 = scalar_lea.vmem %s4, %s241
      %s243 = sadd.s32 %s21, %s22
      %p244 = scmp.lt.s32.totalorder %s20, 1
      %s245 = scalar_select %p244, %s20, 1
      %p246 = scmp.lt.s32.totalorder %s243, 3
      %s247 = scalar_select %p246, %s243, 3
      %s248 = smul.addr %s247, 9
      %s249 = smul.addr %s245, 36
      %s250 = sadd.s32 %s248, %s249
      %s251 = smul.addr %s250, 4
      %s252 = scalar_lea.vmem %s0, %s251
      %s253 = sadd.s32 %s21, %s22
      %p254 = scmp.lt.s32.totalorder %s22, 2
      %s255 = scalar_select %p254, %s22, 2
      %s256 = smul.addr %s255, 72
      %s257 = smul.addr %s256, 4
      %s258 = scalar_lea.vmem %s1, %s257
      %p259 = scmp.lt.s32.totalorder %s20, 1
      %s260 = scalar_select %p259, %s20, 1
      %p261 = scmp.lt.s32.totalorder %s21, 1
      %s262 = scalar_select %p261, %s21, 1
      %s263 = smul.addr %s262, 6
      %s264 = smul.addr %s260, 12
      %s265 = sadd.s32 %s263, %s264
      %s266 = smul.addr %s265, 8
      %s267 = scalar_lea.vmem %s4, %s266
      %p269 = scmp.eq.s32.totalorder %s22, 0
      // Predicated region
      $region37: #{mixed4a_forward.9} parent=35 // pred_check
        %p270 = pneg %p269
      $region38: #{mixed4a_forward.9} parent=35 // pred_check_branch
        %272 = sbr.rel (%p270) target = $region40
      $region39: #{mixed4a_forward.9} parent=35 // pred_region
        %vm273 = vcmask 785408
        %274 = vst.msk [vmem:[#allocation2] sm:$0xff] %vm273, 0.0
        %275 = vst.msk [vmem:[#allocation2 + $0x8] sm:$0xff] %vm273, 0.0
        %276 = vst.msk [vmem:[#allocation2 + $0x10] sm:$0xff] %vm273, 0.0
        %277 = vst.msk [vmem:[#allocation2 + $0x18] sm:$0xff] %vm273, 0.0
        %278 = vst.msk [vmem:[#allocation2 + $0x20] sm:$0xff] %vm273, 0.0
        %279 = vst.msk [vmem:[#allocation2 + $0x28] sm:$0xff] %vm273, 0.0
      $region40: #{mixed4a_forward.9} parent=35 // pred_fallthru
        _
      %v280 = vld [vmem:[%s252] sm:$0xf]
      %v281 = vld [vmem:[%s252 + $0x4] sm:$0xf]
      %v282 = vld [vmem:[%s252 + $0x8] sm:$0xf]
      %v283 = vld [vmem:[%s252 + $0xc] sm:$0xf]
      %v284 = vld [vmem:[%s252 + $0x10] sm:$0xf]
      %v285 = vld [vmem:[%s252 + $0x14] sm:$0xf]
      %v292 = vunpack.c.l.b16 %v280
      %v293 = vunpack.c.l.b16 %v281
      %v294 = vunpack.c.l.b16 %v282
      %v295 = vunpack.c.l.b16 %v283
      %v296 = vunpack.c.l.b16 %v284
      %v297 = vunpack.c.l.b16 %v285
      %v298 = vpack.c.b16 %v293, %v292
      %v299 = vpack.c.b16 %v295, %v294
      %v300 = vpack.c.b16 %v297, %v296
      %vm304 = vcmask 523264
      %305 = vst.msk [vmem:[#allocation3] sm:$0xff] %vm304, %v298
      %306 = vst.msk [vmem:[#allocation3 + $0x28] sm:$0xff] %vm304, %v299
      %307 = vst.msk [vmem:[#allocation3 + $0x50] sm:$0xff] %vm304, %v300
      %v308 = vld [vmem:[%s252] sm:$0xf]
      %v309 = vld [vmem:[%s252 + $0x4] sm:$0xf]
      %v310 = vld [vmem:[%s252 + $0x8] sm:$0xf]
      %v311 = vld [vmem:[%s252 + $0xc] sm:$0xf]
      %v312 = vld [vmem:[%s252 + $0x10] sm:$0xf]
      %v313 = vld [vmem:[%s252 + $0x14] sm:$0xf]
      %v314 = vld [vmem:[%s252 + $0x18] sm:$0x1]
      %v322 = vunpack.c.l.b16 %v308
      %v323 = vunpack.c.l.b16 %v309
      %v324 = vunpack.c.l.b16 %v310
      %v325 = vunpack.c.l.b16 %v311
      %v326 = vunpack.c.l.b16 %v312
      %v327 = vunpack.c.l.b16 %v313
      %v328 = vunpack.c.l.b16 %v314
      %v329 = vpack.c.b16 %v323, %v322
      %v330 = vpack.c.b16 %v325, %v324
      %v331 = vpack.c.b16 %v327, %v326
      %v332 = vpack.c.b16 %v328, %v328
      %vm333 = vsmask.f32 7424
      %v335 = vshrl.u32 %v329, 16
      %v337 = vshll.u32 %v329, 16
      %v339 = vrot.slane %v337, 1
      %v340 = vor.u32 %v335, %v339
      %v342 = vshll.u32 %v330, 16
      %v344 = vrot.slane %v342, 1
      %v345 = vsel %vm333, %v340, %v344
      %v346 = vshrl.u32 %v330, 16
      %v348 = vor.u32 %v346, %v344
      %v350 = vshll.u32 %v331, 16
      %v352 = vrot.slane %v350, 1
      %v353 = vsel %vm333, %v348, %v352
      %v354 = vshrl.u32 %v331, 16
      %v356 = vor.u32 %v354, %v352
      %v358 = vshll.u32 %v332, 16
      %v360 = vrot.slane %v358, 1
      %v361 = vsel %vm333, %v356, %v360
      %362 = vrot.lane.b32.xlu0 %v345, 64
      %v363 = vpop.permute.xlu0 %362
      %364 = vrot.lane.b32.xlu0 %v353, 64
      %v365 = vpop.permute.xlu0 %364
      %366 = vrot.lane.b32.xlu0 %v361, 64
      %v367 = vpop.permute.xlu0 %366
      %vm371 = vcmask 1048064
      %372 = vst.msk [vmem:[#allocation3] sm:$0xff] %vm371, %v363
      %373 = vst.msk [vmem:[#allocation3 + $0x28] sm:$0xff] %vm371, %v365
      %374 = vst.msk [vmem:[#allocation3 + $0x50] sm:$0xff] %vm371, %v367
      %v375 = vld [vmem:[%s252] sm:$0xe]
      %v376 = vld [vmem:[%s252 + $0x4] sm:$0xf]
      %v377 = vld [vmem:[%s252 + $0x8] sm:$0xf]
      %v378 = vld [vmem:[%s252 + $0xc] sm:$0xf]
      %v379 = vld [vmem:[%s252 + $0x10] sm:$0xf]
      %v380 = vld [vmem:[%s252 + $0x14] sm:$0xf]
      %v381 = vld [vmem:[%s252 + $0x18] sm:$0x1]
      %v389 = vunpack.c.l.b16 %v375
      %v390 = vunpack.c.l.b16 %v376
      %v391 = vunpack.c.l.b16 %v377
      %v392 = vunpack.c.l.b16 %v378
      %v393 = vunpack.c.l.b16 %v379
      %v394 = vunpack.c.l.b16 %v380
      %v395 = vunpack.c.l.b16 %v381
      %v396 = vpack.c.b16 %v390, %v389
      %v397 = vpack.c.b16 %v392, %v391
      %v398 = vpack.c.b16 %v394, %v393
      %v399 = vpack.c.b16 %v395, %v395
      %vm400 = vcmask 1046528
      %v401 = vrot.slane %v396, 1
      %v402 = vrot.slane %v397, 1
      %v403 = vsel %vm400, %v401, %v402
      %v404 = vrot.slane %v398, 1
      %v405 = vsel %vm400, %v402, %v404
      %v406 = vrot.slane %v399, 1
      %v407 = vsel %vm400, %v404, %v406
      %411 = vst.msk [vmem:[#allocation3 + $0x8] sm:$0xff] %vm304, %v403
      %412 = vst.msk [vmem:[#allocation3 + $0x30] sm:$0xff] %vm304, %v405
      %413 = vst.msk [vmem:[#allocation3 + $0x58] sm:$0xff] %vm304, %v407
      %v414 = vld [vmem:[%s252 + $0x4] sm:$0xf]
      %v415 = vld [vmem:[%s252 + $0x8] sm:$0xf]
      %v416 = vld [vmem:[%s252 + $0xc] sm:$0xf]
      %v417 = vld [vmem:[%s252 + $0x10] sm:$0xf]
      %v418 = vld [vmem:[%s252 + $0x14] sm:$0xf]
      %v419 = vld [vmem:[%s252 + $0x18] sm:$0xf]
      %v426 = vunpack.c.l.b16 %v414
      %v427 = vunpack.c.l.b16 %v415
      %v428 = vunpack.c.l.b16 %v416
      %v429 = vunpack.c.l.b16 %v417
      %v430 = vunpack.c.l.b16 %v418
      %v431 = vunpack.c.l.b16 %v419
      %v432 = vpack.c.b16 %v427, %v426
      %v433 = vpack.c.b16 %v429, %v428
      %v434 = vpack.c.b16 %v431, %v430
      %435 = vrot.lane.b32.xlu0 %v432, 64
      %v436 = vpop.permute.xlu0 %435
      %437 = vrot.lane.b32.xlu0 %v433, 64
      %v438 = vpop.permute.xlu0 %437
      %439 = vrot.lane.b32.xlu0 %v434, 64
      %v440 = vpop.permute.xlu0 %439
      %444 = vst.msk [vmem:[#allocation3 + $0x8] sm:$0xff] %vm371, %v436
      %445 = vst.msk [vmem:[#allocation3 + $0x30] sm:$0xff] %vm371, %v438
      %446 = vst.msk [vmem:[#allocation3 + $0x58] sm:$0xff] %vm371, %v440
      %v447 = vld [vmem:[%s252 + $0x4] sm:$0xf]
      %v448 = vld [vmem:[%s252 + $0x8] sm:$0xf]
      %v449 = vld [vmem:[%s252 + $0xc] sm:$0xf]
      %v450 = vld [vmem:[%s252 + $0x10] sm:$0xf]
      %v451 = vld [vmem:[%s252 + $0x14] sm:$0xf]
      %v452 = vld [vmem:[%s252 + $0x18] sm:$0xf]
      %v453 = vld [vmem:[%s252 + $0x1c] sm:$0x1]
      %v461 = vunpack.c.l.b16 %v447
      %v462 = vunpack.c.l.b16 %v448
      %v463 = vunpack.c.l.b16 %v449
      %v464 = vunpack.c.l.b16 %v450
      %v465 = vunpack.c.l.b16 %v451
      %v466 = vunpack.c.l.b16 %v452
      %v467 = vunpack.c.l.b16 %v453
      %v468 = vpack.c.b16 %v462, %v461
      %v469 = vpack.c.b16 %v464, %v463
      %v470 = vpack.c.b16 %v466, %v465
      %v471 = vpack.c.b16 %v467, %v467
      %v473 = vshrl.u32 %v468, 16
      %v475 = vshll.u32 %v468, 16
      %v477 = vrot.slane %v475, 1
      %v478 = vor.u32 %v473, %v477
      %v480 = vshll.u32 %v469, 16
      %v482 = vrot.slane %v480, 1
      %v483 = vsel %vm333, %v478, %v482
      %v484 = vshrl.u32 %v469, 16
      %v486 = vor.u32 %v484, %v482
      %v488 = vshll.u32 %v470, 16
      %v490 = vrot.slane %v488, 1
      %v491 = vsel %vm333, %v486, %v490
      %v492 = vshrl.u32 %v470, 16
      %v494 = vor.u32 %v492, %v490
      %v496 = vshll.u32 %v471, 16
      %v498 = vrot.slane %v496, 1
      %v499 = vsel %vm333, %v494, %v498
      %503 = vst.msk [vmem:[#allocation3 + $0x10] sm:$0xff] %vm304, %v483
      %504 = vst.msk [vmem:[#allocation3 + $0x38] sm:$0xff] %vm304, %v491
      %505 = vst.msk [vmem:[#allocation3 + $0x60] sm:$0xff] %vm304, %v499
      %v506 = vld [vmem:[%s252 + $0x4] sm:$0xe]
      %v507 = vld [vmem:[%s252 + $0x8] sm:$0xf]
      %v508 = vld [vmem:[%s252 + $0xc] sm:$0xf]
      %v509 = vld [vmem:[%s252 + $0x10] sm:$0xf]
      %v510 = vld [vmem:[%s252 + $0x14] sm:$0xf]
      %v511 = vld [vmem:[%s252 + $0x18] sm:$0xf]
      %v512 = vld [vmem:[%s252 + $0x1c] sm:$0x1]
      %v520 = vunpack.c.l.b16 %v506
      %v521 = vunpack.c.l.b16 %v507
      %v522 = vunpack.c.l.b16 %v508
      %v523 = vunpack.c.l.b16 %v509
      %v524 = vunpack.c.l.b16 %v510
      %v525 = vunpack.c.l.b16 %v511
      %v526 = vunpack.c.l.b16 %v512
      %v527 = vpack.c.b16 %v521, %v520
      %v528 = vpack.c.b16 %v523, %v522
      %v529 = vpack.c.b16 %v525, %v524
      %v530 = vpack.c.b16 %v526, %v526
      %v531 = vrot.slane %v527, 1
      %v532 = vrot.slane %v528, 1
      %v533 = vsel %vm400, %v531, %v532
      %v534 = vrot.slane %v529, 1
      %v535 = vsel %vm400, %v532, %v534
      %v536 = vrot.slane %v530, 1
      %v537 = vsel %vm400, %v534, %v536
      %538 = vrot.lane.b32.xlu0 %v533, 64
      %v539 = vpop.permute.xlu0 %538
      %540 = vrot.lane.b32.xlu0 %v535, 64
      %v541 = vpop.permute.xlu0 %540
      %542 = vrot.lane.b32.xlu0 %v537, 64
      %v543 = vpop.permute.xlu0 %542
      %547 = vst.msk [vmem:[#allocation3 + $0x10] sm:$0xff] %vm371, %v539
      %548 = vst.msk [vmem:[#allocation3 + $0x38] sm:$0xff] %vm371, %v541
      %549 = vst.msk [vmem:[#allocation3 + $0x60] sm:$0xff] %vm371, %v543
      %v550 = vld [vmem:[%s252 + $0x8] sm:$0xf]
      %v551 = vld [vmem:[%s252 + $0xc] sm:$0xf]
      %v552 = vld [vmem:[%s252 + $0x10] sm:$0xf]
      %v553 = vld [vmem:[%s252 + $0x14] sm:$0xf]
      %v554 = vld [vmem:[%s252 + $0x18] sm:$0xf]
      %v555 = vld [vmem:[%s252 + $0x1c] sm:$0xf]
      %v562 = vunpack.c.l.b16 %v550
      %v563 = vunpack.c.l.b16 %v551
      %v564 = vunpack.c.l.b16 %v552
      %v565 = vunpack.c.l.b16 %v553
      %v566 = vunpack.c.l.b16 %v554
      %v567 = vunpack.c.l.b16 %v555
      %v568 = vpack.c.b16 %v563, %v562
      %v569 = vpack.c.b16 %v565, %v564
      %v570 = vpack.c.b16 %v567, %v566
      %574 = vst.msk [vmem:[#allocation3 + $0x18] sm:$0xff] %vm304, %v568
      %575 = vst.msk [vmem:[#allocation3 + $0x40] sm:$0xff] %vm304, %v569
      %576 = vst.msk [vmem:[#allocation3 + $0x68] sm:$0xff] %vm304, %v570
      %v577 = vld [vmem:[%s252 + $0x8] sm:$0xf]
      %v578 = vld [vmem:[%s252 + $0xc] sm:$0xf]
      %v579 = vld [vmem:[%s252 + $0x10] sm:$0xf]
      %v580 = vld [vmem:[%s252 + $0x14] sm:$0xf]
      %v581 = vld [vmem:[%s252 + $0x18] sm:$0xf]
      %v582 = vld [vmem:[%s252 + $0x1c] sm:$0xf]
      %v583 = vld [vmem:[%s252 + $0x20] sm:$0x1]
      %v591 = vunpack.c.l.b16 %v577
      %v592 = vunpack.c.l.b16 %v578
      %v593 = vunpack.c.l.b16 %v579
      %v594 = vunpack.c.l.b16 %v580
      %v595 = vunpack.c.l.b16 %v581
      %v596 = vunpack.c.l.b16 %v582
      %v597 = vunpack.c.l.b16 %v583
      %v598 = vpack.c.b16 %v592, %v591
      %v599 = vpack.c.b16 %v594, %v593
      %v600 = vpack.c.b16 %v596, %v595
      %v601 = vpack.c.b16 %v597, %v597
      %v603 = vshrl.u32 %v598, 16
      %v605 = vshll.u32 %v598, 16
      %v607 = vrot.slane %v605, 1
      %v608 = vor.u32 %v603, %v607
      %v610 = vshll.u32 %v599, 16
      %v612 = vrot.slane %v610, 1
      %v613 = vsel %vm333, %v608, %v612
      %v614 = vshrl.u32 %v599, 16
      %v616 = vor.u32 %v614, %v612
      %v618 = vshll.u32 %v600, 16
      %v620 = vrot.slane %v618, 1
      %v621 = vsel %vm333, %v616, %v620
      %v622 = vshrl.u32 %v600, 16
      %v624 = vor.u32 %v622, %v620
      %v626 = vshll.u32 %v601, 16
      %v628 = vrot.slane %v626, 1
      %v629 = vsel %vm333, %v624, %v628
      %630 = vrot.lane.b32.xlu0 %v613, 64
      %v631 = vpop.permute.xlu0 %630
      %632 = vrot.lane.b32.xlu0 %v621, 64
      %v633 = vpop.permute.xlu0 %632
      %634 = vrot.lane.b32.xlu0 %v629, 64
      %v635 = vpop.permute.xlu0 %634
      %639 = vst.msk [vmem:[#allocation3 + $0x18] sm:$0xff] %vm371, %v631
      %640 = vst.msk [vmem:[#allocation3 + $0x40] sm:$0xff] %vm371, %v633
      %641 = vst.msk [vmem:[#allocation3 + $0x68] sm:$0xff] %vm371, %v635
      %v642 = vld [vmem:[%s252 + $0x8] sm:$0xe]
      %v643 = vld [vmem:[%s252 + $0xc] sm:$0xf]
      %v644 = vld [vmem:[%s252 + $0x10] sm:$0xf]
      %v645 = vld [vmem:[%s252 + $0x14] sm:$0xf]
      %v646 = vld [vmem:[%s252 + $0x18] sm:$0xf]
      %v647 = vld [vmem:[%s252 + $0x1c] sm:$0xf]
      %v648 = vld [vmem:[%s252 + $0x20] sm:$0x1]
      %v656 = vunpack.c.l.b16 %v642
      %v657 = vunpack.c.l.b16 %v643
      %v658 = vunpack.c.l.b16 %v644
      %v659 = vunpack.c.l.b16 %v645
      %v660 = vunpack.c.l.b16 %v646
      %v661 = vunpack.c.l.b16 %v647
      %v662 = vunpack.c.l.b16 %v648
      %v663 = vpack.c.b16 %v657, %v656
      %v664 = vpack.c.b16 %v659, %v658
      %v665 = vpack.c.b16 %v661, %v660
      %v666 = vpack.c.b16 %v662, %v662
      %v667 = vrot.slane %v663, 1
      %v668 = vrot.slane %v664, 1
      %v669 = vsel %vm400, %v667, %v668
      %v670 = vrot.slane %v665, 1
      %v671 = vsel %vm400, %v668, %v670
      %v672 = vrot.slane %v666, 1
      %v673 = vsel %vm400, %v670, %v672
      %677 = vst.msk [vmem:[#allocation3 + $0x20] sm:$0xff] %vm304, %v669
      %678 = vst.msk [vmem:[#allocation3 + $0x48] sm:$0xff] %vm304, %v671
      %679 = vst.msk [vmem:[#allocation3 + $0x70] sm:$0xff] %vm304, %v673
      %v680 = vld [vmem:[#allocation2] sm:$0xff]
      %v681 = vld [vmem:[#allocation2 + $0x8] sm:$0xff]
      %v682 = vld [vmem:[#allocation2 + $0x10] sm:$0xff]
      %v683 = vld [vmem:[#allocation2 + $0x18] sm:$0xff]
      %v684 = vld [vmem:[#allocation2 + $0x20] sm:$0xff]
      %v685 = vld [vmem:[#allocation2 + $0x28] sm:$0xff]
      %v686 = vld [vmem:[#allocation3] sm:$0xff]
      %v687 = vld [vmem:[#allocation3 + $0x8] sm:$0xff]
      %v688 = vld [vmem:[#allocation3 + $0x10] sm:$0xff]
      %v689 = vld [vmem:[#allocation3 + $0x18] sm:$0xff]
      %v690 = vld [vmem:[#allocation3 + $0x20] sm:$0xff]
      %v691 = vld [vmem:[#allocation3 + $0x28] sm:$0xff]
      %v692 = vld [vmem:[#allocation3 + $0x30] sm:$0xff]
      %v693 = vld [vmem:[#allocation3 + $0x38] sm:$0xff]
      %v694 = vld [vmem:[#allocation3 + $0x40] sm:$0xff]
      %v695 = vld [vmem:[#allocation3 + $0x48] sm:$0xff]
      %v696 = vld [vmem:[#allocation3 + $0x50] sm:$0xff]
      %v697 = vld [vmem:[#allocation3 + $0x58] sm:$0xff]
      %v698 = vld [vmem:[#allocation3 + $0x60] sm:$0xff]
      %v699 = vld [vmem:[#allocation3 + $0x68] sm:$0xff]
      %v700 = vld [vmem:[#allocation3 + $0x70] sm:$0xff]
      %v701 = vld [vmem:[%s258] sm:$0xf]
      %v702 = vld [vmem:[%s258 + $0x4] sm:$0xf]
      %v703 = vld [vmem:[%s258 + $0x8] sm:$0xf]
      %v704 = vld [vmem:[%s258 + $0xc] sm:$0xf]
      %v705 = vld [vmem:[%s258 + $0x10] sm:$0xf]
      %v706 = vld [vmem:[%s258 + $0x14] sm:$0xf]
      %v707 = vld [vmem:[%s258 + $0x18] sm:$0xf]
      %v708 = vld [vmem:[%s258 + $0x1c] sm:$0xf]
      %v709 = vld [vmem:[%s258 + $0x20] sm:$0xf]
      %v710 = vld [vmem:[%s258 + $0x24] sm:$0xf]
      %v711 = vld [vmem:[%s258 + $0x28] sm:$0xf]
      %v712 = vld [vmem:[%s258 + $0x2c] sm:$0xf]
      %v713 = vld [vmem:[%s258 + $0x30] sm:$0xf]
      %v714 = vld [vmem:[%s258 + $0x34] sm:$0xf]
      %v715 = vld [vmem:[%s258 + $0x38] sm:$0xf]
      %v716 = vld [vmem:[%s258 + $0x3c] sm:$0xf]
      %v717 = vld [vmem:[%s258 + $0x40] sm:$0xf]
      %v718 = vld [vmem:[%s258 + $0x44] sm:$0xf]
      %v719 = vld [vmem:[%s258 + $0x48] sm:$0xf]
      %v720 = vld [vmem:[%s258 + $0x4c] sm:$0xf]
      %v721 = vld [vmem:[%s258 + $0x50] sm:$0xf]
      %v722 = vld [vmem:[%s258 + $0x54] sm:$0xf]
      %v723 = vld [vmem:[%s258 + $0x58] sm:$0xf]
      %v724 = vld [vmem:[%s258 + $0x5c] sm:$0xf]
      %v725 = vld [vmem:[%s258 + $0x60] sm:$0xf]
      %v726 = vld [vmem:[%s258 + $0x64] sm:$0xf]
      %v727 = vld [vmem:[%s258 + $0x68] sm:$0xf]
      %v728 = vld [vmem:[%s258 + $0x6c] sm:$0xf]
      %v729 = vld [vmem:[%s258 + $0x70] sm:$0xf]
      %v730 = vld [vmem:[%s258 + $0x74] sm:$0xf]
      %v731 = vld [vmem:[%s258 + $0x78] sm:$0xf]
      %v732 = vld [vmem:[%s258 + $0x7c] sm:$0xf]
      %v733 = vld [vmem:[%s258 + $0x80] sm:$0xf]
      %v734 = vld [vmem:[%s258 + $0x84] sm:$0xf]
      %v735 = vld [vmem:[%s258 + $0x88] sm:$0xf]
      %v736 = vld [vmem:[%s258 + $0x8c] sm:$0xf]
      %v737 = vld [vmem:[%s258 + $0x90] sm:$0xf]
      %v738 = vld [vmem:[%s258 + $0x94] sm:$0xf]
      %v739 = vld [vmem:[%s258 + $0x98] sm:$0xf]
      %v740 = vld [vmem:[%s258 + $0x9c] sm:$0xf]
      %v741 = vld [vmem:[%s258 + $0xa0] sm:$0xf]
      %v742 = vld [vmem:[%s258 + $0xa4] sm:$0xf]
      %v743 = vld [vmem:[%s258 + $0xa8] sm:$0xf]
      %v744 = vld [vmem:[%s258 + $0xac] sm:$0xf]
      %v745 = vld [vmem:[%s258 + $0xb0] sm:$0xf]
      %v746 = vld [vmem:[%s258 + $0xb4] sm:$0xf]
      %v747 = vld [vmem:[%s258 + $0xb8] sm:$0xf]
      %v748 = vld [vmem:[%s258 + $0xbc] sm:$0xf]
      %v749 = vld [vmem:[%s258 + $0xc0] sm:$0xf]
      %v750 = vld [vmem:[%s258 + $0xc4] sm:$0xf]
      %v751 = vld [vmem:[%s258 + $0xc8] sm:$0xf]
      %v752 = vld [vmem:[%s258 + $0xcc] sm:$0xf]
      %v753 = vld [vmem:[%s258 + $0xd0] sm:$0xf]
      %v754 = vld [vmem:[%s258 + $0xd4] sm:$0xf]
      %v755 = vld [vmem:[%s258 + $0xd8] sm:$0xf]
      %v756 = vld [vmem:[%s258 + $0xdc] sm:$0xf]
      %v757 = vld [vmem:[%s258 + $0xe0] sm:$0xf]
      %v758 = vld [vmem:[%s258 + $0xe4] sm:$0xf]
      %v759 = vld [vmem:[%s258 + $0xe8] sm:$0xf]
      %v760 = vld [vmem:[%s258 + $0xec] sm:$0xf]
      %v761 = vld [vmem:[%s258 + $0xf0] sm:$0xf]
      %v762 = vld [vmem:[%s258 + $0xf4] sm:$0xf]
      %v763 = vld [vmem:[%s258 + $0xf8] sm:$0xf]
      %v764 = vld [vmem:[%s258 + $0xfc] sm:$0xf]
      %v765 = vld [vmem:[%s258 + $0x100] sm:$0xf]
      %v766 = vld [vmem:[%s258 + $0x104] sm:$0xf]
      %v767 = vld [vmem:[%s258 + $0x108] sm:$0xf]
      %v768 = vld [vmem:[%s258 + $0x10c] sm:$0xf]
      %v769 = vld [vmem:[%s258 + $0x110] sm:$0xf]
      %v770 = vld [vmem:[%s258 + $0x114] sm:$0xf]
      %v771 = vld [vmem:[%s258 + $0x118] sm:$0xf]
      %v772 = vld [vmem:[%s258 + $0x11c] sm:$0xf]
      %v845 = vunpack.c.l.b16 %v701
      %v846 = vunpack.c.l.b16 %v702
      %v847 = vunpack.c.l.b16 %v703
      %v848 = vunpack.c.l.b16 %v704
      %v849 = vunpack.c.l.b16 %v705
      %v850 = vunpack.c.l.b16 %v706
      %v851 = vunpack.c.l.b16 %v707
      %v852 = vunpack.c.l.b16 %v708
      %v853 = vunpack.c.l.b16 %v709
      %v854 = vunpack.c.l.b16 %v710
      %v855 = vunpack.c.l.b16 %v711
      %v856 = vunpack.c.l.b16 %v712
      %v857 = vunpack.c.l.b16 %v713
      %v858 = vunpack.c.l.b16 %v714
      %v859 = vunpack.c.l.b16 %v715
      %v860 = vunpack.c.l.b16 %v716
      %v861 = vunpack.c.l.b16 %v717
      %v862 = vunpack.c.l.b16 %v718
      %v863 = vunpack.c.l.b16 %v719
      %v864 = vunpack.c.l.b16 %v720
      %v865 = vunpack.c.l.b16 %v721
      %v866 = vunpack.c.l.b16 %v722
      %v867 = vunpack.c.l.b16 %v723
      %v868 = vunpack.c.l.b16 %v724
      %v869 = vunpack.c.l.b16 %v725
      %v870 = vunpack.c.l.b16 %v726
      %v871 = vunpack.c.l.b16 %v727
      %v872 = vunpack.c.l.b16 %v728
      %v873 = vunpack.c.l.b16 %v729
      %v874 = vunpack.c.l.b16 %v730
      %v875 = vunpack.c.l.b16 %v731
      %v876 = vunpack.c.l.b16 %v732
      %v877 = vunpack.c.l.b16 %v733
      %v878 = vunpack.c.l.b16 %v734
      %v879 = vunpack.c.l.b16 %v735
      %v880 = vunpack.c.l.b16 %v736
      %v881 = vunpack.c.l.b16 %v737
      %v882 = vunpack.c.l.b16 %v738
      %v883 = vunpack.c.l.b16 %v739
      %v884 = vunpack.c.l.b16 %v740
      %v885 = vunpack.c.l.b16 %v741
      %v886 = vunpack.c.l.b16 %v742
      %v887 = vunpack.c.l.b16 %v743
      %v888 = vunpack.c.l.b16 %v744
      %v889 = vunpack.c.l.b16 %v745
      %v890 = vunpack.c.l.b16 %v746
      %v891 = vunpack.c.l.b16 %v747
      %v892 = vunpack.c.l.b16 %v748
      %v893 = vunpack.c.l.b16 %v749
      %v894 = vunpack.c.l.b16 %v750
      %v895 = vunpack.c.l.b16 %v751
      %v896 = vunpack.c.l.b16 %v752
      %v897 = vunpack.c.l.b16 %v753
      %v898 = vunpack.c.l.b16 %v754
      %v899 = vunpack.c.l.b16 %v755
      %v900 = vunpack.c.l.b16 %v756
      %v901 = vunpack.c.l.b16 %v757
      %v902 = vunpack.c.l.b16 %v758
      %v903 = vunpack.c.l.b16 %v759
      %v904 = vunpack.c.l.b16 %v760
      %v905 = vunpack.c.l.b16 %v761
      %v906 = vunpack.c.l.b16 %v762
      %v907 = vunpack.c.l.b16 %v763
      %v908 = vunpack.c.l.b16 %v764
      %v909 = vunpack.c.l.b16 %v765
      %v910 = vunpack.c.l.b16 %v766
      %v911 = vunpack.c.l.b16 %v767
      %v912 = vunpack.c.l.b16 %v768
      %v913 = vunpack.c.l.b16 %v769
      %v914 = vunpack.c.l.b16 %v770
      %v915 = vunpack.c.l.b16 %v771
      %v916 = vunpack.c.l.b16 %v772
      %v917 = vpack.c.b16 %v846, %v845
      %v918 = vpack.c.b16 %v848, %v847
      %v919 = vpack.c.b16 %v850, %v849
      %v920 = vpack.c.b16 %v852, %v851
      %v921 = vpack.c.b16 %v854, %v853
      %v922 = vpack.c.b16 %v856, %v855
      %v923 = vpack.c.b16 %v858, %v857
      %v924 = vpack.c.b16 %v860, %v859
      %v925 = vpack.c.b16 %v862, %v861
      %v926 = vpack.c.b16 %v864, %v863
      %v927 = vpack.c.b16 %v866, %v865
      %v928 = vpack.c.b16 %v868, %v867
      %v929 = vpack.c.b16 %v870, %v869
      %v930 = vpack.c.b16 %v872, %v871
      %v931 = vpack.c.b16 %v874, %v873
      %v932 = vpack.c.b16 %v876, %v875
      %v933 = vpack.c.b16 %v878, %v877
      %v934 = vpack.c.b16 %v880, %v879
      %v935 = vpack.c.b16 %v882, %v881
      %v936 = vpack.c.b16 %v884, %v883
      %v937 = vpack.c.b16 %v886, %v885
      %v938 = vpack.c.b16 %v888, %v887
      %v939 = vpack.c.b16 %v890, %v889
      %v940 = vpack.c.b16 %v892, %v891
      %v941 = vpack.c.b16 %v894, %v893
      %v942 = vpack.c.b16 %v896, %v895
      %v943 = vpack.c.b16 %v898, %v897
      %v944 = vpack.c.b16 %v900, %v899
      %v945 = vpack.c.b16 %v902, %v901
      %v946 = vpack.c.b16 %v904, %v903
      %v947 = vpack.c.b16 %v906, %v905
      %v948 = vpack.c.b16 %v908, %v907
      %v949 = vpack.c.b16 %v910, %v909
      %v950 = vpack.c.b16 %v912, %v911
      %v951 = vpack.c.b16 %v914, %v913
      %v952 = vpack.c.b16 %v916, %v915
      %v990 = vsel %vm304, %v690, 0
      %v993 = vsel %vm304, %v695, 0
      %v996 = vsel %vm304, %v700, 0
      %998 = vmatprep.subr.bf16.mxu0 0
      %999 = vmatpush1.bf16.msra.mxu0 %v917
      %1000 = vmatprep.subr.bf16.mxu0 0
      %1001 = vmatpush1.bf16.msra.mxu0 %v918
      %1002 = vmatprep.subr.bf16.mxu0 0
      %1003 = vmatpush1.bf16.msra.mxu0 %v919
      %1004 = vmatprep.subr.bf16.mxu0 0
      %1005 = vmatpush1.bf16.msra.mxu0 %v920
      %1006 = vmatprep.subr.bf16.mxu0 0
      %1007 = vmatpush1.bf16.msra.mxu0 %v921
      %1008 = vmatprep.subr.bf16.mxu0 0
      %1009 = vmatpush1.bf16.msra.mxu0 %v922
      %1010 = vmatprep.subr.bf16.mxu0 0
      %1011 = vmatpush1.bf16.msra.mxu0 %v923
      %1012 = vmatprep.subr.bf16.mxu0 0
      %1013 = vmatpush1.bf16.msra.mxu0 %v924
      %1014 = vmatprep.subr.bf16.mxu0 0
      %1015 = vmatpush1.bf16.msra.mxu0 %v925
      %1016 = vmatprep.subr.bf16.mxu0 0
      %1017 = vmatpush1.bf16.msra.mxu0 %v926
      %1018 = vmatprep.subr.bf16.mxu0 0
      %1019 = vmatpush1.bf16.msra.mxu0 %v927
      %1020 = vmatprep.subr.bf16.mxu0 0
      %1021 = vmatpush1.bf16.msra.mxu0 %v928
      %1022 = vmatprep.subr.bf16.mxu0 0
      %1023 = vmatpush1.bf16.msra.mxu0 %v929
      %1024 = vmatprep.subr.bf16.mxu0 0
      %1025 = vmatpush1.bf16.msra.mxu0 %v930
      %1026 = vmatprep.subr.bf16.mxu0 0
      %1027 = vmatpush1.bf16.msra.mxu0 %v931
      %1028 = vmatprep.subr.bf16.mxu0 0
      %1029 = vmatpush1.bf16.msra.mxu0 %v932
      %1030 = vmatprep.mubr.bf16.mxu0 %v687
      %1031 = vmatmul.mubr.bf16.gmra.mrb[0].mxu0 %v686
      %v1032 = vpop.f32.mrb[0].mxu0
      %v1033 = vadd.f32 0.0, %v1032
      %v1034 = vpop.f32.mrb[0].mxu0
      %v1035 = vpop.f32.mrb[0].mxu0
      %v1036 = vadd.f32 0.0, %v1035
      %v1037 = vpop.f32.mrb[0].mxu0
      %1038 = vmatprep.mubr.bf16.mxu0 %v692
      %1039 = vmatmul.mubr.bf16.gmra.mrb[0].mxu0 %v691
      %v1040 = vpop.f32.mrb[0].mxu0
      %v1041 = vadd.f32 0.0, %v1040
      %v1042 = vpop.f32.mrb[0].mxu0
      %v1043 = vpop.f32.mrb[0].mxu0
      %v1044 = vadd.f32 0.0, %v1043
      %v1045 = vpop.f32.mrb[0].mxu0
      %1046 = vmatprep.mubr.bf16.mxu0 %v697
      %1047 = vmatmul.mubr.bf16.gmra.mrb[0].mxu0 %v696
      %v1048 = vpop.f32.mrb[0].mxu0
      %v1049 = vadd.f32 0.0, %v1048
      %v1050 = vpop.f32.mrb[0].mxu0
      %v1051 = vpop.f32.mrb[0].mxu0
      %v1052 = vadd.f32 0.0, %v1051
      %v1053 = vpop.f32.mrb[0].mxu0
      %1054 = vdwg.mxu0
      %1055 = vmatprep.subr.bf16.mxu0 0
      %1056 = vmatpush1.bf16.msra.mxu0 %v933
      %1057 = vmatprep.subr.bf16.mxu0 0
      %1058 = vmatpush1.bf16.msra.mxu0 %v934
      %1059 = vmatprep.subr.bf16.mxu0 0
      %1060 = vmatpush1.bf16.msra.mxu0 %v935
      %1061 = vmatprep.subr.bf16.mxu0 0
      %1062 = vmatpush1.bf16.msra.mxu0 %v936
      %1063 = vmatprep.subr.bf16.mxu0 0
      %1064 = vmatpush1.bf16.msra.mxu0 %v937
      %1065 = vmatprep.subr.bf16.mxu0 0
      %1066 = vmatpush1.bf16.msra.mxu0 %v938
      %1067 = vmatprep.subr.bf16.mxu0 0
      %1068 = vmatpush1.bf16.msra.mxu0 %v939
      %1069 = vmatprep.subr.bf16.mxu0 0
      %1070 = vmatpush1.bf16.msra.mxu0 %v940
      %1071 = vmatprep.subr.bf16.mxu0 0
      %1072 = vmatpush1.bf16.msra.mxu0 %v941
      %1073 = vmatprep.subr.bf16.mxu0 0
      %1074 = vmatpush1.bf16.msra.mxu0 %v942
      %1075 = vmatprep.subr.bf16.mxu0 0
      %1076 = vmatpush1.bf16.msra.mxu0 %v943
      %1077 = vmatprep.subr.bf16.mxu0 0
      %1078 = vmatpush1.bf16.msra.mxu0 %v944
      %1079 = vmatprep.subr.bf16.mxu0 0
      %1080 = vmatpush1.bf16.msra.mxu0 %v945
      %1081 = vmatprep.subr.bf16.mxu0 0
      %1082 = vmatpush1.bf16.msra.mxu0 %v946
      %1083 = vmatprep.subr.bf16.mxu0 0
      %1084 = vmatpush1.bf16.msra.mxu0 %v947
      %1085 = vmatprep.subr.bf16.mxu0 0
      %1086 = vmatpush1.bf16.msra.mxu0 %v948
      %1087 = vmatprep.mubr.bf16.mxu0 %v689
      %1088 = vmatmul.mubr.bf16.gmra.mrb[0].mxu0 %v688
      %v1089 = vpop.f32.mrb[0].mxu0
      %v1090 = vadd.f32 %v1033, %v1089
      %v1091 = vpop.f32.mrb[0].mxu0
      %v1092 = vpop.f32.mrb[0].mxu0
      %v1093 = vadd.f32 %v1036, %v1092
      %v1094 = vpop.f32.mrb[0].mxu0
      %1095 = vmatprep.mubr.bf16.mxu0 %v694
      %1096 = vmatmul.mubr.bf16.gmra.mrb[0].mxu0 %v693
      %v1097 = vpop.f32.mrb[0].mxu0
      %v1098 = vadd.f32 %v1041, %v1097
      %v1099 = vpop.f32.mrb[0].mxu0
      %v1100 = vpop.f32.mrb[0].mxu0
      %v1101 = vadd.f32 %v1044, %v1100
      %v1102 = vpop.f32.mrb[0].mxu0
      %1103 = vmatprep.mubr.bf16.mxu0 %v699
      %1104 = vmatmul.mubr.bf16.gmra.mrb[0].mxu0 %v698
      %v1105 = vpop.f32.mrb[0].mxu0
      %v1106 = vadd.f32 %v1049, %v1105
      %v1107 = vpop.f32.mrb[0].mxu0
      %v1108 = vpop.f32.mrb[0].mxu0
      %v1109 = vadd.f32 %v1052, %v1108
      %v1110 = vpop.f32.mrb[0].mxu0
      %1111 = vdwg.mxu0
      %1112 = vmatprep.subr.bf16.mxu0 0
      %1113 = vmatpush1.bf16.msra.mxu0 %v949
      %1114 = vmatprep.subr.bf16.mxu0 0
      %1115 = vmatpush1.bf16.msra.mxu0 %v950
      %1116 = vmatprep.subr.bf16.mxu0 0
      %1117 = vmatpush1.bf16.msra.mxu0 %v951
      %1118 = vmatprep.subr.bf16.mxu0 0
      %1119 = vmatpush1.bf16.msra.mxu0 %v952
      %1120 = vmatprep.subr.bf16.mxu0 0
      %1121 = vmatpush1.bf16.msra.mxu0 0
      %1122 = vmatprep.subr.bf16.mxu0 0
      %1123 = vmatpush1.bf16.msra.mxu0 0
      %1124 = vmatprep.subr.bf16.mxu0 0
      %1125 = vmatpush1.bf16.msra.mxu0 0
      %1126 = vmatprep.subr.bf16.mxu0 0
      %1127 = vmatpush1.bf16.msra.mxu0 0
      %1128 = vmatprep.subr.bf16.mxu0 0
      %1129 = vmatpush1.bf16.msra.mxu0 0
      %1130 = vmatprep.subr.bf16.mxu0 0
      %1131 = vmatpush1.bf16.msra.mxu0 0
      %1132 = vmatprep.subr.bf16.mxu0 0
      %1133 = vmatpush1.bf16.msra.mxu0 0
      %1134 = vmatprep.subr.bf16.mxu0 0
      %1135 = vmatpush1.bf16.msra.mxu0 0
      %1136 = vmatprep.subr.bf16.mxu0 0
      %1137 = vmatpush1.bf16.msra.mxu0 0
      %1138 = vmatprep.subr.bf16.mxu0 0
      %1139 = vmatpush1.bf16.msra.mxu0 0
      %1140 = vmatprep.subr.bf16.mxu0 0
      %1141 = vmatpush1.bf16.msra.mxu0 0
      %1142 = vmatprep.subr.bf16.mxu0 0
      %1143 = vmatpush1.bf16.msra.mxu0 0
      %1144 = vmatprep.mubr.bf16.mxu0 0
      %1145 = vmatmul.mubr.bf16.gmra.mrb[0].mxu0 %v990
      %v1146 = vpop.f32.mrb[0].mxu0
      %v1147 = vadd.f32 %v1090, %v1146
      %v1148 = vpop.f32.mrb[0].mxu0
      %v1149 = vpop.f32.mrb[0].mxu0
      %v1150 = vadd.f32 %v1093, %v1149
      %v1151 = vpop.f32.mrb[0].mxu0
      %1152 = vmatprep.mubr.bf16.mxu0 0
      %1153 = vmatmul.mubr.bf16.gmra.mrb[0].mxu0 %v993
      %v1154 = vpop.f32.mrb[0].mxu0
      %v1155 = vadd.f32 %v1098, %v1154
      %v1156 = vpop.f32.mrb[0].mxu0
      %v1157 = vpop.f32.mrb[0].mxu0
      %v1158 = vadd.f32 %v1101, %v1157
      %v1159 = vpop.f32.mrb[0].mxu0
      %1160 = vmatprep.mubr.bf16.mxu0 0
      %1161 = vmatmul.mubr.bf16.gmra.mrb[0].mxu0 %v996
      %v1162 = vpop.f32.mrb[0].mxu0
      %v1163 = vadd.f32 %v1106, %v1162
      %v1164 = vpop.f32.mrb[0].mxu0
      %v1165 = vpop.f32.mrb[0].mxu0
      %v1166 = vadd.f32 %v1109, %v1165
      %v1167 = vpop.f32.mrb[0].mxu0
      %1168 = vdwg.mxu0
      %v1169 = vadd.f32 %v680, %v1147
      %v1170 = vadd.f32 %v681, %v1150
      %v1171 = vadd.f32 %v682, %v1155
      %v1172 = vadd.f32 %v683, %v1158
      %v1173 = vadd.f32 %v684, %v1163
      %v1174 = vadd.f32 %v685, %v1166
      %vm1175 = vcmask 785408
      %1176 = vst.msk [vmem:[#allocation2] sm:$0xff] %vm1175, %v1169
      %1177 = vst.msk [vmem:[#allocation2 + $0x8] sm:$0xff] %vm1175, %v1170
      %1178 = vst.msk [vmem:[#allocation2 + $0x10] sm:$0xff] %vm1175, %v1171
      %1179 = vst.msk [vmem:[#allocation2 + $0x18] sm:$0xff] %vm1175, %v1172
      %1180 = vst.msk [vmem:[#allocation2 + $0x20] sm:$0xff] %vm1175, %v1173
      %1181 = vst.msk [vmem:[#allocation2 + $0x28] sm:$0xff] %vm1175, %v1174
      %p1182 = scmp.eq.s32.totalorder %s22, 2
      // Predicated region
      $region41: #{mixed4a_forward.9} parent=35 // pred_check
        %p1183 = pneg %p1182
      $region42: #{mixed4a_forward.9} parent=35 // pred_check_branch
        %1185 = sbr.rel (%p1183) target = $region44
      $region43: #{mixed4a_forward.9} parent=35 // pred_region
        %v1186 = vld [vmem:[#allocation2] sm:$0xff]
        %v1187 = vld [vmem:[#allocation2 + $0x8] sm:$0xff]
        %v1188 = vld [vmem:[#allocation2 + $0x10] sm:$0xff]
        %v1189 = vld [vmem:[#allocation2 + $0x18] sm:$0xff]
        %v1190 = vld [vmem:[#allocation2 + $0x20] sm:$0xff]
        %v1191 = vld [vmem:[#allocation2 + $0x28] sm:$0xff]
        %v1192 = vld [vmem:[%s2] sm:$0x1]
        %v1194 = vlaneseq
        %v1195 = vshrl.u32 %v1194, 7
        %v1196 = vsub.s32 0, %v1195
        %v1197 = vrot.slane %v1192, %v1196
        %v1199 = vmul.f32 %v1186, %v1197
        %v1200 = vmul.f32 %v1187, %v1197
        %v1201 = vmul.f32 %v1188, %v1197
        %v1202 = vmul.f32 %v1189, %v1197
        %v1203 = vmul.f32 %v1190, %v1197
        %v1204 = vmul.f32 %v1191, %v1197
        %v1205 = vld [vmem:[%s3] sm:$0x1]
        %v1207 = vlaneseq
        %v1208 = vshrl.u32 %v1207, 7
        %v1209 = vsub.s32 0, %v1208
        %v1210 = vrot.slane %v1205, %v1209
        %v1212 = vadd.f32 %v1199, %v1210
        %v1213 = vadd.f32 %v1200, %v1210
        %v1214 = vadd.f32 %v1201, %v1210
        %v1215 = vadd.f32 %v1202, %v1210
        %v1216 = vadd.f32 %v1203, %v1210
        %v1217 = vadd.f32 %v1204, %v1210
        %v1218 = vmax.f32 %v1212, 0.0
        %v1219 = vmax.f32 %v1213, 0.0
        %v1220 = vmax.f32 %v1214, 0.0
        %v1221 = vmax.f32 %v1215, 0.0
        %v1222 = vmax.f32 %v1216, 0.0
        %v1223 = vmax.f32 %v1217, 0.0
        %1224 = vst.msk [vmem:[%s267] sm:$0xff] %vm1175, %v1218
        %1225 = vst.msk [vmem:[%s267 + $0x8] sm:$0xff] %vm1175, %v1219
        %1226 = vst.msk [vmem:[%s267 + $0x10] sm:$0xff] %vm1175, %v1220
        %1227 = vst.msk [vmem:[%s267 + $0x18] sm:$0xff] %vm1175, %v1221
        %1228 = vst.msk [vmem:[%s267 + $0x20] sm:$0xff] %vm1175, %v1222
        %1229 = vst.msk [vmem:[%s267 + $0x28] sm:$0xff] %vm1175, %v1223
      $region44: #{mixed4a_forward.9} parent=35 // pred_fallthru
        _
      %p1230 = scmp.lt.s32.totalorder %s20, 1
      %s1231 = scalar_select %p1230, %s20, 1
      %p1232 = scmp.lt.s32.totalorder %s21, 1
      %s1233 = scalar_select %p1232, %s21, 1
      %s1234 = smul.addr %s1233, 6
      %s1235 = smul.addr %s1231, 12
      %s1236 = sadd.s32 %s1234, %s1235
      %s1237 = smul.addr %s1236, 8
      %s1238 = scalar_lea.vmem %s4, %s1237
      // Predicated region
      $region45: #{mixed4a_forward.9} parent=35 // pred_check
        %p1239 = pneg %p152
      $region46: #{mixed4a_forward.9} parent=35 // pred_check_branch
        %1241 = sbr.rel (%p1239) target = $region48
      $region47: #{mixed4a_forward.9} parent=35 // pred_region
        _
      $region48: #{mixed4a_forward.9} parent=35 // pred_fallthru
        _
    $region36: #{mixed4a_forward.9} parent=5 // pred_fallthru
      _
    %p1242 = scmp.le.s32.totalorder 2, %s10
    // Predicated region
    $region49: #{mixed4a_forward.9} parent=5 // pred_check
      %p1243 = pneg %p1242
    $region50: #{mixed4a_forward.9} parent=5 // pred_check_branch
      %1245 = sbr.rel (%p1243) target = $region52
    $region51: #{mixed4a_forward.9} parent=5 // pred_region
      %s1246 = ssub.s32 %s10, 2
      // Predicated region
      $region53: #{mixed4a_forward.9} parent=51 // pred_check
        %p1247 = pneg %p158
      $region54: #{mixed4a_forward.9} parent=51 // pred_check_branch
        %1249 = sbr.rel (%p1247) target = $region56
      $region55: #{mixed4a_forward.9} parent=51 // pred_region
        %p1250 = scmp.lt.s32.totalorder %s23, 1
        %s1251 = scalar_select %p1250, %s23, 1
        %p1252 = scmp.lt.s32.totalorder %s24, 1
        %s1253 = scalar_select %p1252, %s24, 1
        %s1254 = smul.addr %s1253, 6
        %s1255 = smul.addr %s1251, 12
        %s1256 = sadd.s32 %s1254, %s1255
        %s1257 = smul.addr %s1256, 8
        %s1258 = scalar_lea.vmem %s4, %s1257
      $region56: #{mixed4a_forward.9} parent=51 // pred_fallthru
        _
    $region52: #{mixed4a_forward.9} parent=5 // pred_fallthru
      _
  $region6: #{mixed4a_forward.9} parent=0 // loop_footer
    %s14 = sadd.s32 1, %s10
  $region7: #{mixed4a_forward.9} parent=0 // loop_footer_branch
    %9 = sbr.rel target = $region3
  $region8: #{mixed4a_forward.9} parent=0 // loop_exit
    _

</llo_original>
